<compile_context>
chip_gen: v7x
topology: tpu7x:2x2x1
jax: 0.10.0
libtpu: 0.0.40
codegen_flags: <defaults>
</compile_context>

<pallas_src>
import functools

import jax
import jax.numpy as jnp
from jax.experimental import pallas as pl
from jax.experimental.pallas import tpu as pltpu

_BN_EPS = 1e-5


# ---------------------------------------------------------------------------
# Fused Pallas kernel (one grid step == one image)
# ---------------------------------------------------------------------------
def _fused_cnn_kernel(x_ref, w1_ref, b1_ref, w2_ref, b2_ref, s2_ref, t2_ref,
                      w3_ref, b3_ref, o_ref,
                      h1_s, cm_s, pm_s, p2_s, p3_s,
                      *, W, Hp, Wp, R1, C1, P1, Wpad):
    """Whole MyCNNGAP forward for one image.

    Layouts (all rows = flattened spatial positions, lanes = channels):
      x_ref : (H*W, 1)   flattened single-channel input, row q = i*W + j
      h1_s  : (R1, 16)   conv1+ReLU output band on the width-W flat grid
      cm_s  : (C1, 16)   width-wise max of 3 consecutive columns
      pm_s  : (P1, 16)   3x3 / stride-3 max-pool values on the flat conv1 grid
      p2_s  : ((Hp+2)*(Wp+2), 16)  zero-padded pooled grid  (conv2 input)
      p3_s  : ((Hp+2)*(Wp+2), 32)  zero-padded BN2 output   (conv3 input)
    """
    f32 = jnp.float32
    q0 = Wpad + 1                      # first interior row of a padded grid
    L2 = (Hp - 1) * Wpad + Wp          # contiguous row band covering interior

    # ---- folded BN1 + Conv2d(1,16,3) valid + ReLU: 9 VPU outer-product FMAs
    # Conv output at flat row q needs x rows q + dy*W + dx.
    acc1 = jnp.zeros((R1, 16), f32)
    for dy in range(3):
        for dx in range(3):
            col = x_ref[pl.ds(dy * W + dx, R1), :]             # (R1, 1)
            acc1 = acc1 + col * w1_ref[pl.ds(dy * 3 + dx, 1), :]  # bcast (1,16)
    h1_s[...] = jnp.maximum(acc1 + b1_ref[...], 0.0)

    # ---- MaxPool2d(3) (kernel 3, stride 3, floor): two shifted row-max passes
    cm_s[...] = jnp.maximum(jnp.maximum(h1_s[pl.ds(0, C1), :],
                                        h1_s[pl.ds(1, C1), :]),
                            h1_s[pl.ds(2, C1), :])
    pm_s[...] = jnp.maximum(jnp.maximum(cm_s[pl.ds(0, P1), :],
                                        cm_s[pl.ds(W, P1), :]),
                            cm_s[pl.ds(2 * W, P1), :])

    # ---- scatter pooled (Hp, Wp, 16) into the zero-padded conv2 input grid
    p2_s[...] = jnp.zeros_like(p2_s)
    for pi in range(Hp):
        for pj in range(Wp):
            p2_s[pl.ds((pi + 1) * Wpad + pj + 1, 1), :] = (
                pm_s[pl.ds(3 * pi * W + 3 * pj, 1), :])

    # ---- Conv2d(16,32,3,pad=1) + bias + ReLU + BN2 affine: 9 tap GEMMs (MXU)
    acc2 = jnp.zeros((L2, 32), f32)
    for dy in range(3):
        for dx in range(3):
            off = (dy - 1) * Wpad + (dx - 1)
            acc2 = acc2 + jnp.dot(p2_s[pl.ds(q0 + off, L2), :],
                                  w2_ref[dy * 3 + dx],
                                  preferred_element_type=f32)
    h2 = jnp.maximum(acc2 + b2_ref[...], 0.0)
    h2 = h2 * s2_ref[...] + t2_ref[...]          # BatchNorm2d(32), eval stats

    # ---- re-pad: copy only interior rows (pad rows stay exactly zero)
    p3_s[...] = jnp.zeros_like(p3_s)
    for i in range(Hp):
        p3_s[pl.ds(q0 + i * Wpad, Wp), :] = h2[i * Wpad:i * Wpad + Wp, :]

    # ---- Conv2d(32,24,3,pad=1) + bias: 9 tap GEMMs (MXU)
    acc3 = jnp.zeros((L2, 24), f32)
    for dy in range(3):
        for dx in range(3):
            off = (dy - 1) * Wpad + (dx - 1)
            acc3 = acc3 + jnp.dot(p3_s[pl.ds(q0 + off, L2), :],
                                  w3_ref[dy * 3 + dx],
                                  preferred_element_type=f32)
    h3 = acc3 + b3_ref[...]

    # ---- AdaptiveAvgPool2d((1,1)) over the Hp*Wp valid rows + softmax(-1)
    gsum = jnp.zeros((1, 24), f32)
    for i in range(Hp):
        gsum = gsum + jnp.sum(h3[i * Wpad:i * Wpad + Wp, :],
                              axis=0, keepdims=True)
    g = gsum * (1.0 / (Hp * Wp))
    e = jnp.exp(g - jnp.max(g, axis=-1, keepdims=True))
    o_ref[...] = e / jnp.sum(e, axis=-1, keepdims=True)


# ---------------------------------------------------------------------------
# pallas_call builder
# ---------------------------------------------------------------------------
def _build_fused_forward(N, H, W):
    assert H >= 5 and W >= 5, "input too small for Conv2d(3) + MaxPool2d(3)"
    Hp, Wp = (H - 2) // 3, (W - 2) // 3          # pooled spatial size
    Wpad = Wp + 2
    Rpad = (Hp + 2) * Wpad
    C1 = (3 * Hp - 1) * W + 3 * (Wp - 1) + 1     # rows needed by width-max pass
    P1 = 3 * (Hp - 1) * W + 3 * (Wp - 1) + 1     # rows needed by height-max pass
    R1 = C1 + 2                                  # conv1 output rows needed

    kernel = functools.partial(_fused_cnn_kernel, W=W, Hp=Hp, Wp=Wp,
                               R1=R1, C1=C1, P1=P1, Wpad=Wpad)

    return pl.pallas_call(
        kernel,
        out_shape=jax.ShapeDtypeStruct((N, 1, 24), jnp.float32),
        grid=(N,),
        in_specs=[
            pl.BlockSpec((None, H * W, 1), lambda b: (b, 0, 0)),  # image b
            pl.BlockSpec((9, 16), lambda b: (0, 0)),              # w1 (BN1 folded)
            pl.BlockSpec((1, 16), lambda b: (0, 0)),              # b1 (BN1 folded)
            pl.BlockSpec((9, 16, 32), lambda b: (0, 0, 0)),       # w2 taps
            pl.BlockSpec((1, 32), lambda b: (0, 0)),              # b2
            pl.BlockSpec((1, 32), lambda b: (0, 0)),              # BN2 scale
            pl.BlockSpec((1, 32), lambda b: (0, 0)),              # BN2 shift
            pl.BlockSpec((9, 32, 24), lambda b: (0, 0, 0)),       # w3 taps
            pl.BlockSpec((1, 24), lambda b: (0, 0)),              # b3
        ],
        out_specs=pl.BlockSpec((None, 1, 24), lambda b: (b, 0, 0)),
        scratch_shapes=[
            pltpu.VMEM((R1, 16), jnp.float32),    # conv1+ReLU band
            pltpu.VMEM((C1, 16), jnp.float32),    # width-wise 3-max
            pltpu.VMEM((P1, 16), jnp.float32),    # pooled values
            pltpu.VMEM((Rpad, 16), jnp.float32),  # zero-padded conv2 input
            pltpu.VMEM((Rpad, 32), jnp.float32),  # zero-padded conv3 input
        ],
        compiler_params=pltpu.CompilerParams(
            dimension_semantics=("parallel",)),
    )


# ---------------------------------------------------------------------------
# Parameter prep (plain JAX, runs once per trace): BN1 fold + weight re-layout
# ---------------------------------------------------------------------------
def _prepare_params(params):
    f32 = jnp.float32
    # BatchNorm2d(1) (eval) folded into conv1 (exact: conv1 has no padding).
    s1 = (params["bn1_gamma"] / jnp.sqrt(params["bn1_var"] + _BN_EPS)).astype(f32)
    t1 = (params["bn1_beta"] - params["bn1_mean"] * s1).astype(f32)
    w1 = params["w1"].astype(f32)                                  # (16,1,3,3)
    w1e = s1.reshape(1, 1) * jnp.transpose(w1[:, 0], (1, 2, 0)).reshape(9, 16)
    b1e = (params["b1"].astype(f32)
           + t1 * jnp.sum(w1[:, 0], axis=(1, 2))).reshape(1, 16)

    w2r = jnp.transpose(params["w2"].astype(f32), (2, 3, 1, 0)).reshape(9, 16, 32)
    b2r = params["b2"].astype(f32).reshape(1, 32)
    s2 = (params["bn2_gamma"] / jnp.sqrt(params["bn2_var"] + _BN_EPS)).astype(f32)
    t2 = (params["bn2_beta"] - params["bn2_mean"] * s2).astype(f32)

    w3r = jnp.transpose(params["w3"].astype(f32), (2, 3, 1, 0)).reshape(9, 32, 24)
    b3r = params["b3"].astype(f32).reshape(1, 24)
    return (w1e, b1e, w2r, b2r, s2.reshape(1, 32), t2.reshape(1, 32), w3r, b3r)


def my_cnn_gap_forward(x_nchw, params):
    """Eval-mode forward of MyCNNGAP.  x_nchw: (N,1,H,W) float -> (N,24) softmax."""
    N, C, H, W = x_nchw.shape
    assert C == 1, "MyCNNGAP expects a single input channel"
    x_flat = x_nchw.astype(jnp.float32).reshape(N, H * W, 1)
    out = _build_fused_forward(N, H, W)(x_flat, *_prepare_params(params))
    return out.reshape(N, 24)


# ---------------------------------------------------------------------------
# Deterministic parameters matching the PyTorch module's shapes (OIHW convs)
# ---------------------------------------------------------------------------
def init_params(key):
    ks = jax.random.split(key, 14)
    f32 = jnp.float32
    return dict(
        bn1_gamma=1.0 + 0.1 * jax.random.normal(ks[0], (1,), f32),
        bn1_beta=0.1 * jax.random.normal(ks[1], (1,), f32),
        bn1_mean=0.1 * jax.random.normal(ks[2], (1,), f32),
        bn1_var=jax.random.uniform(ks[3], (1,), f32, 0.5, 1.5),
        w1=(1.0 / 3.0) * jax.random.normal(ks[4], (16, 1, 3, 3), f32),
        b1=0.05 * jax.random.normal(ks[5], (16,), f32),
        w2=(1.0 / 12.0) * jax.random.normal(ks[6], (32, 16, 3, 3), f32),
        b2=0.05 * jax.random.normal(ks[7], (32,), f32),
        bn2_gamma=1.0 + 0.1 * jax.random.normal(ks[8], (32,), f32),
        bn2_beta=0.1 * jax.random.normal(ks[9], (32,), f32),
        bn2_mean=0.1 * jax.random.normal(ks[10], (32,), f32),
        bn2_var=jax.random.uniform(ks[11], (32,), f32, 0.5, 1.5),
        w3=(1.0 / 17.0) * jax.random.normal(ks[12], (24, 32, 3, 3), f32),
        b3=0.05 * jax.random.normal(ks[13], (24,), f32),
    )


# ---------------------------------------------------------------------------
# Pure-JAX reference (eval mode) for a correctness self-check
# ---------------------------------------------------------------------------
def _reference_forward(x_nchw, params):
    f32 = jnp.float32
    dn = ("NCHW", "OIHW", "NCHW")
    hi = jax.lax.Precision.HIGHEST
    x = x_nchw.astype(f32)
    s1 = params["bn1_gamma"] / jnp.sqrt(params["bn1_var"] + _BN_EPS)
    t1 = params["bn1_beta"] - params["bn1_mean"] * s1
    x = x * s1.reshape(1, 1, 1, 1) + t1.reshape(1, 1, 1, 1)
    h = jax.lax.conv_general_dilated(x, params["w1"].astype(f32), (1, 1), "VALID",
                                     dimension_numbers=dn, precision=hi)
    h = jnp.maximum(h + params["b1"].reshape(1, -1, 1, 1), 0.0)
    h = jax.lax.reduce_window(h, -jnp.inf, jax.lax.max,
                              (1, 1, 3, 3), (1, 1, 3, 3), "VALID")
    h = jax.lax.conv_general_dilated(h, params["w2"].astype(f32), (1, 1),
                                     ((1, 1), (1, 1)),
                                     dimension_numbers=dn, precision=hi)
    h = jnp.maximum(h + params["b2"].reshape(1, -1, 1, 1), 0.0)
    s2 = params["bn2_gamma"] / jnp.sqrt(params["bn2_var"] + _BN_EPS)
    t2 = params["bn2_beta"] - params["bn2_mean"] * s2
    h = h * s2.reshape(1, -1, 1, 1) + t2.reshape(1, -1, 1, 1)
    h = jax.lax.conv_general_dilated(h, params["w3"].astype(f32), (1, 1),
                                     ((1, 1), (1, 1)),
                                     dimension_numbers=dn, precision=hi)
    h = h + params["b3"].reshape(1, -1, 1, 1)
    return jax.nn.softmax(jnp.mean(h, axis=(2, 3)), axis=-1)


if __name__ == "__main__":
    key = jax.random.PRNGKey(0)
    pkey, xkey = jax.random.split(key)
    params = init_params(pkey)

    # PyTorch-style NCHW input; the module requires 1 input channel.
    x = jax.random.normal(xkey, (2, 1, 16, 16), jnp.float32)

    fwd = jax.jit(lambda inp: my_cnn_gap_forward(inp, params))
    out = jax.block_until_ready(fwd(x))

    assert out.shape == (2, 24), out.shape
    assert bool(jnp.all(jnp.isfinite(out)))
    assert bool(jnp.allclose(jnp.sum(out, axis=-1), 1.0, atol=1e-5))

    ref = jax.block_until_ready(jax.jit(lambda inp: _reference_forward(inp, params))(x))
    assert bool(jnp.allclose(out, ref, atol=2e-3, rtol=2e-3)), float(
        jnp.max(jnp.abs(out - ref)))

    print("KERNEL_OK")
</pallas_src>

<mosaic_0001>
module attributes {stable_mosaic.version = 11 : i64} {
  func.func @_fused_cnn_kernel(%arg0: i32, %arg1: memref<1x256x1xf32, #tpu.memory_space<vmem>>, %arg2: memref<9x16xf32, #tpu.memory_space<vmem>>, %arg3: memref<1x16xf32, #tpu.memory_space<vmem>>, %arg4: memref<9x16x32xf32, #tpu.memory_space<vmem>>, %arg5: memref<1x32xf32, #tpu.memory_space<vmem>>, %arg6: memref<1x32xf32, #tpu.memory_space<vmem>>, %arg7: memref<1x32xf32, #tpu.memory_space<vmem>>, %arg8: memref<9x32x24xf32, #tpu.memory_space<vmem>>, %arg9: memref<1x24xf32, #tpu.memory_space<vmem>>, %arg10: memref<1x1x24xf32, #tpu.memory_space<vmem>>, %arg11: memref<188x16xf32, #tpu.memory_space<vmem>>, %arg12: memref<186x16xf32, #tpu.memory_space<vmem>>, %arg13: memref<154x16xf32, #tpu.memory_space<vmem>>, %arg14: memref<36x16xf32, #tpu.memory_space<vmem>>, %arg15: memref<36x32xf32, #tpu.memory_space<vmem>>) attributes {dimension_semantics = [#tpu.dimension_semantics<parallel>], iteration_bounds = array<i64: 2>, scalar_prefetch = 0 : i64, scratch_operands = 5 : i64, tpu.core_type = #tpu.core_type<tc>, window_params = [{transform_indices = @transform_0, window_bounds = array<i64: 1, 256, 1>}, {pipeline_mode = #tpu.pipeline_mode<synchronous>, transform_indices = @transform_1, window_bounds = array<i64: 9, 16>}, {pipeline_mode = #tpu.pipeline_mode<synchronous>, transform_indices = @transform_2, window_bounds = array<i64: 1, 16>}, {pipeline_mode = #tpu.pipeline_mode<synchronous>, transform_indices = @transform_3, window_bounds = array<i64: 9, 16, 32>}, {pipeline_mode = #tpu.pipeline_mode<synchronous>, transform_indices = @transform_4, window_bounds = array<i64: 1, 32>}, {pipeline_mode = #tpu.pipeline_mode<synchronous>, transform_indices = @transform_5, window_bounds = array<i64: 1, 32>}, {pipeline_mode = #tpu.pipeline_mode<synchronous>, transform_indices = @transform_6, window_bounds = array<i64: 1, 32>}, {pipeline_mode = #tpu.pipeline_mode<synchronous>, transform_indices = @transform_7, window_bounds = array<i64: 9, 32, 24>}, {pipeline_mode = #tpu.pipeline_mode<synchronous>, transform_indices = @transform_8, window_bounds = array<i64: 1, 24>}, {transform_indices = @transform_9, window_bounds = array<i64: 1, 1, 24>}]} {
    %cst = arith.constant 0.000000e+00 : f32
    %0 = vector.broadcast %cst : f32 to vector<188x16xf32>
    %c0 = arith.constant 0 : index
    %c0_0 = arith.constant 0 : index
    %c0_1 = arith.constant 0 : index
    %1 = vector.load %arg1[%c0, %c0_0, %c0_1] : memref<1x256x1xf32, #tpu.memory_space<vmem>>, vector<1x188x1xf32>
    %2 = vector.shape_cast %1 : vector<1x188x1xf32> to vector<188x1xf32>
    %c0_2 = arith.constant 0 : index
    %c0_3 = arith.constant 0 : index
    %3 = vector.load %arg2[%c0_2, %c0_3] : memref<9x16xf32, #tpu.memory_space<vmem>>, vector<1x16xf32>
    %4 = vector.broadcast %2 : vector<188x1xf32> to vector<188x16xf32>
    %5 = vector.broadcast %3 : vector<1x16xf32> to vector<188x16xf32>
    %6 = arith.mulf %4, %5 : vector<188x16xf32>
    %7 = arith.addf %0, %6 : vector<188x16xf32>
    %c0_4 = arith.constant 0 : index
    %c1 = arith.constant 1 : index
    %c0_5 = arith.constant 0 : index
    %8 = vector.load %arg1[%c0_4, %c1, %c0_5] : memref<1x256x1xf32, #tpu.memory_space<vmem>>, vector<1x188x1xf32>
    %9 = vector.shape_cast %8 : vector<1x188x1xf32> to vector<188x1xf32>
    %c1_6 = arith.constant 1 : index
    %c0_7 = arith.constant 0 : index
    %10 = vector.load %arg2[%c1_6, %c0_7] : memref<9x16xf32, #tpu.memory_space<vmem>>, vector<1x16xf32>
    %11 = vector.broadcast %9 : vector<188x1xf32> to vector<188x16xf32>
    %12 = vector.broadcast %10 : vector<1x16xf32> to vector<188x16xf32>
    %13 = arith.mulf %11, %12 : vector<188x16xf32>
    %14 = arith.addf %7, %13 : vector<188x16xf32>
    %c0_8 = arith.constant 0 : index
    %c2 = arith.constant 2 : index
    %c0_9 = arith.constant 0 : index
    %15 = vector.load %arg1[%c0_8, %c2, %c0_9] : memref<1x256x1xf32, #tpu.memory_space<vmem>>, vector<1x188x1xf32>
    %16 = vector.shape_cast %15 : vector<1x188x1xf32> to vector<188x1xf32>
    %c2_10 = arith.constant 2 : index
    %c0_11 = arith.constant 0 : index
    %17 = vector.load %arg2[%c2_10, %c0_11] : memref<9x16xf32, #tpu.memory_space<vmem>>, vector<1x16xf32>
    %18 = vector.broadcast %16 : vector<188x1xf32> to vector<188x16xf32>
    %19 = vector.broadcast %17 : vector<1x16xf32> to vector<188x16xf32>
    %20 = arith.mulf %18, %19 : vector<188x16xf32>
    %21 = arith.addf %14, %20 : vector<188x16xf32>
    %c0_12 = arith.constant 0 : index
    %c16 = arith.constant 16 : index
    %c0_13 = arith.constant 0 : index
    %22 = vector.load %arg1[%c0_12, %c16, %c0_13] : memref<1x256x1xf32, #tpu.memory_space<vmem>>, vector<1x188x1xf32>
    %23 = vector.shape_cast %22 : vector<1x188x1xf32> to vector<188x1xf32>
    %c3 = arith.constant 3 : index
    %c0_14 = arith.constant 0 : index
    %24 = vector.load %arg2[%c3, %c0_14] : memref<9x16xf32, #tpu.memory_space<vmem>>, vector<1x16xf32>
    %25 = vector.broadcast %23 : vector<188x1xf32> to vector<188x16xf32>
    %26 = vector.broadcast %24 : vector<1x16xf32> to vector<188x16xf32>
    %27 = arith.mulf %25, %26 : vector<188x16xf32>
    %28 = arith.addf %21, %27 : vector<188x16xf32>
    %c0_15 = arith.constant 0 : index
    %c17 = arith.constant 17 : index
    %c0_16 = arith.constant 0 : index
    %29 = vector.load %arg1[%c0_15, %c17, %c0_16] : memref<1x256x1xf32, #tpu.memory_space<vmem>>, vector<1x188x1xf32>
    %30 = vector.shape_cast %29 : vector<1x188x1xf32> to vector<188x1xf32>
    %c4 = arith.constant 4 : index
    %c0_17 = arith.constant 0 : index
    %31 = vector.load %arg2[%c4, %c0_17] : memref<9x16xf32, #tpu.memory_space<vmem>>, vector<1x16xf32>
    %32 = vector.broadcast %30 : vector<188x1xf32> to vector<188x16xf32>
    %33 = vector.broadcast %31 : vector<1x16xf32> to vector<188x16xf32>
    %34 = arith.mulf %32, %33 : vector<188x16xf32>
    %35 = arith.addf %28, %34 : vector<188x16xf32>
    %c0_18 = arith.constant 0 : index
    %c18 = arith.constant 18 : index
    %c0_19 = arith.constant 0 : index
    %36 = vector.load %arg1[%c0_18, %c18, %c0_19] : memref<1x256x1xf32, #tpu.memory_space<vmem>>, vector<1x188x1xf32>
    %37 = vector.shape_cast %36 : vector<1x188x1xf32> to vector<188x1xf32>
    %c5 = arith.constant 5 : index
    %c0_20 = arith.constant 0 : index
    %38 = vector.load %arg2[%c5, %c0_20] : memref<9x16xf32, #tpu.memory_space<vmem>>, vector<1x16xf32>
    %39 = vector.broadcast %37 : vector<188x1xf32> to vector<188x16xf32>
    %40 = vector.broadcast %38 : vector<1x16xf32> to vector<188x16xf32>
    %41 = arith.mulf %39, %40 : vector<188x16xf32>
    %42 = arith.addf %35, %41 : vector<188x16xf32>
    %c0_21 = arith.constant 0 : index
    %c32 = arith.constant 32 : index
    %c0_22 = arith.constant 0 : index
    %43 = vector.load %arg1[%c0_21, %c32, %c0_22] : memref<1x256x1xf32, #tpu.memory_space<vmem>>, vector<1x188x1xf32>
    %44 = vector.shape_cast %43 : vector<1x188x1xf32> to vector<188x1xf32>
    %c6 = arith.constant 6 : index
    %c0_23 = arith.constant 0 : index
    %45 = vector.load %arg2[%c6, %c0_23] : memref<9x16xf32, #tpu.memory_space<vmem>>, vector<1x16xf32>
    %46 = vector.broadcast %44 : vector<188x1xf32> to vector<188x16xf32>
    %47 = vector.broadcast %45 : vector<1x16xf32> to vector<188x16xf32>
    %48 = arith.mulf %46, %47 : vector<188x16xf32>
    %49 = arith.addf %42, %48 : vector<188x16xf32>
    %c0_24 = arith.constant 0 : index
    %c33 = arith.constant 33 : index
    %c0_25 = arith.constant 0 : index
    %50 = vector.load %arg1[%c0_24, %c33, %c0_25] : memref<1x256x1xf32, #tpu.memory_space<vmem>>, vector<1x188x1xf32>
    %51 = vector.shape_cast %50 : vector<1x188x1xf32> to vector<188x1xf32>
    %c7 = arith.constant 7 : index
    %c0_26 = arith.constant 0 : index
    %52 = vector.load %arg2[%c7, %c0_26] : memref<9x16xf32, #tpu.memory_space<vmem>>, vector<1x16xf32>
    %53 = vector.broadcast %51 : vector<188x1xf32> to vector<188x16xf32>
    %54 = vector.broadcast %52 : vector<1x16xf32> to vector<188x16xf32>
    %55 = arith.mulf %53, %54 : vector<188x16xf32>
    %56 = arith.addf %49, %55 : vector<188x16xf32>
    %c0_27 = arith.constant 0 : index
    %c34 = arith.constant 34 : index
    %c0_28 = arith.constant 0 : index
    %57 = vector.load %arg1[%c0_27, %c34, %c0_28] : memref<1x256x1xf32, #tpu.memory_space<vmem>>, vector<1x188x1xf32>
    %58 = vector.shape_cast %57 : vector<1x188x1xf32> to vector<188x1xf32>
    %c8 = arith.constant 8 : index
    %c0_29 = arith.constant 0 : index
    %59 = vector.load %arg2[%c8, %c0_29] : memref<9x16xf32, #tpu.memory_space<vmem>>, vector<1x16xf32>
    %60 = vector.broadcast %58 : vector<188x1xf32> to vector<188x16xf32>
    %61 = vector.broadcast %59 : vector<1x16xf32> to vector<188x16xf32>
    %62 = arith.mulf %60, %61 : vector<188x16xf32>
    %63 = arith.addf %56, %62 : vector<188x16xf32>
    %c0_30 = arith.constant 0 : index
    %c0_31 = arith.constant 0 : index
    %64 = vector.load %arg3[%c0_30, %c0_31] : memref<1x16xf32, #tpu.memory_space<vmem>>, vector<1x16xf32>
    %65 = vector.broadcast %64 : vector<1x16xf32> to vector<188x16xf32>
    %66 = arith.addf %63, %65 : vector<188x16xf32>
    %cst_32 = arith.constant 0.000000e+00 : f32
    %67 = vector.broadcast %cst_32 : f32 to vector<188x16xf32>
    %68 = arith.maximumf %66, %67 : vector<188x16xf32>
    %c0_33 = arith.constant 0 : index
    %c0_34 = arith.constant 0 : index
    %69 = vector.load %arg11[%c0_33, %c0_34] : memref<188x16xf32, #tpu.memory_space<vmem>>, vector<188x16xf32>
    tpu.vector_store %arg11[%c0_33, %c0_34], %68 {strides = array<i32>} : memref<188x16xf32, #tpu.memory_space<vmem>>, vector<188x16xf32>,
    %c0_35 = arith.constant 0 : index
    %c0_36 = arith.constant 0 : index
    %70 = vector.load %arg11[%c0_35, %c0_36] : memref<188x16xf32, #tpu.memory_space<vmem>>, vector<186x16xf32>
    %c1_37 = arith.constant 1 : index
    %c0_38 = arith.constant 0 : index
    %71 = vector.load %arg11[%c1_37, %c0_38] : memref<188x16xf32, #tpu.memory_space<vmem>>, vector<186x16xf32>
    %72 = arith.maximumf %70, %71 : vector<186x16xf32>
    %c2_39 = arith.constant 2 : index
    %c0_40 = arith.constant 0 : index
    %73 = vector.load %arg11[%c2_39, %c0_40] : memref<188x16xf32, #tpu.memory_space<vmem>>, vector<186x16xf32>
    %74 = arith.maximumf %72, %73 : vector<186x16xf32>
    %c0_41 = arith.constant 0 : index
    %c0_42 = arith.constant 0 : index
    %75 = vector.load %arg12[%c0_41, %c0_42] : memref<186x16xf32, #tpu.memory_space<vmem>>, vector<186x16xf32>
    tpu.vector_store %arg12[%c0_41, %c0_42], %74 {strides = array<i32>} : memref<186x16xf32, #tpu.memory_space<vmem>>, vector<186x16xf32>,
    %c0_43 = arith.constant 0 : index
    %c0_44 = arith.constant 0 : index
    %76 = vector.load %arg12[%c0_43, %c0_44] : memref<186x16xf32, #tpu.memory_space<vmem>>, vector<154x16xf32>
    %c16_45 = arith.constant 16 : index
    %c0_46 = arith.constant 0 : index
    %77 = vector.load %arg12[%c16_45, %c0_46] : memref<186x16xf32, #tpu.memory_space<vmem>>, vector<154x16xf32>
    %78 = arith.maximumf %76, %77 : vector<154x16xf32>
    %c32_47 = arith.constant 32 : index
    %c0_48 = arith.constant 0 : index
    %79 = vector.load %arg12[%c32_47, %c0_48] : memref<186x16xf32, #tpu.memory_space<vmem>>, vector<154x16xf32>
    %80 = arith.maximumf %78, %79 : vector<154x16xf32>
    %c0_49 = arith.constant 0 : index
    %c0_50 = arith.constant 0 : index
    %81 = vector.load %arg13[%c0_49, %c0_50] : memref<154x16xf32, #tpu.memory_space<vmem>>, vector<154x16xf32>
    tpu.vector_store %arg13[%c0_49, %c0_50], %80 {strides = array<i32>} : memref<154x16xf32, #tpu.memory_space<vmem>>, vector<154x16xf32>,
    %cst_51 = arith.constant 0.000000e+00 : f32
    %82 = vector.broadcast %cst_51 : f32 to vector<36x16xf32>
    %c0_52 = arith.constant 0 : index
    %c0_53 = arith.constant 0 : index
    %83 = vector.load %arg14[%c0_52, %c0_53] : memref<36x16xf32, #tpu.memory_space<vmem>>, vector<36x16xf32>
    tpu.vector_store %arg14[%c0_52, %c0_53], %82 {strides = array<i32>} : memref<36x16xf32, #tpu.memory_space<vmem>>, vector<36x16xf32>,
    %c0_54 = arith.constant 0 : index
    %c0_55 = arith.constant 0 : index
    %84 = vector.load %arg13[%c0_54, %c0_55] : memref<154x16xf32, #tpu.memory_space<vmem>>, vector<1x16xf32>
    %c7_56 = arith.constant 7 : index
    %c0_57 = arith.constant 0 : index
    %85 = vector.load %arg14[%c7_56, %c0_57] : memref<36x16xf32, #tpu.memory_space<vmem>>, vector<1x16xf32>
    tpu.vector_store %arg14[%c7_56, %c0_57], %84 {strides = array<i32>} : memref<36x16xf32, #tpu.memory_space<vmem>>, vector<1x16xf32>,
    %c3_58 = arith.constant 3 : index
    %c0_59 = arith.constant 0 : index
    %86 = vector.load %arg13[%c3_58, %c0_59] : memref<154x16xf32, #tpu.memory_space<vmem>>, vector<1x16xf32>
    %c8_60 = arith.constant 8 : index
    %c0_61 = arith.constant 0 : index
    %87 = vector.load %arg14[%c8_60, %c0_61] : memref<36x16xf32, #tpu.memory_space<vmem>>, vector<1x16xf32>
    tpu.vector_store %arg14[%c8_60, %c0_61], %86 {strides = array<i32>} : memref<36x16xf32, #tpu.memory_space<vmem>>, vector<1x16xf32>,
    %c6_62 = arith.constant 6 : index
    %c0_63 = arith.constant 0 : index
    %88 = vector.load %arg13[%c6_62, %c0_63] : memref<154x16xf32, #tpu.memory_space<vmem>>, vector<1x16xf32>
    %c9 = arith.constant 9 : index
    %c0_64 = arith.constant 0 : index
    %89 = vector.load %arg14[%c9, %c0_64] : memref<36x16xf32, #tpu.memory_space<vmem>>, vector<1x16xf32>
    tpu.vector_store %arg14[%c9, %c0_64], %88 {strides = array<i32>} : memref<36x16xf32, #tpu.memory_space<vmem>>, vector<1x16xf32>,
    %c9_65 = arith.constant 9 : index
    %c0_66 = arith.constant 0 : index
    %90 = vector.load %arg13[%c9_65, %c0_66] : memref<154x16xf32, #tpu.memory_space<vmem>>, vector<1x16xf32>
    %c10 = arith.constant 10 : index
    %c0_67 = arith.constant 0 : index
    %91 = vector.load %arg14[%c10, %c0_67] : memref<36x16xf32, #tpu.memory_space<vmem>>, vector<1x16xf32>
    tpu.vector_store %arg14[%c10, %c0_67], %90 {strides = array<i32>} : memref<36x16xf32, #tpu.memory_space<vmem>>, vector<1x16xf32>,
    %c48 = arith.constant 48 : index
    %c0_68 = arith.constant 0 : index
    %92 = vector.load %arg13[%c48, %c0_68] : memref<154x16xf32, #tpu.memory_space<vmem>>, vector<1x16xf32>
    %c13 = arith.constant 13 : index
    %c0_69 = arith.constant 0 : index
    %93 = vector.load %arg14[%c13, %c0_69] : memref<36x16xf32, #tpu.memory_space<vmem>>, vector<1x16xf32>
    tpu.vector_store %arg14[%c13, %c0_69], %92 {strides = array<i32>} : memref<36x16xf32, #tpu.memory_space<vmem>>, vector<1x16xf32>,
    %c51 = arith.constant 51 : index
    %c0_70 = arith.constant 0 : index
    %94 = vector.load %arg13[%c51, %c0_70] : memref<154x16xf32, #tpu.memory_space<vmem>>, vector<1x16xf32>
    %c14 = arith.constant 14 : index
    %c0_71 = arith.constant 0 : index
    %95 = vector.load %arg14[%c14, %c0_71] : memref<36x16xf32, #tpu.memory_space<vmem>>, vector<1x16xf32>
    tpu.vector_store %arg14[%c14, %c0_71], %94 {strides = array<i32>} : memref<36x16xf32, #tpu.memory_space<vmem>>, vector<1x16xf32>,
    %c54 = arith.constant 54 : index
    %c0_72 = arith.constant 0 : index
    %96 = vector.load %arg13[%c54, %c0_72] : memref<154x16xf32, #tpu.memory_space<vmem>>, vector<1x16xf32>
    %c15 = arith.constant 15 : index
    %c0_73 = arith.constant 0 : index
    %97 = vector.load %arg14[%c15, %c0_73] : memref<36x16xf32, #tpu.memory_space<vmem>>, vector<1x16xf32>
    tpu.vector_store %arg14[%c15, %c0_73], %96 {strides = array<i32>} : memref<36x16xf32, #tpu.memory_space<vmem>>, vector<1x16xf32>,
    %c57 = arith.constant 57 : index
    %c0_74 = arith.constant 0 : index
    %98 = vector.load %arg13[%c57, %c0_74] : memref<154x16xf32, #tpu.memory_space<vmem>>, vector<1x16xf32>
    %c16_75 = arith.constant 16 : index
    %c0_76 = arith.constant 0 : index
    %99 = vector.load %arg14[%c16_75, %c0_76] : memref<36x16xf32, #tpu.memory_space<vmem>>, vector<1x16xf32>
    tpu.vector_store %arg14[%c16_75, %c0_76], %98 {strides = array<i32>} : memref<36x16xf32, #tpu.memory_space<vmem>>, vector<1x16xf32>,
    %c96 = arith.constant 96 : index
    %c0_77 = arith.constant 0 : index
    %100 = vector.load %arg13[%c96, %c0_77] : memref<154x16xf32, #tpu.memory_space<vmem>>, vector<1x16xf32>
    %c19 = arith.constant 19 : index
    %c0_78 = arith.constant 0 : index
    %101 = vector.load %arg14[%c19, %c0_78] : memref<36x16xf32, #tpu.memory_space<vmem>>, vector<1x16xf32>
    tpu.vector_store %arg14[%c19, %c0_78], %100 {strides = array<i32>} : memref<36x16xf32, #tpu.memory_space<vmem>>, vector<1x16xf32>,
    %c99 = arith.constant 99 : index
    %c0_79 = arith.constant 0 : index
    %102 = vector.load %arg13[%c99, %c0_79] : memref<154x16xf32, #tpu.memory_space<vmem>>, vector<1x16xf32>
    %c20 = arith.constant 20 : index
    %c0_80 = arith.constant 0 : index
    %103 = vector.load %arg14[%c20, %c0_80] : memref<36x16xf32, #tpu.memory_space<vmem>>, vector<1x16xf32>
    tpu.vector_store %arg14[%c20, %c0_80], %102 {strides = array<i32>} : memref<36x16xf32, #tpu.memory_space<vmem>>, vector<1x16xf32>,
    %c102 = arith.constant 102 : index
    %c0_81 = arith.constant 0 : index
    %104 = vector.load %arg13[%c102, %c0_81] : memref<154x16xf32, #tpu.memory_space<vmem>>, vector<1x16xf32>
    %c21 = arith.constant 21 : index
    %c0_82 = arith.constant 0 : index
    %105 = vector.load %arg14[%c21, %c0_82] : memref<36x16xf32, #tpu.memory_space<vmem>>, vector<1x16xf32>
    tpu.vector_store %arg14[%c21, %c0_82], %104 {strides = array<i32>} : memref<36x16xf32, #tpu.memory_space<vmem>>, vector<1x16xf32>,
    %c105 = arith.constant 105 : index
    %c0_83 = arith.constant 0 : index
    %106 = vector.load %arg13[%c105, %c0_83] : memref<154x16xf32, #tpu.memory_space<vmem>>, vector<1x16xf32>
    %c22 = arith.constant 22 : index
    %c0_84 = arith.constant 0 : index
    %107 = vector.load %arg14[%c22, %c0_84] : memref<36x16xf32, #tpu.memory_space<vmem>>, vector<1x16xf32>
    tpu.vector_store %arg14[%c22, %c0_84], %106 {strides = array<i32>} : memref<36x16xf32, #tpu.memory_space<vmem>>, vector<1x16xf32>,
    %c144 = arith.constant 144 : index
    %c0_85 = arith.constant 0 : index
    %108 = vector.load %arg13[%c144, %c0_85] : memref<154x16xf32, #tpu.memory_space<vmem>>, vector<1x16xf32>
    %c25 = arith.constant 25 : index
    %c0_86 = arith.constant 0 : index
    %109 = vector.load %arg14[%c25, %c0_86] : memref<36x16xf32, #tpu.memory_space<vmem>>, vector<1x16xf32>
    tpu.vector_store %arg14[%c25, %c0_86], %108 {strides = array<i32>} : memref<36x16xf32, #tpu.memory_space<vmem>>, vector<1x16xf32>,
    %c147 = arith.constant 147 : index
    %c0_87 = arith.constant 0 : index
    %110 = vector.load %arg13[%c147, %c0_87] : memref<154x16xf32, #tpu.memory_space<vmem>>, vector<1x16xf32>
    %c26 = arith.constant 26 : index
    %c0_88 = arith.constant 0 : index
    %111 = vector.load %arg14[%c26, %c0_88] : memref<36x16xf32, #tpu.memory_space<vmem>>, vector<1x16xf32>
    tpu.vector_store %arg14[%c26, %c0_88], %110 {strides = array<i32>} : memref<36x16xf32, #tpu.memory_space<vmem>>, vector<1x16xf32>,
    %c150 = arith.constant 150 : index
    %c0_89 = arith.constant 0 : index
    %112 = vector.load %arg13[%c150, %c0_89] : memref<154x16xf32, #tpu.memory_space<vmem>>, vector<1x16xf32>
    %c27 = arith.constant 27 : index
    %c0_90 = arith.constant 0 : index
    %113 = vector.load %arg14[%c27, %c0_90] : memref<36x16xf32, #tpu.memory_space<vmem>>, vector<1x16xf32>
    tpu.vector_store %arg14[%c27, %c0_90], %112 {strides = array<i32>} : memref<36x16xf32, #tpu.memory_space<vmem>>, vector<1x16xf32>,
    %c153 = arith.constant 153 : index
    %c0_91 = arith.constant 0 : index
    %114 = vector.load %arg13[%c153, %c0_91] : memref<154x16xf32, #tpu.memory_space<vmem>>, vector<1x16xf32>
    %c28 = arith.constant 28 : index
    %c0_92 = arith.constant 0 : index
    %115 = vector.load %arg14[%c28, %c0_92] : memref<36x16xf32, #tpu.memory_space<vmem>>, vector<1x16xf32>
    tpu.vector_store %arg14[%c28, %c0_92], %114 {strides = array<i32>} : memref<36x16xf32, #tpu.memory_space<vmem>>, vector<1x16xf32>,
    %cst_93 = arith.constant 0.000000e+00 : f32
    %116 = vector.broadcast %cst_93 : f32 to vector<22x32xf32>
    %c0_94 = arith.constant 0 : index
    %c0_95 = arith.constant 0 : index
    %117 = vector.load %arg14[%c0_94, %c0_95] : memref<36x16xf32, #tpu.memory_space<vmem>>, vector<22x16xf32>
    %c0_96 = arith.constant 0 : index
    %c0_97 = arith.constant 0 : index
    %c0_98 = arith.constant 0 : index
    %118 = vector.load %arg4[%c0_96, %c0_97, %c0_98] : memref<9x16x32xf32, #tpu.memory_space<vmem>>, vector<1x16x32xf32>
    %119 = vector.shape_cast %118 : vector<1x16x32xf32> to vector<16x32xf32>
    %cst_99 = arith.constant dense<0.000000e+00> : vector<22x32xf32>
    %120 = tpu.matmul %117, %119, %cst_99 {dimension_numbers = #tpu.dot_dimension_numbers<[1], [0], [0], [1], [0, 0, 1, 1], [], []>} : vector<22x16xf32>, vector<16x32xf32>, vector<22x32xf32> -> vector<22x32xf32>
    %121 = arith.addf %116, %120 : vector<22x32xf32>
    %c1_100 = arith.constant 1 : index
    %c0_101 = arith.constant 0 : index
    %122 = vector.load %arg14[%c1_100, %c0_101] : memref<36x16xf32, #tpu.memory_space<vmem>>, vector<22x16xf32>
    %c1_102 = arith.constant 1 : index
    %c0_103 = arith.constant 0 : index
    %c0_104 = arith.constant 0 : index
    %123 = vector.load %arg4[%c1_102, %c0_103, %c0_104] : memref<9x16x32xf32, #tpu.memory_space<vmem>>, vector<1x16x32xf32>
    %124 = vector.shape_cast %123 : vector<1x16x32xf32> to vector<16x32xf32>
    %cst_105 = arith.constant dense<0.000000e+00> : vector<22x32xf32>
    %125 = tpu.matmul %122, %124, %cst_105 {dimension_numbers = #tpu.dot_dimension_numbers<[1], [0], [0], [1], [0, 0, 1, 1], [], []>} : vector<22x16xf32>, vector<16x32xf32>, vector<22x32xf32> -> vector<22x32xf32>
    %126 = arith.addf %121, %125 : vector<22x32xf32>
    %c2_106 = arith.constant 2 : index
    %c0_107 = arith.constant 0 : index
    %127 = vector.load %arg14[%c2_106, %c0_107] : memref<36x16xf32, #tpu.memory_space<vmem>>, vector<22x16xf32>
    %c2_108 = arith.constant 2 : index
    %c0_109 = arith.constant 0 : index
    %c0_110 = arith.constant 0 : index
    %128 = vector.load %arg4[%c2_108, %c0_109, %c0_110] : memref<9x16x32xf32, #tpu.memory_space<vmem>>, vector<1x16x32xf32>
    %129 = vector.shape_cast %128 : vector<1x16x32xf32> to vector<16x32xf32>
    %cst_111 = arith.constant dense<0.000000e+00> : vector<22x32xf32>
    %130 = tpu.matmul %127, %129, %cst_111 {dimension_numbers = #tpu.dot_dimension_numbers<[1], [0], [0], [1], [0, 0, 1, 1], [], []>} : vector<22x16xf32>, vector<16x32xf32>, vector<22x32xf32> -> vector<22x32xf32>
    %131 = arith.addf %126, %130 : vector<22x32xf32>
    %c6_112 = arith.constant 6 : index
    %c0_113 = arith.constant 0 : index
    %132 = vector.load %arg14[%c6_112, %c0_113] : memref<36x16xf32, #tpu.memory_space<vmem>>, vector<22x16xf32>
    %c3_114 = arith.constant 3 : index
    %c0_115 = arith.constant 0 : index
    %c0_116 = arith.constant 0 : index
    %133 = vector.load %arg4[%c3_114, %c0_115, %c0_116] : memref<9x16x32xf32, #tpu.memory_space<vmem>>, vector<1x16x32xf32>
    %134 = vector.shape_cast %133 : vector<1x16x32xf32> to vector<16x32xf32>
    %cst_117 = arith.constant dense<0.000000e+00> : vector<22x32xf32>
    %135 = tpu.matmul %132, %134, %cst_117 {dimension_numbers = #tpu.dot_dimension_numbers<[1], [0], [0], [1], [0, 0, 1, 1], [], []>} : vector<22x16xf32>, vector<16x32xf32>, vector<22x32xf32> -> vector<22x32xf32>
    %136 = arith.addf %131, %135 : vector<22x32xf32>
    %c7_118 = arith.constant 7 : index
    %c0_119 = arith.constant 0 : index
    %137 = vector.load %arg14[%c7_118, %c0_119] : memref<36x16xf32, #tpu.memory_space<vmem>>, vector<22x16xf32>
    %c4_120 = arith.constant 4 : index
    %c0_121 = arith.constant 0 : index
    %c0_122 = arith.constant 0 : index
    %138 = vector.load %arg4[%c4_120, %c0_121, %c0_122] : memref<9x16x32xf32, #tpu.memory_space<vmem>>, vector<1x16x32xf32>
    %139 = vector.shape_cast %138 : vector<1x16x32xf32> to vector<16x32xf32>
    %cst_123 = arith.constant dense<0.000000e+00> : vector<22x32xf32>
    %140 = tpu.matmul %137, %139, %cst_123 {dimension_numbers = #tpu.dot_dimension_numbers<[1], [0], [0], [1], [0, 0, 1, 1], [], []>} : vector<22x16xf32>, vector<16x32xf32>, vector<22x32xf32> -> vector<22x32xf32>
    %141 = arith.addf %136, %140 : vector<22x32xf32>
    %c8_124 = arith.constant 8 : index
    %c0_125 = arith.constant 0 : index
    %142 = vector.load %arg14[%c8_124, %c0_125] : memref<36x16xf32, #tpu.memory_space<vmem>>, vector<22x16xf32>
    %c5_126 = arith.constant 5 : index
    %c0_127 = arith.constant 0 : index
    %c0_128 = arith.constant 0 : index
    %143 = vector.load %arg4[%c5_126, %c0_127, %c0_128] : memref<9x16x32xf32, #tpu.memory_space<vmem>>, vector<1x16x32xf32>
    %144 = vector.shape_cast %143 : vector<1x16x32xf32> to vector<16x32xf32>
    %cst_129 = arith.constant dense<0.000000e+00> : vector<22x32xf32>
    %145 = tpu.matmul %142, %144, %cst_129 {dimension_numbers = #tpu.dot_dimension_numbers<[1], [0], [0], [1], [0, 0, 1, 1], [], []>} : vector<22x16xf32>, vector<16x32xf32>, vector<22x32xf32> -> vector<22x32xf32>
    %146 = arith.addf %141, %145 : vector<22x32xf32>
    %c12 = arith.constant 12 : index
    %c0_130 = arith.constant 0 : index
    %147 = vector.load %arg14[%c12, %c0_130] : memref<36x16xf32, #tpu.memory_space<vmem>>, vector<22x16xf32>
    %c6_131 = arith.constant 6 : index
    %c0_132 = arith.constant 0 : index
    %c0_133 = arith.constant 0 : index
    %148 = vector.load %arg4[%c6_131, %c0_132, %c0_133] : memref<9x16x32xf32, #tpu.memory_space<vmem>>, vector<1x16x32xf32>
    %149 = vector.shape_cast %148 : vector<1x16x32xf32> to vector<16x32xf32>
    %cst_134 = arith.constant dense<0.000000e+00> : vector<22x32xf32>
    %150 = tpu.matmul %147, %149, %cst_134 {dimension_numbers = #tpu.dot_dimension_numbers<[1], [0], [0], [1], [0, 0, 1, 1], [], []>} : vector<22x16xf32>, vector<16x32xf32>, vector<22x32xf32> -> vector<22x32xf32>
    %151 = arith.addf %146, %150 : vector<22x32xf32>
    %c13_135 = arith.constant 13 : index
    %c0_136 = arith.constant 0 : index
    %152 = vector.load %arg14[%c13_135, %c0_136] : memref<36x16xf32, #tpu.memory_space<vmem>>, vector<22x16xf32>
    %c7_137 = arith.constant 7 : index
    %c0_138 = arith.constant 0 : index
    %c0_139 = arith.constant 0 : index
    %153 = vector.load %arg4[%c7_137, %c0_138, %c0_139] : memref<9x16x32xf32, #tpu.memory_space<vmem>>, vector<1x16x32xf32>
    %154 = vector.shape_cast %153 : vector<1x16x32xf32> to vector<16x32xf32>
    %cst_140 = arith.constant dense<0.000000e+00> : vector<22x32xf32>
    %155 = tpu.matmul %152, %154, %cst_140 {dimension_numbers = #tpu.dot_dimension_numbers<[1], [0], [0], [1], [0, 0, 1, 1], [], []>} : vector<22x16xf32>, vector<16x32xf32>, vector<22x32xf32> -> vector<22x32xf32>
    %156 = arith.addf %151, %155 : vector<22x32xf32>
    %c14_141 = arith.constant 14 : index
    %c0_142 = arith.constant 0 : index
    %157 = vector.load %arg14[%c14_141, %c0_142] : memref<36x16xf32, #tpu.memory_space<vmem>>, vector<22x16xf32>
    %c8_143 = arith.constant 8 : index
    %c0_144 = arith.constant 0 : index
    %c0_145 = arith.constant 0 : index
    %158 = vector.load %arg4[%c8_143, %c0_144, %c0_145] : memref<9x16x32xf32, #tpu.memory_space<vmem>>, vector<1x16x32xf32>
    %159 = vector.shape_cast %158 : vector<1x16x32xf32> to vector<16x32xf32>
    %cst_146 = arith.constant dense<0.000000e+00> : vector<22x32xf32>
    %160 = tpu.matmul %157, %159, %cst_146 {dimension_numbers = #tpu.dot_dimension_numbers<[1], [0], [0], [1], [0, 0, 1, 1], [], []>} : vector<22x16xf32>, vector<16x32xf32>, vector<22x32xf32> -> vector<22x32xf32>
    %161 = arith.addf %156, %160 : vector<22x32xf32>
    %c0_147 = arith.constant 0 : index
    %c0_148 = arith.constant 0 : index
    %162 = vector.load %arg5[%c0_147, %c0_148] : memref<1x32xf32, #tpu.memory_space<vmem>>, vector<1x32xf32>
    %163 = vector.broadcast %162 : vector<1x32xf32> to vector<22x32xf32>
    %164 = arith.addf %161, %163 : vector<22x32xf32>
    %cst_149 = arith.constant 0.000000e+00 : f32
    %165 = vector.broadcast %cst_149 : f32 to vector<22x32xf32>
    %166 = arith.maximumf %164, %165 : vector<22x32xf32>
    %c0_150 = arith.constant 0 : index
    %c0_151 = arith.constant 0 : index
    %167 = vector.load %arg6[%c0_150, %c0_151] : memref<1x32xf32, #tpu.memory_space<vmem>>, vector<1x32xf32>
    %168 = vector.broadcast %167 : vector<1x32xf32> to vector<22x32xf32>
    %169 = arith.mulf %166, %168 : vector<22x32xf32>
    %c0_152 = arith.constant 0 : index
    %c0_153 = arith.constant 0 : index
    %170 = vector.load %arg7[%c0_152, %c0_153] : memref<1x32xf32, #tpu.memory_space<vmem>>, vector<1x32xf32>
    %171 = vector.broadcast %170 : vector<1x32xf32> to vector<22x32xf32>
    %172 = arith.addf %169, %171 : vector<22x32xf32>
    %cst_154 = arith.constant 0.000000e+00 : f32
    %173 = vector.broadcast %cst_154 : f32 to vector<36x32xf32>
    %c0_155 = arith.constant 0 : index
    %c0_156 = arith.constant 0 : index
    %174 = vector.load %arg15[%c0_155, %c0_156] : memref<36x32xf32, #tpu.memory_space<vmem>>, vector<36x32xf32>
    tpu.vector_store %arg15[%c0_155, %c0_156], %173 {strides = array<i32>} : memref<36x32xf32, #tpu.memory_space<vmem>>, vector<36x32xf32>,
    %175 = vector.extract_strided_slice %172 {offsets = [0, 0], sizes = [4, 32], strides = [1, 1]} : vector<22x32xf32> to vector<4x32xf32>
    %c7_157 = arith.constant 7 : index
    %c0_158 = arith.constant 0 : index
    %176 = vector.load %arg15[%c7_157, %c0_158] : memref<36x32xf32, #tpu.memory_space<vmem>>, vector<4x32xf32>
    tpu.vector_store %arg15[%c7_157, %c0_158], %175 {strides = array<i32>} : memref<36x32xf32, #tpu.memory_space<vmem>>, vector<4x32xf32>,
    %177 = vector.extract_strided_slice %172 {offsets = [6, 0], sizes = [4, 32], strides = [1, 1]} : vector<22x32xf32> to vector<4x32xf32>
    %c13_159 = arith.constant 13 : index
    %c0_160 = arith.constant 0 : index
    %178 = vector.load %arg15[%c13_159, %c0_160] : memref<36x32xf32, #tpu.memory_space<vmem>>, vector<4x32xf32>
    tpu.vector_store %arg15[%c13_159, %c0_160], %177 {strides = array<i32>} : memref<36x32xf32, #tpu.memory_space<vmem>>, vector<4x32xf32>,
    %179 = vector.extract_strided_slice %172 {offsets = [12, 0], sizes = [4, 32], strides = [1, 1]} : vector<22x32xf32> to vector<4x32xf32>
    %c19_161 = arith.constant 19 : index
    %c0_162 = arith.constant 0 : index
    %180 = vector.load %arg15[%c19_161, %c0_162] : memref<36x32xf32, #tpu.memory_space<vmem>>, vector<4x32xf32>
    tpu.vector_store %arg15[%c19_161, %c0_162], %179 {strides = array<i32>} : memref<36x32xf32, #tpu.memory_space<vmem>>, vector<4x32xf32>,
    %181 = vector.extract_strided_slice %172 {offsets = [18, 0], sizes = [4, 32], strides = [1, 1]} : vector<22x32xf32> to vector<4x32xf32>
    %c25_163 = arith.constant 25 : index
    %c0_164 = arith.constant 0 : index
    %182 = vector.load %arg15[%c25_163, %c0_164] : memref<36x32xf32, #tpu.memory_space<vmem>>, vector<4x32xf32>
    tpu.vector_store %arg15[%c25_163, %c0_164], %181 {strides = array<i32>} : memref<36x32xf32, #tpu.memory_space<vmem>>, vector<4x32xf32>,
    %cst_165 = arith.constant 0.000000e+00 : f32
    %183 = vector.broadcast %cst_165 : f32 to vector<22x24xf32>
    %c0_166 = arith.constant 0 : index
    %c0_167 = arith.constant 0 : index
    %184 = vector.load %arg15[%c0_166, %c0_167] : memref<36x32xf32, #tpu.memory_space<vmem>>, vector<22x32xf32>
    %c0_168 = arith.constant 0 : index
    %c0_169 = arith.constant 0 : index
    %c0_170 = arith.constant 0 : index
    %185 = vector.load %arg8[%c0_168, %c0_169, %c0_170] : memref<9x32x24xf32, #tpu.memory_space<vmem>>, vector<1x32x24xf32>
    %186 = vector.shape_cast %185 : vector<1x32x24xf32> to vector<32x24xf32>
    %cst_171 = arith.constant dense<0.000000e+00> : vector<22x24xf32>
    %187 = tpu.matmul %184, %186, %cst_171 {dimension_numbers = #tpu.dot_dimension_numbers<[1], [0], [0], [1], [0, 0, 1, 1], [], []>} : vector<22x32xf32>, vector<32x24xf32>, vector<22x24xf32> -> vector<22x24xf32>
    %188 = arith.addf %183, %187 : vector<22x24xf32>
    %c1_172 = arith.constant 1 : index
    %c0_173 = arith.constant 0 : index
    %189 = vector.load %arg15[%c1_172, %c0_173] : memref<36x32xf32, #tpu.memory_space<vmem>>, vector<22x32xf32>
    %c1_174 = arith.constant 1 : index
    %c0_175 = arith.constant 0 : index
    %c0_176 = arith.constant 0 : index
    %190 = vector.load %arg8[%c1_174, %c0_175, %c0_176] : memref<9x32x24xf32, #tpu.memory_space<vmem>>, vector<1x32x24xf32>
    %191 = vector.shape_cast %190 : vector<1x32x24xf32> to vector<32x24xf32>
    %cst_177 = arith.constant dense<0.000000e+00> : vector<22x24xf32>
    %192 = tpu.matmul %189, %191, %cst_177 {dimension_numbers = #tpu.dot_dimension_numbers<[1], [0], [0], [1], [0, 0, 1, 1], [], []>} : vector<22x32xf32>, vector<32x24xf32>, vector<22x24xf32> -> vector<22x24xf32>
    %193 = arith.addf %188, %192 : vector<22x24xf32>
    %c2_178 = arith.constant 2 : index
    %c0_179 = arith.constant 0 : index
    %194 = vector.load %arg15[%c2_178, %c0_179] : memref<36x32xf32, #tpu.memory_space<vmem>>, vector<22x32xf32>
    %c2_180 = arith.constant 2 : index
    %c0_181 = arith.constant 0 : index
    %c0_182 = arith.constant 0 : index
    %195 = vector.load %arg8[%c2_180, %c0_181, %c0_182] : memref<9x32x24xf32, #tpu.memory_space<vmem>>, vector<1x32x24xf32>
    %196 = vector.shape_cast %195 : vector<1x32x24xf32> to vector<32x24xf32>
    %cst_183 = arith.constant dense<0.000000e+00> : vector<22x24xf32>
    %197 = tpu.matmul %194, %196, %cst_183 {dimension_numbers = #tpu.dot_dimension_numbers<[1], [0], [0], [1], [0, 0, 1, 1], [], []>} : vector<22x32xf32>, vector<32x24xf32>, vector<22x24xf32> -> vector<22x24xf32>
    %198 = arith.addf %193, %197 : vector<22x24xf32>
    %c6_184 = arith.constant 6 : index
    %c0_185 = arith.constant 0 : index
    %199 = vector.load %arg15[%c6_184, %c0_185] : memref<36x32xf32, #tpu.memory_space<vmem>>, vector<22x32xf32>
    %c3_186 = arith.constant 3 : index
    %c0_187 = arith.constant 0 : index
    %c0_188 = arith.constant 0 : index
    %200 = vector.load %arg8[%c3_186, %c0_187, %c0_188] : memref<9x32x24xf32, #tpu.memory_space<vmem>>, vector<1x32x24xf32>
    %201 = vector.shape_cast %200 : vector<1x32x24xf32> to vector<32x24xf32>
    %cst_189 = arith.constant dense<0.000000e+00> : vector<22x24xf32>
    %202 = tpu.matmul %199, %201, %cst_189 {dimension_numbers = #tpu.dot_dimension_numbers<[1], [0], [0], [1], [0, 0, 1, 1], [], []>} : vector<22x32xf32>, vector<32x24xf32>, vector<22x24xf32> -> vector<22x24xf32>
    %203 = arith.addf %198, %202 : vector<22x24xf32>
    %c7_190 = arith.constant 7 : index
    %c0_191 = arith.constant 0 : index
    %204 = vector.load %arg15[%c7_190, %c0_191] : memref<36x32xf32, #tpu.memory_space<vmem>>, vector<22x32xf32>
    %c4_192 = arith.constant 4 : index
    %c0_193 = arith.constant 0 : index
    %c0_194 = arith.constant 0 : index
    %205 = vector.load %arg8[%c4_192, %c0_193, %c0_194] : memref<9x32x24xf32, #tpu.memory_space<vmem>>, vector<1x32x24xf32>
    %206 = vector.shape_cast %205 : vector<1x32x24xf32> to vector<32x24xf32>
    %cst_195 = arith.constant dense<0.000000e+00> : vector<22x24xf32>
    %207 = tpu.matmul %204, %206, %cst_195 {dimension_numbers = #tpu.dot_dimension_numbers<[1], [0], [0], [1], [0, 0, 1, 1], [], []>} : vector<22x32xf32>, vector<32x24xf32>, vector<22x24xf32> -> vector<22x24xf32>
    %208 = arith.addf %203, %207 : vector<22x24xf32>
    %c8_196 = arith.constant 8 : index
    %c0_197 = arith.constant 0 : index
    %209 = vector.load %arg15[%c8_196, %c0_197] : memref<36x32xf32, #tpu.memory_space<vmem>>, vector<22x32xf32>
    %c5_198 = arith.constant 5 : index
    %c0_199 = arith.constant 0 : index
    %c0_200 = arith.constant 0 : index
    %210 = vector.load %arg8[%c5_198, %c0_199, %c0_200] : memref<9x32x24xf32, #tpu.memory_space<vmem>>, vector<1x32x24xf32>
    %211 = vector.shape_cast %210 : vector<1x32x24xf32> to vector<32x24xf32>
    %cst_201 = arith.constant dense<0.000000e+00> : vector<22x24xf32>
    %212 = tpu.matmul %209, %211, %cst_201 {dimension_numbers = #tpu.dot_dimension_numbers<[1], [0], [0], [1], [0, 0, 1, 1], [], []>} : vector<22x32xf32>, vector<32x24xf32>, vector<22x24xf32> -> vector<22x24xf32>
    %213 = arith.addf %208, %212 : vector<22x24xf32>
    %c12_202 = arith.constant 12 : index
    %c0_203 = arith.constant 0 : index
    %214 = vector.load %arg15[%c12_202, %c0_203] : memref<36x32xf32, #tpu.memory_space<vmem>>, vector<22x32xf32>
    %c6_204 = arith.constant 6 : index
    %c0_205 = arith.constant 0 : index
    %c0_206 = arith.constant 0 : index
    %215 = vector.load %arg8[%c6_204, %c0_205, %c0_206] : memref<9x32x24xf32, #tpu.memory_space<vmem>>, vector<1x32x24xf32>
    %216 = vector.shape_cast %215 : vector<1x32x24xf32> to vector<32x24xf32>
    %cst_207 = arith.constant dense<0.000000e+00> : vector<22x24xf32>
    %217 = tpu.matmul %214, %216, %cst_207 {dimension_numbers = #tpu.dot_dimension_numbers<[1], [0], [0], [1], [0, 0, 1, 1], [], []>} : vector<22x32xf32>, vector<32x24xf32>, vector<22x24xf32> -> vector<22x24xf32>
    %218 = arith.addf %213, %217 : vector<22x24xf32>
    %c13_208 = arith.constant 13 : index
    %c0_209 = arith.constant 0 : index
    %219 = vector.load %arg15[%c13_208, %c0_209] : memref<36x32xf32, #tpu.memory_space<vmem>>, vector<22x32xf32>
    %c7_210 = arith.constant 7 : index
    %c0_211 = arith.constant 0 : index
    %c0_212 = arith.constant 0 : index
    %220 = vector.load %arg8[%c7_210, %c0_211, %c0_212] : memref<9x32x24xf32, #tpu.memory_space<vmem>>, vector<1x32x24xf32>
    %221 = vector.shape_cast %220 : vector<1x32x24xf32> to vector<32x24xf32>
    %cst_213 = arith.constant dense<0.000000e+00> : vector<22x24xf32>
    %222 = tpu.matmul %219, %221, %cst_213 {dimension_numbers = #tpu.dot_dimension_numbers<[1], [0], [0], [1], [0, 0, 1, 1], [], []>} : vector<22x32xf32>, vector<32x24xf32>, vector<22x24xf32> -> vector<22x24xf32>
    %223 = arith.addf %218, %222 : vector<22x24xf32>
    %c14_214 = arith.constant 14 : index
    %c0_215 = arith.constant 0 : index
    %224 = vector.load %arg15[%c14_214, %c0_215] : memref<36x32xf32, #tpu.memory_space<vmem>>, vector<22x32xf32>
    %c8_216 = arith.constant 8 : index
    %c0_217 = arith.constant 0 : index
    %c0_218 = arith.constant 0 : index
    %225 = vector.load %arg8[%c8_216, %c0_217, %c0_218] : memref<9x32x24xf32, #tpu.memory_space<vmem>>, vector<1x32x24xf32>
    %226 = vector.shape_cast %225 : vector<1x32x24xf32> to vector<32x24xf32>
    %cst_219 = arith.constant dense<0.000000e+00> : vector<22x24xf32>
    %227 = tpu.matmul %224, %226, %cst_219 {dimension_numbers = #tpu.dot_dimension_numbers<[1], [0], [0], [1], [0, 0, 1, 1], [], []>} : vector<22x32xf32>, vector<32x24xf32>, vector<22x24xf32> -> vector<22x24xf32>
    %228 = arith.addf %223, %227 : vector<22x24xf32>
    %c0_220 = arith.constant 0 : index
    %c0_221 = arith.constant 0 : index
    %229 = vector.load %arg9[%c0_220, %c0_221] : memref<1x24xf32, #tpu.memory_space<vmem>>, vector<1x24xf32>
    %230 = vector.broadcast %229 : vector<1x24xf32> to vector<22x24xf32>
    %231 = arith.addf %228, %230 : vector<22x24xf32>
    %cst_222 = arith.constant 0.000000e+00 : f32
    %232 = vector.broadcast %cst_222 : f32 to vector<1x24xf32>
    %233 = vector.extract_strided_slice %231 {offsets = [0, 0], sizes = [4, 24], strides = [1, 1]} : vector<22x24xf32> to vector<4x24xf32>
    %cst_223 = arith.constant dense<0.000000e+00> : vector<24xf32>
    %234 = vector.multi_reduction <add>, %233, %cst_223 [0] : vector<4x24xf32> to vector<24xf32>
    %235 = vector.shape_cast %234 : vector<24xf32> to vector<1x24xf32>
    %236 = arith.addf %232, %235 : vector<1x24xf32>
    %237 = vector.extract_strided_slice %231 {offsets = [6, 0], sizes = [4, 24], strides = [1, 1]} : vector<22x24xf32> to vector<4x24xf32>
    %cst_224 = arith.constant dense<0.000000e+00> : vector<24xf32>
    %238 = vector.multi_reduction <add>, %237, %cst_224 [0] : vector<4x24xf32> to vector<24xf32>
    %239 = vector.shape_cast %238 : vector<24xf32> to vector<1x24xf32>
    %240 = arith.addf %236, %239 : vector<1x24xf32>
    %241 = vector.extract_strided_slice %231 {offsets = [12, 0], sizes = [4, 24], strides = [1, 1]} : vector<22x24xf32> to vector<4x24xf32>
    %cst_225 = arith.constant dense<0.000000e+00> : vector<24xf32>
    %242 = vector.multi_reduction <add>, %241, %cst_225 [0] : vector<4x24xf32> to vector<24xf32>
    %243 = vector.shape_cast %242 : vector<24xf32> to vector<1x24xf32>
    %244 = arith.addf %240, %243 : vector<1x24xf32>
    %245 = vector.extract_strided_slice %231 {offsets = [18, 0], sizes = [4, 24], strides = [1, 1]} : vector<22x24xf32> to vector<4x24xf32>
    %cst_226 = arith.constant dense<0.000000e+00> : vector<24xf32>
    %246 = vector.multi_reduction <add>, %245, %cst_226 [0] : vector<4x24xf32> to vector<24xf32>
    %247 = vector.shape_cast %246 : vector<24xf32> to vector<1x24xf32>
    %248 = arith.addf %244, %247 : vector<1x24xf32>
    %cst_227 = arith.constant 6.250000e-02 : f32
    %249 = vector.broadcast %cst_227 : f32 to vector<1x24xf32>
    %250 = arith.mulf %248, %249 : vector<1x24xf32>
    %cst_228 = arith.constant dense<0xFF800000> : vector<1xf32>
    %251 = vector.multi_reduction <maximumf>, %250, %cst_228 [1] : vector<1x24xf32> to vector<1xf32>
    %252 = vector.shape_cast %251 : vector<1xf32> to vector<1x1xf32>
    %253 = vector.broadcast %252 : vector<1x1xf32> to vector<1x24xf32>
    %254 = arith.subf %250, %253 : vector<1x24xf32>
    %255 = math.exp %254 : vector<1x24xf32>
    %cst_229 = arith.constant dense<0.000000e+00> : vector<1xf32>
    %256 = vector.multi_reduction <add>, %255, %cst_229 [1] : vector<1x24xf32> to vector<1xf32>
    %257 = vector.shape_cast %256 : vector<1xf32> to vector<1x1xf32>
    %258 = vector.broadcast %257 : vector<1x1xf32> to vector<1x24xf32>
    %259 = arith.divf %255, %258 : vector<1x24xf32>
    %c0_230 = arith.constant 0 : index
    %c0_231 = arith.constant 0 : index
    %c0_232 = arith.constant 0 : index
    %260 = vector.load %arg10[%c0_230, %c0_231, %c0_232] : memref<1x1x24xf32, #tpu.memory_space<vmem>>, vector<1x1x24xf32>
    %261 = vector.shape_cast %260 : vector<1x1x24xf32> to vector<1x24xf32>
    %262 = vector.shape_cast %259 : vector<1x24xf32> to vector<1x1x24xf32>
    tpu.vector_store %arg10[%c0_230, %c0_231, %c0_232], %262 {strides = array<i32>} : memref<1x1x24xf32, #tpu.memory_space<vmem>>, vector<1x1x24xf32>,
    return
  }
  func.func @transform_0(%arg0: i32) -> (i32, i32, i32) {
    %c0_i32 = arith.constant 0 : i32
    %c0_i32_0 = arith.constant 0 : i32
    %c0_i32_1 = arith.constant 0 : i32
    return %arg0, %c0_i32, %c0_i32_0 : i32, i32, i32
  }
  func.func @transform_1(%arg0: i32) -> (i32, i32) {
    %c0_i32 = arith.constant 0 : i32
    %c0_i32_0 = arith.constant 0 : i32
    %c0_i32_1 = arith.constant 0 : i32
    return %c0_i32, %c0_i32_0 : i32, i32
  }
  func.func @transform_2(%arg0: i32) -> (i32, i32) {
    %c0_i32 = arith.constant 0 : i32
    %c0_i32_0 = arith.constant 0 : i32
    %c0_i32_1 = arith.constant 0 : i32
    return %c0_i32, %c0_i32_0 : i32, i32
  }
  func.func @transform_3(%arg0: i32) -> (i32, i32, i32) {
    %c0_i32 = arith.constant 0 : i32
    %c0_i32_0 = arith.constant 0 : i32
    %c0_i32_1 = arith.constant 0 : i32
    %c0_i32_2 = arith.constant 0 : i32
    return %c0_i32, %c0_i32_0, %c0_i32_1 : i32, i32, i32
  }
  func.func @transform_4(%arg0: i32) -> (i32, i32) {
    %c0_i32 = arith.constant 0 : i32
    %c0_i32_0 = arith.constant 0 : i32
    %c0_i32_1 = arith.constant 0 : i32
    return %c0_i32, %c0_i32_0 : i32, i32
  }
  func.func @transform_5(%arg0: i32) -> (i32, i32) {
    %c0_i32 = arith.constant 0 : i32
    %c0_i32_0 = arith.constant 0 : i32
    %c0_i32_1 = arith.constant 0 : i32
    return %c0_i32, %c0_i32_0 : i32, i32
  }
  func.func @transform_6(%arg0: i32) -> (i32, i32) {
    %c0_i32 = arith.constant 0 : i32
    %c0_i32_0 = arith.constant 0 : i32
    %c0_i32_1 = arith.constant 0 : i32
    return %c0_i32, %c0_i32_0 : i32, i32
  }
  func.func @transform_7(%arg0: i32) -> (i32, i32, i32) {
    %c0_i32 = arith.constant 0 : i32
    %c0_i32_0 = arith.constant 0 : i32
    %c0_i32_1 = arith.constant 0 : i32
    %c0_i32_2 = arith.constant 0 : i32
    return %c0_i32, %c0_i32_0, %c0_i32_1 : i32, i32, i32
  }
  func.func @transform_8(%arg0: i32) -> (i32, i32) {
    %c0_i32 = arith.constant 0 : i32
    %c0_i32_0 = arith.constant 0 : i32
    %c0_i32_1 = arith.constant 0 : i32
    return %c0_i32, %c0_i32_0 : i32, i32
  }
  func.func @transform_9(%arg0: i32) -> (i32, i32, i32) {
    %c0_i32 = arith.constant 0 : i32
    %c0_i32_0 = arith.constant 0 : i32
    %c0_i32_1 = arith.constant 0 : i32
    return %arg0, %c0_i32, %c0_i32_0 : i32, i32, i32
  }
}

</mosaic_0001>

<llo_original>
// kernel: _lambda_.1
$region0: #{_lambda_.1}
  #allocation0 [shape = 'u32[]', space=smem, size = 0x4, offset = 0x4, fixed_abs, tag = 'smem constant byte address 0x4 - core index']
  #allocation1 [shape = 'u32[144,128]{1,0:T(1,128)}', space=vmem, size = 0x12000, scoped, tag = 'internal scratch']
  #allocation2 [shape = 'f32[188,16]{1,0:T(8,128)}', space=vmem, size = 0x18000, scoped, tag = 'scratch operand']
  #allocation3 [shape = 'f32[186,16]{1,0:T(8,128)}', space=vmem, size = 0x18000, scoped, tag = 'scratch operand']
  #allocation4 [shape = 'f32[154,16]{1,0:T(8,128)}', space=vmem, size = 0x14000, scoped, tag = 'scratch operand']
  #allocation5 [shape = 'f32[36,16]{1,0:T(8,128)}', space=vmem, size = 0x5000, scoped, tag = 'scratch operand']
  #allocation6 [shape = 'f32[36,32]{1,0:T(8,128)}', space=vmem, size = 0x5000, scoped, tag = 'scratch operand']
  %s0 = inlined_call_operand.vmem [shape: f32[2,256,1], index: 0, kind: input, shape index: {}]
  %s1 = inlined_call_operand.vmem [shape: f32[9,16], index: 1, kind: input, shape index: {}]
  %s2 = inlined_call_operand.vmem [shape: f32[1,16], index: 2, kind: input, shape index: {}]
  %s3 = inlined_call_operand.vmem [shape: f32[9,16,32], index: 3, kind: input, shape index: {}]
  %s4 = inlined_call_operand.vmem [shape: f32[1,32], index: 4, kind: input, shape index: {}]
  %s5 = inlined_call_operand.vmem [shape: f32[1,32], index: 5, kind: input, shape index: {}]
  %s6 = inlined_call_operand.vmem [shape: f32[1,32], index: 6, kind: input, shape index: {}]
  %s7 = inlined_call_operand.vmem [shape: f32[9,32,24], index: 7, kind: input, shape index: {}]
  %s8 = inlined_call_operand.vmem [shape: f32[1,24], index: 8, kind: input, shape index: {}]
  %s9 = inlined_call_operand.hbm [shape: f32[2,1,24], index: 9, kind: output, shape index: {}]
  %s10 = sld [smem:[#allocation0]]
  $region69: #{_lambda_.1} parent=0
    _
  %s12 = ssub.s32 1, %s10
  %s13 = scalar_select 0, %s12, %s10
  $region1: #{_lambda_.1} parent=0
    #allocation7 [shape = 'u8[1024]{0}', space=vmem, size = 0x400, scoped, tag = 'output window, operand 0']
    #allocation8 [shape = 's32[2]{0}', space=sflag, size = 0x8, scoped, tag = 'scoped memory for _lambda_.1']
    %14 = vsyncpa [#allocation8], 0
    %s15 = scalar_lea.sflag [#allocation8], 1
    %16 = vsyncpa %s15, 0
    loop: start=0, step=1, limit=4
    $region2: #{_lambda_.1} parent=1 // loop_pre_header
      _
    $region3: #{_lambda_.1} parent=1 // loop_header
      %s18 = sphi 0, %s22
      %p19 = scmp.ge.s32.totalorder %s18, 4
      %s28 = sphi 0, %s30
      %s31 = sphi 0, %s28
      %s32 = sphi 0, %s31
      %s48 = sphi 0, %s32
      %s52 = sphi 0, %s52
      %s54 = sphi 0, %s52
      %s55 = sphi 0, %s54
      %s69 = sphi 0, %s55
      %s73 = sphi 0, %s73
      %s75 = sphi 0, %s73
      %s76 = sphi 0, %s75
      %s90 = sphi 0, %s76
      %s94 = sphi 0, %s94
      %s96 = sphi 0, %s94
      %s97 = sphi 0, %s96
      %s111 = sphi 0, %s97
      %s115 = sphi 0, %s115
      %s117 = sphi 0, %s115
      %s118 = sphi 0, %s117
      %s132 = sphi 0, %s118
      %s136 = sphi 0, %s136
      %s138 = sphi 0, %s136
      %s139 = sphi 0, %s138
      %s153 = sphi 0, %s139
      %s157 = sphi 0, %s157
      %s159 = sphi 0, %s157
      %s160 = sphi 0, %s159
      %s174 = sphi 0, %s160
      %s178 = sphi 0, %s178
      %s180 = sphi 0, %s178
      %s181 = sphi 0, %s180
      %s195 = sphi 0, %s181
      %s199 = sphi 0, %s199
      %s201 = sphi 0, %s199
      %s202 = sphi 0, %s201
      %s216 = sphi 0, %s202
      %s222 = sphi 0, %s224
      %s225 = sphi 0, %s222
      %s226 = sphi 0, %s225
      %s242 = sphi 0, %s226
    $region4: #{_lambda_.1} parent=1 // loop_header_branch
      %21 = sbr.rel (%p19) target = $region8
    $region5: #{_lambda_.1} parent=1 // loop_body
      %s23 = ssub.s32 %s18, 1
      %s24 = ssub.s32 %s18, 2
      %s25 = sadd.s32 %s18, 1
      %s26 = ssub.s32 %s18, %s25
      %p27 = scmp.eq.s32.totalorder %s26, 0
      %s29 = sadd.s32 %s28, 1
      %s30 = scalar_select %p27, %s28, %s29
      %p33 = pneg %p27
      %p34 = scmp.eq.s32.totalorder %s18, 1
      %p35 = por %p33, %p34
      %p36 = scmp.ne.s32.totalorder %s28, %s31
      %p37 = scmp.eq.s32.totalorder %s18, 0
      %p38 = por %p36, %p37
      %p39 = scmp.ne.s32.totalorder %s28, %s31
      %p40 = scmp.eq.s32.totalorder %s23, 1
      %p41 = por %p39, %p40
      %p42 = scmp.ne.s32.totalorder %s31, %s32
      %p43 = scmp.eq.s32.totalorder %s23, 0
      %p44 = por %p42, %p43
      %p45 = scmp.ne.s32.totalorder %s31, %s32
      %p46 = scmp.eq.s32.totalorder %s24, 1
      %p47 = por %p45, %p46
      %p49 = scmp.ne.s32.totalorder %s32, %s48
      %p50 = scmp.eq.s32.totalorder %s24, 0
      %p51 = por %p49, %p50
      %s53 = sadd.s32 %s52, 1
      %p56 = scmp.eq.s32.totalorder %s18, 1
      %p57 = scmp.ne.s32.totalorder %s52, %s54
      %p58 = scmp.eq.s32.totalorder %s18, 0
      %p59 = por %p57, %p58
      %p60 = scmp.ne.s32.totalorder %s52, %s54
      %p61 = scmp.eq.s32.totalorder %s23, 1
      %p62 = por %p60, %p61
      %p63 = scmp.ne.s32.totalorder %s54, %s55
      %p64 = scmp.eq.s32.totalorder %s23, 0
      %p65 = por %p63, %p64
      %p66 = scmp.ne.s32.totalorder %s54, %s55
      %p67 = scmp.eq.s32.totalorder %s24, 1
      %p68 = por %p66, %p67
      %p70 = scmp.ne.s32.totalorder %s55, %s69
      %p71 = scmp.eq.s32.totalorder %s24, 0
      %p72 = por %p70, %p71
      %s74 = sadd.s32 %s73, 1
      %p77 = scmp.eq.s32.totalorder %s18, 1
      %p78 = scmp.ne.s32.totalorder %s73, %s75
      %p79 = scmp.eq.s32.totalorder %s18, 0
      %p80 = por %p78, %p79
      %p81 = scmp.ne.s32.totalorder %s73, %s75
      %p82 = scmp.eq.s32.totalorder %s23, 1
      %p83 = por %p81, %p82
      %p84 = scmp.ne.s32.totalorder %s75, %s76
      %p85 = scmp.eq.s32.totalorder %s23, 0
      %p86 = por %p84, %p85
      %p87 = scmp.ne.s32.totalorder %s75, %s76
      %p88 = scmp.eq.s32.totalorder %s24, 1
      %p89 = por %p87, %p88
      %p91 = scmp.ne.s32.totalorder %s76, %s90
      %p92 = scmp.eq.s32.totalorder %s24, 0
      %p93 = por %p91, %p92
      %s95 = sadd.s32 %s94, 1
      %p98 = scmp.eq.s32.totalorder %s18, 1
      %p99 = scmp.ne.s32.totalorder %s94, %s96
      %p100 = scmp.eq.s32.totalorder %s18, 0
      %p101 = por %p99, %p100
      %p102 = scmp.ne.s32.totalorder %s94, %s96
      %p103 = scmp.eq.s32.totalorder %s23, 1
      %p104 = por %p102, %p103
      %p105 = scmp.ne.s32.totalorder %s96, %s97
      %p106 = scmp.eq.s32.totalorder %s23, 0
      %p107 = por %p105, %p106
      %p108 = scmp.ne.s32.totalorder %s96, %s97
      %p109 = scmp.eq.s32.totalorder %s24, 1
      %p110 = por %p108, %p109
      %p112 = scmp.ne.s32.totalorder %s97, %s111
      %p113 = scmp.eq.s32.totalorder %s24, 0
      %p114 = por %p112, %p113
      %s116 = sadd.s32 %s115, 1
      %p119 = scmp.eq.s32.totalorder %s18, 1
      %p120 = scmp.ne.s32.totalorder %s115, %s117
      %p121 = scmp.eq.s32.totalorder %s18, 0
      %p122 = por %p120, %p121
      %p123 = scmp.ne.s32.totalorder %s115, %s117
      %p124 = scmp.eq.s32.totalorder %s23, 1
      %p125 = por %p123, %p124
      %p126 = scmp.ne.s32.totalorder %s117, %s118
      %p127 = scmp.eq.s32.totalorder %s23, 0
      %p128 = por %p126, %p127
      %p129 = scmp.ne.s32.totalorder %s117, %s118
      %p130 = scmp.eq.s32.totalorder %s24, 1
      %p131 = por %p129, %p130
      %p133 = scmp.ne.s32.totalorder %s118, %s132
      %p134 = scmp.eq.s32.totalorder %s24, 0
      %p135 = por %p133, %p134
      %s137 = sadd.s32 %s136, 1
      %p140 = scmp.eq.s32.totalorder %s18, 1
      %p141 = scmp.ne.s32.totalorder %s136, %s138
      %p142 = scmp.eq.s32.totalorder %s18, 0
      %p143 = por %p141, %p142
      %p144 = scmp.ne.s32.totalorder %s136, %s138
      %p145 = scmp.eq.s32.totalorder %s23, 1
      %p146 = por %p144, %p145
      %p147 = scmp.ne.s32.totalorder %s138, %s139
      %p148 = scmp.eq.s32.totalorder %s23, 0
      %p149 = por %p147, %p148
      %p150 = scmp.ne.s32.totalorder %s138, %s139
      %p151 = scmp.eq.s32.totalorder %s24, 1
      %p152 = por %p150, %p151
      %p154 = scmp.ne.s32.totalorder %s139, %s153
      %p155 = scmp.eq.s32.totalorder %s24, 0
      %p156 = por %p154, %p155
      %s158 = sadd.s32 %s157, 1
      %p161 = scmp.eq.s32.totalorder %s18, 1
      %p162 = scmp.ne.s32.totalorder %s157, %s159
      %p163 = scmp.eq.s32.totalorder %s18, 0
      %p164 = por %p162, %p163
      %p165 = scmp.ne.s32.totalorder %s157, %s159
      %p166 = scmp.eq.s32.totalorder %s23, 1
      %p167 = por %p165, %p166
      %p168 = scmp.ne.s32.totalorder %s159, %s160
      %p169 = scmp.eq.s32.totalorder %s23, 0
      %p170 = por %p168, %p169
      %p171 = scmp.ne.s32.totalorder %s159, %s160
      %p172 = scmp.eq.s32.totalorder %s24, 1
      %p173 = por %p171, %p172
      %p175 = scmp.ne.s32.totalorder %s160, %s174
      %p176 = scmp.eq.s32.totalorder %s24, 0
      %p177 = por %p175, %p176
      %s179 = sadd.s32 %s178, 1
      %p182 = scmp.eq.s32.totalorder %s18, 1
      %p183 = scmp.ne.s32.totalorder %s178, %s180
      %p184 = scmp.eq.s32.totalorder %s18, 0
      %p185 = por %p183, %p184
      %p186 = scmp.ne.s32.totalorder %s178, %s180
      %p187 = scmp.eq.s32.totalorder %s23, 1
      %p188 = por %p186, %p187
      %p189 = scmp.ne.s32.totalorder %s180, %s181
      %p190 = scmp.eq.s32.totalorder %s23, 0
      %p191 = por %p189, %p190
      %p192 = scmp.ne.s32.totalorder %s180, %s181
      %p193 = scmp.eq.s32.totalorder %s24, 1
      %p194 = por %p192, %p193
      %p196 = scmp.ne.s32.totalorder %s181, %s195
      %p197 = scmp.eq.s32.totalorder %s24, 0
      %p198 = por %p196, %p197
      %s200 = sadd.s32 %s199, 1
      %p203 = scmp.eq.s32.totalorder %s18, 1
      %p204 = scmp.ne.s32.totalorder %s199, %s201
      %p205 = scmp.eq.s32.totalorder %s18, 0
      %p206 = por %p204, %p205
      %p207 = scmp.ne.s32.totalorder %s199, %s201
      %p208 = scmp.eq.s32.totalorder %s23, 1
      %p209 = por %p207, %p208
      %p210 = scmp.ne.s32.totalorder %s201, %s202
      %p211 = scmp.eq.s32.totalorder %s23, 0
      %p212 = por %p210, %p211
      %p213 = scmp.ne.s32.totalorder %s201, %s202
      %p214 = scmp.eq.s32.totalorder %s24, 1
      %p215 = por %p213, %p214
      %p217 = scmp.ne.s32.totalorder %s202, %s216
      %p218 = scmp.eq.s32.totalorder %s24, 0
      %p219 = por %p217, %p218
      %s220 = ssub.s32 %s18, %s25
      %p221 = scmp.eq.s32.totalorder %s220, 0
      %s223 = sadd.s32 %s222, 1
      %s224 = scalar_select %p221, %s222, %s223
      %p227 = pneg %p221
      %p228 = scmp.eq.s32.totalorder %s18, 1
      %p229 = por %p227, %p228
      %p230 = scmp.ne.s32.totalorder %s222, %s225
      %p231 = scmp.eq.s32.totalorder %s18, 0
      %p232 = por %p230, %p231
      %p233 = scmp.ne.s32.totalorder %s222, %s225
      %p234 = scmp.eq.s32.totalorder %s23, 1
      %p235 = por %p233, %p234
      %p236 = scmp.ne.s32.totalorder %s225, %s226
      %p237 = scmp.eq.s32.totalorder %s23, 0
      %p238 = por %p236, %p237
      %p239 = scmp.ne.s32.totalorder %s225, %s226
      %p240 = scmp.eq.s32.totalorder %s24, 1
      %p241 = por %p239, %p240
      %p243 = scmp.ne.s32.totalorder %s226, %s242
      %p244 = scmp.eq.s32.totalorder %s24, 0
      %p245 = por %p243, %p244
      %p246 = scmp.le.s32.totalorder 1, %s18
      %p247 = scmp.lt.s32.totalorder %s18, 3
      %p248 = pnand %p246, %p247
      %p249 = pneg %p248
      // Predicated region
      $region9: #{_lambda_.1} parent=5 // pred_check
        _
      $region10: #{_lambda_.1} parent=5 // pred_check_branch
        %251 = sbr.rel (%p248) target = $region12
      $region11: #{_lambda_.1} parent=5 // pred_region
        %s252 = ssub.s32 %s18, 1
        // Predicated region
        $region13: #{_lambda_.1} parent=11 // pred_check
          %p253 = pneg %p65
        $region14: #{_lambda_.1} parent=11 // pred_check_branch
          %255 = sbr.rel (%p253) target = $region16
        $region15: #{_lambda_.1} parent=11 // pred_region
          _
        $region16: #{_lambda_.1} parent=11 // pred_fallthru
          _
        // Predicated region
        $region17: #{_lambda_.1} parent=11 // pred_check
          %p256 = pneg %p86
        $region18: #{_lambda_.1} parent=11 // pred_check_branch
          %258 = sbr.rel (%p256) target = $region20
        $region19: #{_lambda_.1} parent=11 // pred_region
          _
        $region20: #{_lambda_.1} parent=11 // pred_fallthru
          _
        // Predicated region
        $region21: #{_lambda_.1} parent=11 // pred_check
          %p259 = pneg %p107
        $region22: #{_lambda_.1} parent=11 // pred_check_branch
          %261 = sbr.rel (%p259) target = $region24
        $region23: #{_lambda_.1} parent=11 // pred_region
          _
        $region24: #{_lambda_.1} parent=11 // pred_fallthru
          _
        // Predicated region
        $region25: #{_lambda_.1} parent=11 // pred_check
          %p262 = pneg %p128
        $region26: #{_lambda_.1} parent=11 // pred_check_branch
          %264 = sbr.rel (%p262) target = $region28
        $region27: #{_lambda_.1} parent=11 // pred_region
          _
        $region28: #{_lambda_.1} parent=11 // pred_fallthru
          _
        // Predicated region
        $region29: #{_lambda_.1} parent=11 // pred_check
          %p265 = pneg %p149
        $region30: #{_lambda_.1} parent=11 // pred_check_branch
          %267 = sbr.rel (%p265) target = $region32
        $region31: #{_lambda_.1} parent=11 // pred_region
          _
        $region32: #{_lambda_.1} parent=11 // pred_fallthru
          _
        // Predicated region
        $region33: #{_lambda_.1} parent=11 // pred_check
          %p268 = pneg %p170
        $region34: #{_lambda_.1} parent=11 // pred_check_branch
          %270 = sbr.rel (%p268) target = $region36
        $region35: #{_lambda_.1} parent=11 // pred_region
          _
        $region36: #{_lambda_.1} parent=11 // pred_fallthru
          _
        // Predicated region
        $region37: #{_lambda_.1} parent=11 // pred_check
          %p271 = pneg %p191
        $region38: #{_lambda_.1} parent=11 // pred_check_branch
          %273 = sbr.rel (%p271) target = $region40
        $region39: #{_lambda_.1} parent=11 // pred_region
          _
        $region40: #{_lambda_.1} parent=11 // pred_fallthru
          _
        // Predicated region
        $region41: #{_lambda_.1} parent=11 // pred_check
          %p274 = pneg %p212
        $region42: #{_lambda_.1} parent=11 // pred_check_branch
          %276 = sbr.rel (%p274) target = $region44
        $region43: #{_lambda_.1} parent=11 // pred_region
          _
        $region44: #{_lambda_.1} parent=11 // pred_fallthru
          _
      $region12: #{_lambda_.1} parent=5 // pred_fallthru
        _
      %p277 = scmp.lt.s32.totalorder %s18, 2
      // Predicated region
      $region45: #{_lambda_.1} parent=5 // pred_check
        %p278 = pneg %p277
      $region46: #{_lambda_.1} parent=5 // pred_check_branch
        %280 = sbr.rel (%p278) target = $region48
      $region47: #{_lambda_.1} parent=5 // pred_region
        // Predicated region
        $region49: #{_lambda_.1} parent=47 // pred_check
          %p281 = pneg %p38
        $region50: #{_lambda_.1} parent=47 // pred_check_branch
          %283 = sbr.rel (%p281) target = $region52
        $region51: #{_lambda_.1} parent=47 // pred_region
          %p284 = scmp.lt.s32.totalorder %s18, 1
          %s285 = scalar_select %p284, %s18, 1
          %s286 = smul.addr %s285, 32
          %s287 = smul.addr %s286, 8
          %s288 = scalar_lea.vmem %s0, %s287
        $region52: #{_lambda_.1} parent=47 // pred_fallthru
          _
      $region48: #{_lambda_.1} parent=5 // pred_fallthru
        _
      %p289 = scmp.le.s32.totalorder 1, %s18
      %p290 = scmp.lt.s32.totalorder %s18, 3
      %p291 = pnand %p289, %p290
      %p292 = pneg %p291
      // Predicated region
      $region53: #{_lambda_.1} parent=5 // pred_check
        _
      $region54: #{_lambda_.1} parent=5 // pred_check_branch
        %294 = sbr.rel (%p291) target = $region56
      $region55: #{_lambda_.1} parent=5 // pred_region
        %s295 = ssub.s32 %s18, 1
        %p296 = scmp.lt.s32.totalorder %s23, 1
        %s297 = scalar_select %p296, %s23, 1
        %s298 = smul.addr %s297, 32
        %s299 = smul.addr %s298, 8
        %s300 = scalar_lea.vmem %s0, %s299
        %p301 = pneg %p44
        %p302 = pneg %p41
        %p303 = pneg %p65
        %p304 = pneg %p62
        %p305 = pneg %p86
        %p306 = pneg %p83
        %p307 = pneg %p107
        %p308 = pneg %p104
        %p309 = pneg %p128
        %p310 = pneg %p125
        %p311 = pneg %p149
        %p312 = pneg %p146
        %p313 = pneg %p170
        %p314 = pneg %p167
        %p315 = pneg %p191
        %p316 = pneg %p188
        %p317 = pneg %p212
        %p318 = pneg %p209
        %p319 = pneg %p238
        %p320 = pneg %p235
        %s321 = sand.u32 %s225, 1
        %s322 = scalar_lea.sflag [#allocation8], %s321
        %s323 = sand.u32 %s225, 1
        %s324 = scalar_lea.vmem [#allocation7], %s323
        %p325 = scmp.lt.s32.totalorder %s23, 1
        %s326 = scalar_select %p325, %s23, 1
        %s327 = smul.addr %s326, 32
        %s328 = smul.addr %s327, 8
        %s329 = scalar_lea.vmem %s0, %s328
        %v330 = vld [vmem:[%s329] sm:$0xff]
        %v331 = vld [vmem:[%s329 + $0x8] sm:$0xff]
        %v332 = vld [vmem:[%s329 + $0x10] sm:$0xff]
        %v333 = vld [vmem:[%s329 + $0x18] sm:$0xff]
        %v334 = vld [vmem:[%s329 + $0x20] sm:$0xff]
        %v335 = vld [vmem:[%s329 + $0x28] sm:$0xff]
        %v336 = vld [vmem:[%s329 + $0x30] sm:$0xff]
        %v337 = vld [vmem:[%s329 + $0x38] sm:$0xff]
        %v338 = vld [vmem:[%s329 + $0x40] sm:$0xff]
        %v339 = vld [vmem:[%s329 + $0x48] sm:$0xff]
        %v340 = vld [vmem:[%s329 + $0x50] sm:$0xff]
        %v341 = vld [vmem:[%s329 + $0x58] sm:$0xff]
        %v342 = vld [vmem:[%s329 + $0x60] sm:$0xff]
        %v343 = vld [vmem:[%s329 + $0x68] sm:$0xff]
        %v344 = vld [vmem:[%s329 + $0x70] sm:$0xff]
        %v345 = vld [vmem:[%s329 + $0x78] sm:$0xff]
        %v346 = vld [vmem:[%s329 + $0x80] sm:$0xff]
        %v347 = vld [vmem:[%s329 + $0x88] sm:$0xff]
        %v348 = vld [vmem:[%s329 + $0x90] sm:$0xff]
        %v349 = vld [vmem:[%s329 + $0x98] sm:$0xff]
        %v350 = vld [vmem:[%s329 + $0xa0] sm:$0xff]
        %v351 = vld [vmem:[%s329 + $0xa8] sm:$0xff]
        %v352 = vld [vmem:[%s329 + $0xb0] sm:$0xff]
        %v353 = vld [vmem:[%s329 + $0xb8] sm:$0xf]
        %v354 = vld [vmem:[%s1] sm:$0x1]
        %356 = vset.pattern.permute.xlu0 0
        %357 = vperm.xlu0 %356, %v330
        %v358 = vpop.permute.xlu0 %357
        %361 = vset.pattern.permute.xlu0 0
        %362 = vperm.xlu0 %361, %v331
        %v363 = vpop.permute.xlu0 %362
        %366 = vset.pattern.permute.xlu0 0
        %367 = vperm.xlu0 %366, %v332
        %v368 = vpop.permute.xlu0 %367
        %371 = vset.pattern.permute.xlu0 0
        %372 = vperm.xlu0 %371, %v333
        %v373 = vpop.permute.xlu0 %372
        %376 = vset.pattern.permute.xlu0 0
        %377 = vperm.xlu0 %376, %v334
        %v378 = vpop.permute.xlu0 %377
        %381 = vset.pattern.permute.xlu0 0
        %382 = vperm.xlu0 %381, %v335
        %v383 = vpop.permute.xlu0 %382
        %386 = vset.pattern.permute.xlu0 0
        %387 = vperm.xlu0 %386, %v336
        %v388 = vpop.permute.xlu0 %387
        %391 = vset.pattern.permute.xlu0 0
        %392 = vperm.xlu0 %391, %v337
        %v393 = vpop.permute.xlu0 %392
        %396 = vset.pattern.permute.xlu0 0
        %397 = vperm.xlu0 %396, %v338
        %v398 = vpop.permute.xlu0 %397
        %401 = vset.pattern.permute.xlu0 0
        %402 = vperm.xlu0 %401, %v339
        %v403 = vpop.permute.xlu0 %402
        %406 = vset.pattern.permute.xlu0 0
        %407 = vperm.xlu0 %406, %v340
        %v408 = vpop.permute.xlu0 %407
        %411 = vset.pattern.permute.xlu0 0
        %412 = vperm.xlu0 %411, %v341
        %v413 = vpop.permute.xlu0 %412
        %416 = vset.pattern.permute.xlu0 0
        %417 = vperm.xlu0 %416, %v342
        %v418 = vpop.permute.xlu0 %417
        %421 = vset.pattern.permute.xlu0 0
        %422 = vperm.xlu0 %421, %v343
        %v423 = vpop.permute.xlu0 %422
        %426 = vset.pattern.permute.xlu0 0
        %427 = vperm.xlu0 %426, %v344
        %v428 = vpop.permute.xlu0 %427
        %431 = vset.pattern.permute.xlu0 0
        %432 = vperm.xlu0 %431, %v345
        %v433 = vpop.permute.xlu0 %432
        %436 = vset.pattern.permute.xlu0 0
        %437 = vperm.xlu0 %436, %v346
        %v438 = vpop.permute.xlu0 %437
        %441 = vset.pattern.permute.xlu0 0
        %442 = vperm.xlu0 %441, %v347
        %v443 = vpop.permute.xlu0 %442
        %446 = vset.pattern.permute.xlu0 0
        %447 = vperm.xlu0 %446, %v348
        %v448 = vpop.permute.xlu0 %447
        %451 = vset.pattern.permute.xlu0 0
        %452 = vperm.xlu0 %451, %v349
        %v453 = vpop.permute.xlu0 %452
        %456 = vset.pattern.permute.xlu0 0
        %457 = vperm.xlu0 %456, %v350
        %v458 = vpop.permute.xlu0 %457
        %461 = vset.pattern.permute.xlu0 0
        %462 = vperm.xlu0 %461, %v351
        %v463 = vpop.permute.xlu0 %462
        %466 = vset.pattern.permute.xlu0 0
        %467 = vperm.xlu0 %466, %v352
        %v468 = vpop.permute.xlu0 %467
        %471 = vset.pattern.permute.xlu0 0
        %472 = vperm.xlu0 %471, %v353
        %v473 = vpop.permute.xlu0 %472
        %v475 = vlaneseq
        %v476 = vshrl.u32 %v475, 7
        %v477 = vsub.s32 0, %v476
        %v478 = vrot.slane %v354, %v477
        %v479 = vmul.f32 %v358, %v478
        %v480 = vmul.f32 %v363, %v478
        %v481 = vmul.f32 %v368, %v478
        %v482 = vmul.f32 %v373, %v478
        %v483 = vmul.f32 %v378, %v478
        %v484 = vmul.f32 %v383, %v478
        %v485 = vmul.f32 %v388, %v478
        %v486 = vmul.f32 %v393, %v478
        %v487 = vmul.f32 %v398, %v478
        %v488 = vmul.f32 %v403, %v478
        %v489 = vmul.f32 %v408, %v478
        %v490 = vmul.f32 %v413, %v478
        %v491 = vmul.f32 %v418, %v478
        %v492 = vmul.f32 %v423, %v478
        %v493 = vmul.f32 %v428, %v478
        %v494 = vmul.f32 %v433, %v478
        %v495 = vmul.f32 %v438, %v478
        %v496 = vmul.f32 %v443, %v478
        %v497 = vmul.f32 %v448, %v478
        %v498 = vmul.f32 %v453, %v478
        %v499 = vmul.f32 %v458, %v478
        %v500 = vmul.f32 %v463, %v478
        %v501 = vmul.f32 %v468, %v478
        %v502 = vmul.f32 %v473, %v478
        %v503 = vadd.f32 %v479, 0.0
        %v504 = vadd.f32 %v480, 0.0
        %v505 = vadd.f32 %v481, 0.0
        %v506 = vadd.f32 %v482, 0.0
        %v507 = vadd.f32 %v483, 0.0
        %v508 = vadd.f32 %v484, 0.0
        %v509 = vadd.f32 %v485, 0.0
        %v510 = vadd.f32 %v486, 0.0
        %v511 = vadd.f32 %v487, 0.0
        %v512 = vadd.f32 %v488, 0.0
        %v513 = vadd.f32 %v489, 0.0
        %v514 = vadd.f32 %v490, 0.0
        %v515 = vadd.f32 %v491, 0.0
        %v516 = vadd.f32 %v492, 0.0
        %v517 = vadd.f32 %v493, 0.0
        %v518 = vadd.f32 %v494, 0.0
        %v519 = vadd.f32 %v495, 0.0
        %v520 = vadd.f32 %v496, 0.0
        %v521 = vadd.f32 %v497, 0.0
        %v522 = vadd.f32 %v498, 0.0
        %v523 = vadd.f32 %v499, 0.0
        %v524 = vadd.f32 %v500, 0.0
        %v525 = vadd.f32 %v501, 0.0
        %v526 = vadd.f32 %v502, 0.0
        %v527 = vld [vmem:[%s329 + $0x1] sm:$0xff]
        %v528 = vld [vmem:[%s329 + $0x9] sm:$0xff]
        %v529 = vld [vmem:[%s329 + $0x11] sm:$0xff]
        %v530 = vld [vmem:[%s329 + $0x19] sm:$0xff]
        %v531 = vld [vmem:[%s329 + $0x21] sm:$0xff]
        %v532 = vld [vmem:[%s329 + $0x29] sm:$0xff]
        %v533 = vld [vmem:[%s329 + $0x31] sm:$0xff]
        %v534 = vld [vmem:[%s329 + $0x39] sm:$0xff]
        %v535 = vld [vmem:[%s329 + $0x41] sm:$0xff]
        %v536 = vld [vmem:[%s329 + $0x49] sm:$0xff]
        %v537 = vld [vmem:[%s329 + $0x51] sm:$0xff]
        %v538 = vld [vmem:[%s329 + $0x59] sm:$0xff]
        %v539 = vld [vmem:[%s329 + $0x61] sm:$0xff]
        %v540 = vld [vmem:[%s329 + $0x69] sm:$0xff]
        %v541 = vld [vmem:[%s329 + $0x71] sm:$0xff]
        %v542 = vld [vmem:[%s329 + $0x79] sm:$0xff]
        %v543 = vld [vmem:[%s329 + $0x81] sm:$0xff]
        %v544 = vld [vmem:[%s329 + $0x89] sm:$0xff]
        %v545 = vld [vmem:[%s329 + $0x91] sm:$0xff]
        %v546 = vld [vmem:[%s329 + $0x99] sm:$0xff]
        %v547 = vld [vmem:[%s329 + $0xa1] sm:$0xff]
        %v548 = vld [vmem:[%s329 + $0xa9] sm:$0xff]
        %v549 = vld [vmem:[%s329 + $0xb1] sm:$0xff]
        %v550 = vld [vmem:[%s329 + $0xb9] sm:$0xf]
        %v551 = vld [vmem:[%s1 + $0x1] sm:$0x1]
        %553 = vset.pattern.permute.xlu0 0
        %554 = vperm.xlu0 %553, %v527
        %v555 = vpop.permute.xlu0 %554
        %558 = vset.pattern.permute.xlu0 0
        %559 = vperm.xlu0 %558, %v528
        %v560 = vpop.permute.xlu0 %559
        %563 = vset.pattern.permute.xlu0 0
        %564 = vperm.xlu0 %563, %v529
        %v565 = vpop.permute.xlu0 %564
        %568 = vset.pattern.permute.xlu0 0
        %569 = vperm.xlu0 %568, %v530
        %v570 = vpop.permute.xlu0 %569
        %573 = vset.pattern.permute.xlu0 0
        %574 = vperm.xlu0 %573, %v531
        %v575 = vpop.permute.xlu0 %574
        %578 = vset.pattern.permute.xlu0 0
        %579 = vperm.xlu0 %578, %v532
        %v580 = vpop.permute.xlu0 %579
        %583 = vset.pattern.permute.xlu0 0
        %584 = vperm.xlu0 %583, %v533
        %v585 = vpop.permute.xlu0 %584
        %588 = vset.pattern.permute.xlu0 0
        %589 = vperm.xlu0 %588, %v534
        %v590 = vpop.permute.xlu0 %589
        %593 = vset.pattern.permute.xlu0 0
        %594 = vperm.xlu0 %593, %v535
        %v595 = vpop.permute.xlu0 %594
        %598 = vset.pattern.permute.xlu0 0
        %599 = vperm.xlu0 %598, %v536
        %v600 = vpop.permute.xlu0 %599
        %603 = vset.pattern.permute.xlu0 0
        %604 = vperm.xlu0 %603, %v537
        %v605 = vpop.permute.xlu0 %604
        %608 = vset.pattern.permute.xlu0 0
        %609 = vperm.xlu0 %608, %v538
        %v610 = vpop.permute.xlu0 %609
        %613 = vset.pattern.permute.xlu0 0
        %614 = vperm.xlu0 %613, %v539
        %v615 = vpop.permute.xlu0 %614
        %618 = vset.pattern.permute.xlu0 0
        %619 = vperm.xlu0 %618, %v540
        %v620 = vpop.permute.xlu0 %619
        %623 = vset.pattern.permute.xlu0 0
        %624 = vperm.xlu0 %623, %v541
        %v625 = vpop.permute.xlu0 %624
        %628 = vset.pattern.permute.xlu0 0
        %629 = vperm.xlu0 %628, %v542
        %v630 = vpop.permute.xlu0 %629
        %633 = vset.pattern.permute.xlu0 0
        %634 = vperm.xlu0 %633, %v543
        %v635 = vpop.permute.xlu0 %634
        %638 = vset.pattern.permute.xlu0 0
        %639 = vperm.xlu0 %638, %v544
        %v640 = vpop.permute.xlu0 %639
        %643 = vset.pattern.permute.xlu0 0
        %644 = vperm.xlu0 %643, %v545
        %v645 = vpop.permute.xlu0 %644
        %648 = vset.pattern.permute.xlu0 0
        %649 = vperm.xlu0 %648, %v546
        %v650 = vpop.permute.xlu0 %649
        %653 = vset.pattern.permute.xlu0 0
        %654 = vperm.xlu0 %653, %v547
        %v655 = vpop.permute.xlu0 %654
        %658 = vset.pattern.permute.xlu0 0
        %659 = vperm.xlu0 %658, %v548
        %v660 = vpop.permute.xlu0 %659
        %663 = vset.pattern.permute.xlu0 0
        %664 = vperm.xlu0 %663, %v549
        %v665 = vpop.permute.xlu0 %664
        %668 = vset.pattern.permute.xlu0 0
        %669 = vperm.xlu0 %668, %v550
        %v670 = vpop.permute.xlu0 %669
        %v672 = vlaneseq
        %v673 = vshrl.u32 %v672, 7
        %v674 = vsub.s32 0, %v673
        %v675 = vrot.slane %v551, %v674
        %v676 = vmul.f32 %v555, %v675
        %v677 = vmul.f32 %v560, %v675
        %v678 = vmul.f32 %v565, %v675
        %v679 = vmul.f32 %v570, %v675
        %v680 = vmul.f32 %v575, %v675
        %v681 = vmul.f32 %v580, %v675
        %v682 = vmul.f32 %v585, %v675
        %v683 = vmul.f32 %v590, %v675
        %v684 = vmul.f32 %v595, %v675
        %v685 = vmul.f32 %v600, %v675
        %v686 = vmul.f32 %v605, %v675
        %v687 = vmul.f32 %v610, %v675
        %v688 = vmul.f32 %v615, %v675
        %v689 = vmul.f32 %v620, %v675
        %v690 = vmul.f32 %v625, %v675
        %v691 = vmul.f32 %v630, %v675
        %v692 = vmul.f32 %v635, %v675
        %v693 = vmul.f32 %v640, %v675
        %v694 = vmul.f32 %v645, %v675
        %v695 = vmul.f32 %v650, %v675
        %v696 = vmul.f32 %v655, %v675
        %v697 = vmul.f32 %v660, %v675
        %v698 = vmul.f32 %v665, %v675
        %v699 = vmul.f32 %v670, %v675
        %v700 = vadd.f32 %v503, %v676
        %v701 = vadd.f32 %v504, %v677
        %v702 = vadd.f32 %v505, %v678
        %v703 = vadd.f32 %v506, %v679
        %v704 = vadd.f32 %v507, %v680
        %v705 = vadd.f32 %v508, %v681
        %v706 = vadd.f32 %v509, %v682
        %v707 = vadd.f32 %v510, %v683
        %v708 = vadd.f32 %v511, %v684
        %v709 = vadd.f32 %v512, %v685
        %v710 = vadd.f32 %v513, %v686
        %v711 = vadd.f32 %v514, %v687
        %v712 = vadd.f32 %v515, %v688
        %v713 = vadd.f32 %v516, %v689
        %v714 = vadd.f32 %v517, %v690
        %v715 = vadd.f32 %v518, %v691
        %v716 = vadd.f32 %v519, %v692
        %v717 = vadd.f32 %v520, %v693
        %v718 = vadd.f32 %v521, %v694
        %v719 = vadd.f32 %v522, %v695
        %v720 = vadd.f32 %v523, %v696
        %v721 = vadd.f32 %v524, %v697
        %v722 = vadd.f32 %v525, %v698
        %v723 = vadd.f32 %v526, %v699
        %v724 = vld [vmem:[%s329 + $0x2] sm:$0xff]
        %v725 = vld [vmem:[%s329 + $0xa] sm:$0xff]
        %v726 = vld [vmem:[%s329 + $0x12] sm:$0xff]
        %v727 = vld [vmem:[%s329 + $0x1a] sm:$0xff]
        %v728 = vld [vmem:[%s329 + $0x22] sm:$0xff]
        %v729 = vld [vmem:[%s329 + $0x2a] sm:$0xff]
        %v730 = vld [vmem:[%s329 + $0x32] sm:$0xff]
        %v731 = vld [vmem:[%s329 + $0x3a] sm:$0xff]
        %v732 = vld [vmem:[%s329 + $0x42] sm:$0xff]
        %v733 = vld [vmem:[%s329 + $0x4a] sm:$0xff]
        %v734 = vld [vmem:[%s329 + $0x52] sm:$0xff]
        %v735 = vld [vmem:[%s329 + $0x5a] sm:$0xff]
        %v736 = vld [vmem:[%s329 + $0x62] sm:$0xff]
        %v737 = vld [vmem:[%s329 + $0x6a] sm:$0xff]
        %v738 = vld [vmem:[%s329 + $0x72] sm:$0xff]
        %v739 = vld [vmem:[%s329 + $0x7a] sm:$0xff]
        %v740 = vld [vmem:[%s329 + $0x82] sm:$0xff]
        %v741 = vld [vmem:[%s329 + $0x8a] sm:$0xff]
        %v742 = vld [vmem:[%s329 + $0x92] sm:$0xff]
        %v743 = vld [vmem:[%s329 + $0x9a] sm:$0xff]
        %v744 = vld [vmem:[%s329 + $0xa2] sm:$0xff]
        %v745 = vld [vmem:[%s329 + $0xaa] sm:$0xff]
        %v746 = vld [vmem:[%s329 + $0xb2] sm:$0xff]
        %v747 = vld [vmem:[%s329 + $0xba] sm:$0xf]
        %v748 = vld [vmem:[%s1 + $0x2] sm:$0x1]
        %750 = vset.pattern.permute.xlu0 0
        %751 = vperm.xlu0 %750, %v724
        %v752 = vpop.permute.xlu0 %751
        %755 = vset.pattern.permute.xlu0 0
        %756 = vperm.xlu0 %755, %v725
        %v757 = vpop.permute.xlu0 %756
        %760 = vset.pattern.permute.xlu0 0
        %761 = vperm.xlu0 %760, %v726
        %v762 = vpop.permute.xlu0 %761
        %765 = vset.pattern.permute.xlu0 0
        %766 = vperm.xlu0 %765, %v727
        %v767 = vpop.permute.xlu0 %766
        %770 = vset.pattern.permute.xlu0 0
        %771 = vperm.xlu0 %770, %v728
        %v772 = vpop.permute.xlu0 %771
        %775 = vset.pattern.permute.xlu0 0
        %776 = vperm.xlu0 %775, %v729
        %v777 = vpop.permute.xlu0 %776
        %780 = vset.pattern.permute.xlu0 0
        %781 = vperm.xlu0 %780, %v730
        %v782 = vpop.permute.xlu0 %781
        %785 = vset.pattern.permute.xlu0 0
        %786 = vperm.xlu0 %785, %v731
        %v787 = vpop.permute.xlu0 %786
        %790 = vset.pattern.permute.xlu0 0
        %791 = vperm.xlu0 %790, %v732
        %v792 = vpop.permute.xlu0 %791
        %795 = vset.pattern.permute.xlu0 0
        %796 = vperm.xlu0 %795, %v733
        %v797 = vpop.permute.xlu0 %796
        %800 = vset.pattern.permute.xlu0 0
        %801 = vperm.xlu0 %800, %v734
        %v802 = vpop.permute.xlu0 %801
        %805 = vset.pattern.permute.xlu0 0
        %806 = vperm.xlu0 %805, %v735
        %v807 = vpop.permute.xlu0 %806
        %810 = vset.pattern.permute.xlu0 0
        %811 = vperm.xlu0 %810, %v736
        %v812 = vpop.permute.xlu0 %811
        %815 = vset.pattern.permute.xlu0 0
        %816 = vperm.xlu0 %815, %v737
        %v817 = vpop.permute.xlu0 %816
        %820 = vset.pattern.permute.xlu0 0
        %821 = vperm.xlu0 %820, %v738
        %v822 = vpop.permute.xlu0 %821
        %825 = vset.pattern.permute.xlu0 0
        %826 = vperm.xlu0 %825, %v739
        %v827 = vpop.permute.xlu0 %826
        %830 = vset.pattern.permute.xlu0 0
        %831 = vperm.xlu0 %830, %v740
        %v832 = vpop.permute.xlu0 %831
        %835 = vset.pattern.permute.xlu0 0
        %836 = vperm.xlu0 %835, %v741
        %v837 = vpop.permute.xlu0 %836
        %840 = vset.pattern.permute.xlu0 0
        %841 = vperm.xlu0 %840, %v742
        %v842 = vpop.permute.xlu0 %841
        %845 = vset.pattern.permute.xlu0 0
        %846 = vperm.xlu0 %845, %v743
        %v847 = vpop.permute.xlu0 %846
        %850 = vset.pattern.permute.xlu0 0
        %851 = vperm.xlu0 %850, %v744
        %v852 = vpop.permute.xlu0 %851
        %855 = vset.pattern.permute.xlu0 0
        %856 = vperm.xlu0 %855, %v745
        %v857 = vpop.permute.xlu0 %856
        %860 = vset.pattern.permute.xlu0 0
        %861 = vperm.xlu0 %860, %v746
        %v862 = vpop.permute.xlu0 %861
        %865 = vset.pattern.permute.xlu0 0
        %866 = vperm.xlu0 %865, %v747
        %v867 = vpop.permute.xlu0 %866
        %v869 = vlaneseq
        %v870 = vshrl.u32 %v869, 7
        %v871 = vsub.s32 0, %v870
        %v872 = vrot.slane %v748, %v871
        %v873 = vmul.f32 %v752, %v872
        %v874 = vmul.f32 %v757, %v872
        %v875 = vmul.f32 %v762, %v872
        %v876 = vmul.f32 %v767, %v872
        %v877 = vmul.f32 %v772, %v872
        %v878 = vmul.f32 %v777, %v872
        %v879 = vmul.f32 %v782, %v872
        %v880 = vmul.f32 %v787, %v872
        %v881 = vmul.f32 %v792, %v872
        %v882 = vmul.f32 %v797, %v872
        %v883 = vmul.f32 %v802, %v872
        %v884 = vmul.f32 %v807, %v872
        %v885 = vmul.f32 %v812, %v872
        %v886 = vmul.f32 %v817, %v872
        %v887 = vmul.f32 %v822, %v872
        %v888 = vmul.f32 %v827, %v872
        %v889 = vmul.f32 %v832, %v872
        %v890 = vmul.f32 %v837, %v872
        %v891 = vmul.f32 %v842, %v872
        %v892 = vmul.f32 %v847, %v872
        %v893 = vmul.f32 %v852, %v872
        %v894 = vmul.f32 %v857, %v872
        %v895 = vmul.f32 %v862, %v872
        %v896 = vmul.f32 %v867, %v872
        %v897 = vadd.f32 %v700, %v873
        %v898 = vadd.f32 %v701, %v874
        %v899 = vadd.f32 %v702, %v875
        %v900 = vadd.f32 %v703, %v876
        %v901 = vadd.f32 %v704, %v877
        %v902 = vadd.f32 %v705, %v878
        %v903 = vadd.f32 %v706, %v879
        %v904 = vadd.f32 %v707, %v880
        %v905 = vadd.f32 %v708, %v881
        %v906 = vadd.f32 %v709, %v882
        %v907 = vadd.f32 %v710, %v883
        %v908 = vadd.f32 %v711, %v884
        %v909 = vadd.f32 %v712, %v885
        %v910 = vadd.f32 %v713, %v886
        %v911 = vadd.f32 %v714, %v887
        %v912 = vadd.f32 %v715, %v888
        %v913 = vadd.f32 %v716, %v889
        %v914 = vadd.f32 %v717, %v890
        %v915 = vadd.f32 %v718, %v891
        %v916 = vadd.f32 %v719, %v892
        %v917 = vadd.f32 %v720, %v893
        %v918 = vadd.f32 %v721, %v894
        %v919 = vadd.f32 %v722, %v895
        %v920 = vadd.f32 %v723, %v896
        %v921 = vld [vmem:[%s329 + $0x10] sm:$0xff]
        %v922 = vld [vmem:[%s329 + $0x18] sm:$0xff]
        %v923 = vld [vmem:[%s329 + $0x20] sm:$0xff]
        %v924 = vld [vmem:[%s329 + $0x28] sm:$0xff]
        %v925 = vld [vmem:[%s329 + $0x30] sm:$0xff]
        %v926 = vld [vmem:[%s329 + $0x38] sm:$0xff]
        %v927 = vld [vmem:[%s329 + $0x40] sm:$0xff]
        %v928 = vld [vmem:[%s329 + $0x48] sm:$0xff]
        %v929 = vld [vmem:[%s329 + $0x50] sm:$0xff]
        %v930 = vld [vmem:[%s329 + $0x58] sm:$0xff]
        %v931 = vld [vmem:[%s329 + $0x60] sm:$0xff]
        %v932 = vld [vmem:[%s329 + $0x68] sm:$0xff]
        %v933 = vld [vmem:[%s329 + $0x70] sm:$0xff]
        %v934 = vld [vmem:[%s329 + $0x78] sm:$0xff]
        %v935 = vld [vmem:[%s329 + $0x80] sm:$0xff]
        %v936 = vld [vmem:[%s329 + $0x88] sm:$0xff]
        %v937 = vld [vmem:[%s329 + $0x90] sm:$0xff]
        %v938 = vld [vmem:[%s329 + $0x98] sm:$0xff]
        %v939 = vld [vmem:[%s329 + $0xa0] sm:$0xff]
        %v940 = vld [vmem:[%s329 + $0xa8] sm:$0xff]
        %v941 = vld [vmem:[%s329 + $0xb0] sm:$0xff]
        %v942 = vld [vmem:[%s329 + $0xb8] sm:$0xff]
        %v943 = vld [vmem:[%s329 + $0xc0] sm:$0xff]
        %v944 = vld [vmem:[%s329 + $0xc8] sm:$0xf]
        %v945 = vld [vmem:[%s1 + $0x3] sm:$0x1]
        %947 = vset.pattern.permute.xlu0 0
        %948 = vperm.xlu0 %947, %v921
        %v949 = vpop.permute.xlu0 %948
        %952 = vset.pattern.permute.xlu0 0
        %953 = vperm.xlu0 %952, %v922
        %v954 = vpop.permute.xlu0 %953
        %957 = vset.pattern.permute.xlu0 0
        %958 = vperm.xlu0 %957, %v923
        %v959 = vpop.permute.xlu0 %958
        %962 = vset.pattern.permute.xlu0 0
        %963 = vperm.xlu0 %962, %v924
        %v964 = vpop.permute.xlu0 %963
        %967 = vset.pattern.permute.xlu0 0
        %968 = vperm.xlu0 %967, %v925
        %v969 = vpop.permute.xlu0 %968
        %972 = vset.pattern.permute.xlu0 0
        %973 = vperm.xlu0 %972, %v926
        %v974 = vpop.permute.xlu0 %973
        %977 = vset.pattern.permute.xlu0 0
        %978 = vperm.xlu0 %977, %v927
        %v979 = vpop.permute.xlu0 %978
        %982 = vset.pattern.permute.xlu0 0
        %983 = vperm.xlu0 %982, %v928
        %v984 = vpop.permute.xlu0 %983
        %987 = vset.pattern.permute.xlu0 0
        %988 = vperm.xlu0 %987, %v929
        %v989 = vpop.permute.xlu0 %988
        %992 = vset.pattern.permute.xlu0 0
        %993 = vperm.xlu0 %992, %v930
        %v994 = vpop.permute.xlu0 %993
        %997 = vset.pattern.permute.xlu0 0
        %998 = vperm.xlu0 %997, %v931
        %v999 = vpop.permute.xlu0 %998
        %1002 = vset.pattern.permute.xlu0 0
        %1003 = vperm.xlu0 %1002, %v932
        %v1004 = vpop.permute.xlu0 %1003
        %1007 = vset.pattern.permute.xlu0 0
        %1008 = vperm.xlu0 %1007, %v933
        %v1009 = vpop.permute.xlu0 %1008
        %1012 = vset.pattern.permute.xlu0 0
        %1013 = vperm.xlu0 %1012, %v934
        %v1014 = vpop.permute.xlu0 %1013
        %1017 = vset.pattern.permute.xlu0 0
        %1018 = vperm.xlu0 %1017, %v935
        %v1019 = vpop.permute.xlu0 %1018
        %1022 = vset.pattern.permute.xlu0 0
        %1023 = vperm.xlu0 %1022, %v936
        %v1024 = vpop.permute.xlu0 %1023
        %1027 = vset.pattern.permute.xlu0 0
        %1028 = vperm.xlu0 %1027, %v937
        %v1029 = vpop.permute.xlu0 %1028
        %1032 = vset.pattern.permute.xlu0 0
        %1033 = vperm.xlu0 %1032, %v938
        %v1034 = vpop.permute.xlu0 %1033
        %1037 = vset.pattern.permute.xlu0 0
        %1038 = vperm.xlu0 %1037, %v939
        %v1039 = vpop.permute.xlu0 %1038
        %1042 = vset.pattern.permute.xlu0 0
        %1043 = vperm.xlu0 %1042, %v940
        %v1044 = vpop.permute.xlu0 %1043
        %1047 = vset.pattern.permute.xlu0 0
        %1048 = vperm.xlu0 %1047, %v941
        %v1049 = vpop.permute.xlu0 %1048
        %1052 = vset.pattern.permute.xlu0 0
        %1053 = vperm.xlu0 %1052, %v942
        %v1054 = vpop.permute.xlu0 %1053
        %1057 = vset.pattern.permute.xlu0 0
        %1058 = vperm.xlu0 %1057, %v943
        %v1059 = vpop.permute.xlu0 %1058
        %1062 = vset.pattern.permute.xlu0 0
        %1063 = vperm.xlu0 %1062, %v944
        %v1064 = vpop.permute.xlu0 %1063
        %v1066 = vlaneseq
        %v1067 = vshrl.u32 %v1066, 7
        %v1068 = vsub.s32 0, %v1067
        %v1069 = vrot.slane %v945, %v1068
        %v1070 = vmul.f32 %v949, %v1069
        %v1071 = vmul.f32 %v954, %v1069
        %v1072 = vmul.f32 %v959, %v1069
        %v1073 = vmul.f32 %v964, %v1069
        %v1074 = vmul.f32 %v969, %v1069
        %v1075 = vmul.f32 %v974, %v1069
        %v1076 = vmul.f32 %v979, %v1069
        %v1077 = vmul.f32 %v984, %v1069
        %v1078 = vmul.f32 %v989, %v1069
        %v1079 = vmul.f32 %v994, %v1069
        %v1080 = vmul.f32 %v999, %v1069
        %v1081 = vmul.f32 %v1004, %v1069
        %v1082 = vmul.f32 %v1009, %v1069
        %v1083 = vmul.f32 %v1014, %v1069
        %v1084 = vmul.f32 %v1019, %v1069
        %v1085 = vmul.f32 %v1024, %v1069
        %v1086 = vmul.f32 %v1029, %v1069
        %v1087 = vmul.f32 %v1034, %v1069
        %v1088 = vmul.f32 %v1039, %v1069
        %v1089 = vmul.f32 %v1044, %v1069
        %v1090 = vmul.f32 %v1049, %v1069
        %v1091 = vmul.f32 %v1054, %v1069
        %v1092 = vmul.f32 %v1059, %v1069
        %v1093 = vmul.f32 %v1064, %v1069
        %v1094 = vadd.f32 %v897, %v1070
        %v1095 = vadd.f32 %v898, %v1071
        %v1096 = vadd.f32 %v899, %v1072
        %v1097 = vadd.f32 %v900, %v1073
        %v1098 = vadd.f32 %v901, %v1074
        %v1099 = vadd.f32 %v902, %v1075
        %v1100 = vadd.f32 %v903, %v1076
        %v1101 = vadd.f32 %v904, %v1077
        %v1102 = vadd.f32 %v905, %v1078
        %v1103 = vadd.f32 %v906, %v1079
        %v1104 = vadd.f32 %v907, %v1080
        %v1105 = vadd.f32 %v908, %v1081
        %v1106 = vadd.f32 %v909, %v1082
        %v1107 = vadd.f32 %v910, %v1083
        %v1108 = vadd.f32 %v911, %v1084
        %v1109 = vadd.f32 %v912, %v1085
        %v1110 = vadd.f32 %v913, %v1086
        %v1111 = vadd.f32 %v914, %v1087
        %v1112 = vadd.f32 %v915, %v1088
        %v1113 = vadd.f32 %v916, %v1089
        %v1114 = vadd.f32 %v917, %v1090
        %v1115 = vadd.f32 %v918, %v1091
        %v1116 = vadd.f32 %v919, %v1092
        %v1117 = vadd.f32 %v920, %v1093
        %v1118 = vld [vmem:[%s329 + $0x11] sm:$0xff]
        %v1119 = vld [vmem:[%s329 + $0x19] sm:$0xff]
        %v1120 = vld [vmem:[%s329 + $0x21] sm:$0xff]
        %v1121 = vld [vmem:[%s329 + $0x29] sm:$0xff]
        %v1122 = vld [vmem:[%s329 + $0x31] sm:$0xff]
        %v1123 = vld [vmem:[%s329 + $0x39] sm:$0xff]
        %v1124 = vld [vmem:[%s329 + $0x41] sm:$0xff]
        %v1125 = vld [vmem:[%s329 + $0x49] sm:$0xff]
        %v1126 = vld [vmem:[%s329 + $0x51] sm:$0xff]
        %v1127 = vld [vmem:[%s329 + $0x59] sm:$0xff]
        %v1128 = vld [vmem:[%s329 + $0x61] sm:$0xff]
        %v1129 = vld [vmem:[%s329 + $0x69] sm:$0xff]
        %v1130 = vld [vmem:[%s329 + $0x71] sm:$0xff]
        %v1131 = vld [vmem:[%s329 + $0x79] sm:$0xff]
        %v1132 = vld [vmem:[%s329 + $0x81] sm:$0xff]
        %v1133 = vld [vmem:[%s329 + $0x89] sm:$0xff]
        %v1134 = vld [vmem:[%s329 + $0x91] sm:$0xff]
        %v1135 = vld [vmem:[%s329 + $0x99] sm:$0xff]
        %v1136 = vld [vmem:[%s329 + $0xa1] sm:$0xff]
        %v1137 = vld [vmem:[%s329 + $0xa9] sm:$0xff]
        %v1138 = vld [vmem:[%s329 + $0xb1] sm:$0xff]
        %v1139 = vld [vmem:[%s329 + $0xb9] sm:$0xff]
        %v1140 = vld [vmem:[%s329 + $0xc1] sm:$0xff]
        %v1141 = vld [vmem:[%s329 + $0xc9] sm:$0xf]
        %v1142 = vld [vmem:[%s1 + $0x4] sm:$0x1]
        %1144 = vset.pattern.permute.xlu0 0
        %1145 = vperm.xlu0 %1144, %v1118
        %v1146 = vpop.permute.xlu0 %1145
        %1149 = vset.pattern.permute.xlu0 0
        %1150 = vperm.xlu0 %1149, %v1119
        %v1151 = vpop.permute.xlu0 %1150
        %1154 = vset.pattern.permute.xlu0 0
        %1155 = vperm.xlu0 %1154, %v1120
        %v1156 = vpop.permute.xlu0 %1155
        %1159 = vset.pattern.permute.xlu0 0
        %1160 = vperm.xlu0 %1159, %v1121
        %v1161 = vpop.permute.xlu0 %1160
        %1164 = vset.pattern.permute.xlu0 0
        %1165 = vperm.xlu0 %1164, %v1122
        %v1166 = vpop.permute.xlu0 %1165
        %1169 = vset.pattern.permute.xlu0 0
        %1170 = vperm.xlu0 %1169, %v1123
        %v1171 = vpop.permute.xlu0 %1170
        %1174 = vset.pattern.permute.xlu0 0
        %1175 = vperm.xlu0 %1174, %v1124
        %v1176 = vpop.permute.xlu0 %1175
        %1179 = vset.pattern.permute.xlu0 0
        %1180 = vperm.xlu0 %1179, %v1125
        %v1181 = vpop.permute.xlu0 %1180
        %1184 = vset.pattern.permute.xlu0 0
        %1185 = vperm.xlu0 %1184, %v1126
        %v1186 = vpop.permute.xlu0 %1185
        %1189 = vset.pattern.permute.xlu0 0
        %1190 = vperm.xlu0 %1189, %v1127
        %v1191 = vpop.permute.xlu0 %1190
        %1194 = vset.pattern.permute.xlu0 0
        %1195 = vperm.xlu0 %1194, %v1128
        %v1196 = vpop.permute.xlu0 %1195
        %1199 = vset.pattern.permute.xlu0 0
        %1200 = vperm.xlu0 %1199, %v1129
        %v1201 = vpop.permute.xlu0 %1200
        %1204 = vset.pattern.permute.xlu0 0
        %1205 = vperm.xlu0 %1204, %v1130
        %v1206 = vpop.permute.xlu0 %1205
        %1209 = vset.pattern.permute.xlu0 0
        %1210 = vperm.xlu0 %1209, %v1131
        %v1211 = vpop.permute.xlu0 %1210
        %1214 = vset.pattern.permute.xlu0 0
        %1215 = vperm.xlu0 %1214, %v1132
        %v1216 = vpop.permute.xlu0 %1215
        %1219 = vset.pattern.permute.xlu0 0
        %1220 = vperm.xlu0 %1219, %v1133
        %v1221 = vpop.permute.xlu0 %1220
        %1224 = vset.pattern.permute.xlu0 0
        %1225 = vperm.xlu0 %1224, %v1134
        %v1226 = vpop.permute.xlu0 %1225
        %1229 = vset.pattern.permute.xlu0 0
        %1230 = vperm.xlu0 %1229, %v1135
        %v1231 = vpop.permute.xlu0 %1230
        %1234 = vset.pattern.permute.xlu0 0
        %1235 = vperm.xlu0 %1234, %v1136
        %v1236 = vpop.permute.xlu0 %1235
        %1239 = vset.pattern.permute.xlu0 0
        %1240 = vperm.xlu0 %1239, %v1137
        %v1241 = vpop.permute.xlu0 %1240
        %1244 = vset.pattern.permute.xlu0 0
        %1245 = vperm.xlu0 %1244, %v1138
        %v1246 = vpop.permute.xlu0 %1245
        %1249 = vset.pattern.permute.xlu0 0
        %1250 = vperm.xlu0 %1249, %v1139
        %v1251 = vpop.permute.xlu0 %1250
        %1254 = vset.pattern.permute.xlu0 0
        %1255 = vperm.xlu0 %1254, %v1140
        %v1256 = vpop.permute.xlu0 %1255
        %1259 = vset.pattern.permute.xlu0 0
        %1260 = vperm.xlu0 %1259, %v1141
        %v1261 = vpop.permute.xlu0 %1260
        %v1263 = vlaneseq
        %v1264 = vshrl.u32 %v1263, 7
        %v1265 = vsub.s32 0, %v1264
        %v1266 = vrot.slane %v1142, %v1265
        %v1267 = vmul.f32 %v1146, %v1266
        %v1268 = vmul.f32 %v1151, %v1266
        %v1269 = vmul.f32 %v1156, %v1266
        %v1270 = vmul.f32 %v1161, %v1266
        %v1271 = vmul.f32 %v1166, %v1266
        %v1272 = vmul.f32 %v1171, %v1266
        %v1273 = vmul.f32 %v1176, %v1266
        %v1274 = vmul.f32 %v1181, %v1266
        %v1275 = vmul.f32 %v1186, %v1266
        %v1276 = vmul.f32 %v1191, %v1266
        %v1277 = vmul.f32 %v1196, %v1266
        %v1278 = vmul.f32 %v1201, %v1266
        %v1279 = vmul.f32 %v1206, %v1266
        %v1280 = vmul.f32 %v1211, %v1266
        %v1281 = vmul.f32 %v1216, %v1266
        %v1282 = vmul.f32 %v1221, %v1266
        %v1283 = vmul.f32 %v1226, %v1266
        %v1284 = vmul.f32 %v1231, %v1266
        %v1285 = vmul.f32 %v1236, %v1266
        %v1286 = vmul.f32 %v1241, %v1266
        %v1287 = vmul.f32 %v1246, %v1266
        %v1288 = vmul.f32 %v1251, %v1266
        %v1289 = vmul.f32 %v1256, %v1266
        %v1290 = vmul.f32 %v1261, %v1266
        %v1291 = vadd.f32 %v1094, %v1267
        %v1292 = vadd.f32 %v1095, %v1268
        %v1293 = vadd.f32 %v1096, %v1269
        %v1294 = vadd.f32 %v1097, %v1270
        %v1295 = vadd.f32 %v1098, %v1271
        %v1296 = vadd.f32 %v1099, %v1272
        %v1297 = vadd.f32 %v1100, %v1273
        %v1298 = vadd.f32 %v1101, %v1274
        %v1299 = vadd.f32 %v1102, %v1275
        %v1300 = vadd.f32 %v1103, %v1276
        %v1301 = vadd.f32 %v1104, %v1277
        %v1302 = vadd.f32 %v1105, %v1278
        %v1303 = vadd.f32 %v1106, %v1279
        %v1304 = vadd.f32 %v1107, %v1280
        %v1305 = vadd.f32 %v1108, %v1281
        %v1306 = vadd.f32 %v1109, %v1282
        %v1307 = vadd.f32 %v1110, %v1283
        %v1308 = vadd.f32 %v1111, %v1284
        %v1309 = vadd.f32 %v1112, %v1285
        %v1310 = vadd.f32 %v1113, %v1286
        %v1311 = vadd.f32 %v1114, %v1287
        %v1312 = vadd.f32 %v1115, %v1288
        %v1313 = vadd.f32 %v1116, %v1289
        %v1314 = vadd.f32 %v1117, %v1290
        %v1315 = vld [vmem:[%s329 + $0x12] sm:$0xff]
        %v1316 = vld [vmem:[%s329 + $0x1a] sm:$0xff]
        %v1317 = vld [vmem:[%s329 + $0x22] sm:$0xff]
        %v1318 = vld [vmem:[%s329 + $0x2a] sm:$0xff]
        %v1319 = vld [vmem:[%s329 + $0x32] sm:$0xff]
        %v1320 = vld [vmem:[%s329 + $0x3a] sm:$0xff]
        %v1321 = vld [vmem:[%s329 + $0x42] sm:$0xff]
        %v1322 = vld [vmem:[%s329 + $0x4a] sm:$0xff]
        %v1323 = vld [vmem:[%s329 + $0x52] sm:$0xff]
        %v1324 = vld [vmem:[%s329 + $0x5a] sm:$0xff]
        %v1325 = vld [vmem:[%s329 + $0x62] sm:$0xff]
        %v1326 = vld [vmem:[%s329 + $0x6a] sm:$0xff]
        %v1327 = vld [vmem:[%s329 + $0x72] sm:$0xff]
        %v1328 = vld [vmem:[%s329 + $0x7a] sm:$0xff]
        %v1329 = vld [vmem:[%s329 + $0x82] sm:$0xff]
        %v1330 = vld [vmem:[%s329 + $0x8a] sm:$0xff]
        %v1331 = vld [vmem:[%s329 + $0x92] sm:$0xff]
        %v1332 = vld [vmem:[%s329 + $0x9a] sm:$0xff]
        %v1333 = vld [vmem:[%s329 + $0xa2] sm:$0xff]
        %v1334 = vld [vmem:[%s329 + $0xaa] sm:$0xff]
        %v1335 = vld [vmem:[%s329 + $0xb2] sm:$0xff]
        %v1336 = vld [vmem:[%s329 + $0xba] sm:$0xff]
        %v1337 = vld [vmem:[%s329 + $0xc2] sm:$0xff]
        %v1338 = vld [vmem:[%s329 + $0xca] sm:$0xf]
        %v1339 = vld [vmem:[%s1 + $0x5] sm:$0x1]
        %1341 = vset.pattern.permute.xlu0 0
        %1342 = vperm.xlu0 %1341, %v1315
        %v1343 = vpop.permute.xlu0 %1342
        %1346 = vset.pattern.permute.xlu0 0
        %1347 = vperm.xlu0 %1346, %v1316
        %v1348 = vpop.permute.xlu0 %1347
        %1351 = vset.pattern.permute.xlu0 0
        %1352 = vperm.xlu0 %1351, %v1317
        %v1353 = vpop.permute.xlu0 %1352
        %1356 = vset.pattern.permute.xlu0 0
        %1357 = vperm.xlu0 %1356, %v1318
        %v1358 = vpop.permute.xlu0 %1357
        %1361 = vset.pattern.permute.xlu0 0
        %1362 = vperm.xlu0 %1361, %v1319
        %v1363 = vpop.permute.xlu0 %1362
        %1366 = vset.pattern.permute.xlu0 0
        %1367 = vperm.xlu0 %1366, %v1320
        %v1368 = vpop.permute.xlu0 %1367
        %1371 = vset.pattern.permute.xlu0 0
        %1372 = vperm.xlu0 %1371, %v1321
        %v1373 = vpop.permute.xlu0 %1372
        %1376 = vset.pattern.permute.xlu0 0
        %1377 = vperm.xlu0 %1376, %v1322
        %v1378 = vpop.permute.xlu0 %1377
        %1381 = vset.pattern.permute.xlu0 0
        %1382 = vperm.xlu0 %1381, %v1323
        %v1383 = vpop.permute.xlu0 %1382
        %1386 = vset.pattern.permute.xlu0 0
        %1387 = vperm.xlu0 %1386, %v1324
        %v1388 = vpop.permute.xlu0 %1387
        %1391 = vset.pattern.permute.xlu0 0
        %1392 = vperm.xlu0 %1391, %v1325
        %v1393 = vpop.permute.xlu0 %1392
        %1396 = vset.pattern.permute.xlu0 0
        %1397 = vperm.xlu0 %1396, %v1326
        %v1398 = vpop.permute.xlu0 %1397
        %1401 = vset.pattern.permute.xlu0 0
        %1402 = vperm.xlu0 %1401, %v1327
        %v1403 = vpop.permute.xlu0 %1402
        %1406 = vset.pattern.permute.xlu0 0
        %1407 = vperm.xlu0 %1406, %v1328
        %v1408 = vpop.permute.xlu0 %1407
        %1411 = vset.pattern.permute.xlu0 0
        %1412 = vperm.xlu0 %1411, %v1329
        %v1413 = vpop.permute.xlu0 %1412
        %1416 = vset.pattern.permute.xlu0 0
        %1417 = vperm.xlu0 %1416, %v1330
        %v1418 = vpop.permute.xlu0 %1417
        %1421 = vset.pattern.permute.xlu0 0
        %1422 = vperm.xlu0 %1421, %v1331
        %v1423 = vpop.permute.xlu0 %1422
        %1426 = vset.pattern.permute.xlu0 0
        %1427 = vperm.xlu0 %1426, %v1332
        %v1428 = vpop.permute.xlu0 %1427
        %1431 = vset.pattern.permute.xlu0 0
        %1432 = vperm.xlu0 %1431, %v1333
        %v1433 = vpop.permute.xlu0 %1432
        %1436 = vset.pattern.permute.xlu0 0
        %1437 = vperm.xlu0 %1436, %v1334
        %v1438 = vpop.permute.xlu0 %1437
        %1441 = vset.pattern.permute.xlu0 0
        %1442 = vperm.xlu0 %1441, %v1335
        %v1443 = vpop.permute.xlu0 %1442
        %1446 = vset.pattern.permute.xlu0 0
        %1447 = vperm.xlu0 %1446, %v1336
        %v1448 = vpop.permute.xlu0 %1447
        %1451 = vset.pattern.permute.xlu0 0
        %1452 = vperm.xlu0 %1451, %v1337
        %v1453 = vpop.permute.xlu0 %1452
        %1456 = vset.pattern.permute.xlu0 0
        %1457 = vperm.xlu0 %1456, %v1338
        %v1458 = vpop.permute.xlu0 %1457
        %v1460 = vlaneseq
        %v1461 = vshrl.u32 %v1460, 7
        %v1462 = vsub.s32 0, %v1461
        %v1463 = vrot.slane %v1339, %v1462
        %v1464 = vmul.f32 %v1343, %v1463
        %v1465 = vmul.f32 %v1348, %v1463
        %v1466 = vmul.f32 %v1353, %v1463
        %v1467 = vmul.f32 %v1358, %v1463
        %v1468 = vmul.f32 %v1363, %v1463
        %v1469 = vmul.f32 %v1368, %v1463
        %v1470 = vmul.f32 %v1373, %v1463
        %v1471 = vmul.f32 %v1378, %v1463
        %v1472 = vmul.f32 %v1383, %v1463
        %v1473 = vmul.f32 %v1388, %v1463
        %v1474 = vmul.f32 %v1393, %v1463
        %v1475 = vmul.f32 %v1398, %v1463
        %v1476 = vmul.f32 %v1403, %v1463
        %v1477 = vmul.f32 %v1408, %v1463
        %v1478 = vmul.f32 %v1413, %v1463
        %v1479 = vmul.f32 %v1418, %v1463
        %v1480 = vmul.f32 %v1423, %v1463
        %v1481 = vmul.f32 %v1428, %v1463
        %v1482 = vmul.f32 %v1433, %v1463
        %v1483 = vmul.f32 %v1438, %v1463
        %v1484 = vmul.f32 %v1443, %v1463
        %v1485 = vmul.f32 %v1448, %v1463
        %v1486 = vmul.f32 %v1453, %v1463
        %v1487 = vmul.f32 %v1458, %v1463
        %v1488 = vadd.f32 %v1291, %v1464
        %v1489 = vadd.f32 %v1292, %v1465
        %v1490 = vadd.f32 %v1293, %v1466
        %v1491 = vadd.f32 %v1294, %v1467
        %v1492 = vadd.f32 %v1295, %v1468
        %v1493 = vadd.f32 %v1296, %v1469
        %v1494 = vadd.f32 %v1297, %v1470
        %v1495 = vadd.f32 %v1298, %v1471
        %v1496 = vadd.f32 %v1299, %v1472
        %v1497 = vadd.f32 %v1300, %v1473
        %v1498 = vadd.f32 %v1301, %v1474
        %v1499 = vadd.f32 %v1302, %v1475
        %v1500 = vadd.f32 %v1303, %v1476
        %v1501 = vadd.f32 %v1304, %v1477
        %v1502 = vadd.f32 %v1305, %v1478
        %v1503 = vadd.f32 %v1306, %v1479
        %v1504 = vadd.f32 %v1307, %v1480
        %v1505 = vadd.f32 %v1308, %v1481
        %v1506 = vadd.f32 %v1309, %v1482
        %v1507 = vadd.f32 %v1310, %v1483
        %v1508 = vadd.f32 %v1311, %v1484
        %v1509 = vadd.f32 %v1312, %v1485
        %v1510 = vadd.f32 %v1313, %v1486
        %v1511 = vadd.f32 %v1314, %v1487
        %v1512 = vld [vmem:[%s329 + $0x20] sm:$0xff]
        %v1513 = vld [vmem:[%s329 + $0x28] sm:$0xff]
        %v1514 = vld [vmem:[%s329 + $0x30] sm:$0xff]
        %v1515 = vld [vmem:[%s329 + $0x38] sm:$0xff]
        %v1516 = vld [vmem:[%s329 + $0x40] sm:$0xff]
        %v1517 = vld [vmem:[%s329 + $0x48] sm:$0xff]
        %v1518 = vld [vmem:[%s329 + $0x50] sm:$0xff]
        %v1519 = vld [vmem:[%s329 + $0x58] sm:$0xff]
        %v1520 = vld [vmem:[%s329 + $0x60] sm:$0xff]
        %v1521 = vld [vmem:[%s329 + $0x68] sm:$0xff]
        %v1522 = vld [vmem:[%s329 + $0x70] sm:$0xff]
        %v1523 = vld [vmem:[%s329 + $0x78] sm:$0xff]
        %v1524 = vld [vmem:[%s329 + $0x80] sm:$0xff]
        %v1525 = vld [vmem:[%s329 + $0x88] sm:$0xff]
        %v1526 = vld [vmem:[%s329 + $0x90] sm:$0xff]
        %v1527 = vld [vmem:[%s329 + $0x98] sm:$0xff]
        %v1528 = vld [vmem:[%s329 + $0xa0] sm:$0xff]
        %v1529 = vld [vmem:[%s329 + $0xa8] sm:$0xff]
        %v1530 = vld [vmem:[%s329 + $0xb0] sm:$0xff]
        %v1531 = vld [vmem:[%s329 + $0xb8] sm:$0xff]
        %v1532 = vld [vmem:[%s329 + $0xc0] sm:$0xff]
        %v1533 = vld [vmem:[%s329 + $0xc8] sm:$0xff]
        %v1534 = vld [vmem:[%s329 + $0xd0] sm:$0xff]
        %v1535 = vld [vmem:[%s329 + $0xd8] sm:$0xf]
        %v1536 = vld [vmem:[%s1 + $0x6] sm:$0x1]
        %1538 = vset.pattern.permute.xlu0 0
        %1539 = vperm.xlu0 %1538, %v1512
        %v1540 = vpop.permute.xlu0 %1539
        %1543 = vset.pattern.permute.xlu0 0
        %1544 = vperm.xlu0 %1543, %v1513
        %v1545 = vpop.permute.xlu0 %1544
        %1548 = vset.pattern.permute.xlu0 0
        %1549 = vperm.xlu0 %1548, %v1514
        %v1550 = vpop.permute.xlu0 %1549
        %1553 = vset.pattern.permute.xlu0 0
        %1554 = vperm.xlu0 %1553, %v1515
        %v1555 = vpop.permute.xlu0 %1554
        %1558 = vset.pattern.permute.xlu0 0
        %1559 = vperm.xlu0 %1558, %v1516
        %v1560 = vpop.permute.xlu0 %1559
        %1563 = vset.pattern.permute.xlu0 0
        %1564 = vperm.xlu0 %1563, %v1517
        %v1565 = vpop.permute.xlu0 %1564
        %1568 = vset.pattern.permute.xlu0 0
        %1569 = vperm.xlu0 %1568, %v1518
        %v1570 = vpop.permute.xlu0 %1569
        %1573 = vset.pattern.permute.xlu0 0
        %1574 = vperm.xlu0 %1573, %v1519
        %v1575 = vpop.permute.xlu0 %1574
        %1578 = vset.pattern.permute.xlu0 0
        %1579 = vperm.xlu0 %1578, %v1520
        %v1580 = vpop.permute.xlu0 %1579
        %1583 = vset.pattern.permute.xlu0 0
        %1584 = vperm.xlu0 %1583, %v1521
        %v1585 = vpop.permute.xlu0 %1584
        %1588 = vset.pattern.permute.xlu0 0
        %1589 = vperm.xlu0 %1588, %v1522
        %v1590 = vpop.permute.xlu0 %1589
        %1593 = vset.pattern.permute.xlu0 0
        %1594 = vperm.xlu0 %1593, %v1523
        %v1595 = vpop.permute.xlu0 %1594
        %1598 = vset.pattern.permute.xlu0 0
        %1599 = vperm.xlu0 %1598, %v1524
        %v1600 = vpop.permute.xlu0 %1599
        %1603 = vset.pattern.permute.xlu0 0
        %1604 = vperm.xlu0 %1603, %v1525
        %v1605 = vpop.permute.xlu0 %1604
        %1608 = vset.pattern.permute.xlu0 0
        %1609 = vperm.xlu0 %1608, %v1526
        %v1610 = vpop.permute.xlu0 %1609
        %1613 = vset.pattern.permute.xlu0 0
        %1614 = vperm.xlu0 %1613, %v1527
        %v1615 = vpop.permute.xlu0 %1614
        %1618 = vset.pattern.permute.xlu0 0
        %1619 = vperm.xlu0 %1618, %v1528
        %v1620 = vpop.permute.xlu0 %1619
        %1623 = vset.pattern.permute.xlu0 0
        %1624 = vperm.xlu0 %1623, %v1529
        %v1625 = vpop.permute.xlu0 %1624
        %1628 = vset.pattern.permute.xlu0 0
        %1629 = vperm.xlu0 %1628, %v1530
        %v1630 = vpop.permute.xlu0 %1629
        %1633 = vset.pattern.permute.xlu0 0
        %1634 = vperm.xlu0 %1633, %v1531
        %v1635 = vpop.permute.xlu0 %1634
        %1638 = vset.pattern.permute.xlu0 0
        %1639 = vperm.xlu0 %1638, %v1532
        %v1640 = vpop.permute.xlu0 %1639
        %1643 = vset.pattern.permute.xlu0 0
        %1644 = vperm.xlu0 %1643, %v1533
        %v1645 = vpop.permute.xlu0 %1644
        %1648 = vset.pattern.permute.xlu0 0
        %1649 = vperm.xlu0 %1648, %v1534
        %v1650 = vpop.permute.xlu0 %1649
        %1653 = vset.pattern.permute.xlu0 0
        %1654 = vperm.xlu0 %1653, %v1535
        %v1655 = vpop.permute.xlu0 %1654
        %v1657 = vlaneseq
        %v1658 = vshrl.u32 %v1657, 7
        %v1659 = vsub.s32 0, %v1658
        %v1660 = vrot.slane %v1536, %v1659
        %v1661 = vmul.f32 %v1540, %v1660
        %v1662 = vmul.f32 %v1545, %v1660
        %v1663 = vmul.f32 %v1550, %v1660
        %v1664 = vmul.f32 %v1555, %v1660
        %v1665 = vmul.f32 %v1560, %v1660
        %v1666 = vmul.f32 %v1565, %v1660
        %v1667 = vmul.f32 %v1570, %v1660
        %v1668 = vmul.f32 %v1575, %v1660
        %v1669 = vmul.f32 %v1580, %v1660
        %v1670 = vmul.f32 %v1585, %v1660
        %v1671 = vmul.f32 %v1590, %v1660
        %v1672 = vmul.f32 %v1595, %v1660
        %v1673 = vmul.f32 %v1600, %v1660
        %v1674 = vmul.f32 %v1605, %v1660
        %v1675 = vmul.f32 %v1610, %v1660
        %v1676 = vmul.f32 %v1615, %v1660
        %v1677 = vmul.f32 %v1620, %v1660
        %v1678 = vmul.f32 %v1625, %v1660
        %v1679 = vmul.f32 %v1630, %v1660
        %v1680 = vmul.f32 %v1635, %v1660
        %v1681 = vmul.f32 %v1640, %v1660
        %v1682 = vmul.f32 %v1645, %v1660
        %v1683 = vmul.f32 %v1650, %v1660
        %v1684 = vmul.f32 %v1655, %v1660
        %v1685 = vadd.f32 %v1488, %v1661
        %v1686 = vadd.f32 %v1489, %v1662
        %v1687 = vadd.f32 %v1490, %v1663
        %v1688 = vadd.f32 %v1491, %v1664
        %v1689 = vadd.f32 %v1492, %v1665
        %v1690 = vadd.f32 %v1493, %v1666
        %v1691 = vadd.f32 %v1494, %v1667
        %v1692 = vadd.f32 %v1495, %v1668
        %v1693 = vadd.f32 %v1496, %v1669
        %v1694 = vadd.f32 %v1497, %v1670
        %v1695 = vadd.f32 %v1498, %v1671
        %v1696 = vadd.f32 %v1499, %v1672
        %v1697 = vadd.f32 %v1500, %v1673
        %v1698 = vadd.f32 %v1501, %v1674
        %v1699 = vadd.f32 %v1502, %v1675
        %v1700 = vadd.f32 %v1503, %v1676
        %v1701 = vadd.f32 %v1504, %v1677
        %v1702 = vadd.f32 %v1505, %v1678
        %v1703 = vadd.f32 %v1506, %v1679
        %v1704 = vadd.f32 %v1507, %v1680
        %v1705 = vadd.f32 %v1508, %v1681
        %v1706 = vadd.f32 %v1509, %v1682
        %v1707 = vadd.f32 %v1510, %v1683
        %v1708 = vadd.f32 %v1511, %v1684
        %v1709 = vld [vmem:[%s329 + $0x21] sm:$0xff]
        %v1710 = vld [vmem:[%s329 + $0x29] sm:$0xff]
        %v1711 = vld [vmem:[%s329 + $0x31] sm:$0xff]
        %v1712 = vld [vmem:[%s329 + $0x39] sm:$0xff]
        %v1713 = vld [vmem:[%s329 + $0x41] sm:$0xff]
        %v1714 = vld [vmem:[%s329 + $0x49] sm:$0xff]
        %v1715 = vld [vmem:[%s329 + $0x51] sm:$0xff]
        %v1716 = vld [vmem:[%s329 + $0x59] sm:$0xff]
        %v1717 = vld [vmem:[%s329 + $0x61] sm:$0xff]
        %v1718 = vld [vmem:[%s329 + $0x69] sm:$0xff]
        %v1719 = vld [vmem:[%s329 + $0x71] sm:$0xff]
        %v1720 = vld [vmem:[%s329 + $0x79] sm:$0xff]
        %v1721 = vld [vmem:[%s329 + $0x81] sm:$0xff]
        %v1722 = vld [vmem:[%s329 + $0x89] sm:$0xff]
        %v1723 = vld [vmem:[%s329 + $0x91] sm:$0xff]
        %v1724 = vld [vmem:[%s329 + $0x99] sm:$0xff]
        %v1725 = vld [vmem:[%s329 + $0xa1] sm:$0xff]
        %v1726 = vld [vmem:[%s329 + $0xa9] sm:$0xff]
        %v1727 = vld [vmem:[%s329 + $0xb1] sm:$0xff]
        %v1728 = vld [vmem:[%s329 + $0xb9] sm:$0xff]
        %v1729 = vld [vmem:[%s329 + $0xc1] sm:$0xff]
        %v1730 = vld [vmem:[%s329 + $0xc9] sm:$0xff]
        %v1731 = vld [vmem:[%s329 + $0xd1] sm:$0xff]
        %v1732 = vld [vmem:[%s329 + $0xd9] sm:$0xf]
        %v1733 = vld [vmem:[%s1 + $0x7] sm:$0x1]
        %1735 = vset.pattern.permute.xlu0 0
        %1736 = vperm.xlu0 %1735, %v1709
        %v1737 = vpop.permute.xlu0 %1736
        %1740 = vset.pattern.permute.xlu0 0
        %1741 = vperm.xlu0 %1740, %v1710
        %v1742 = vpop.permute.xlu0 %1741
        %1745 = vset.pattern.permute.xlu0 0
        %1746 = vperm.xlu0 %1745, %v1711
        %v1747 = vpop.permute.xlu0 %1746
        %1750 = vset.pattern.permute.xlu0 0
        %1751 = vperm.xlu0 %1750, %v1712
        %v1752 = vpop.permute.xlu0 %1751
        %1755 = vset.pattern.permute.xlu0 0
        %1756 = vperm.xlu0 %1755, %v1713
        %v1757 = vpop.permute.xlu0 %1756
        %1760 = vset.pattern.permute.xlu0 0
        %1761 = vperm.xlu0 %1760, %v1714
        %v1762 = vpop.permute.xlu0 %1761
        %1765 = vset.pattern.permute.xlu0 0
        %1766 = vperm.xlu0 %1765, %v1715
        %v1767 = vpop.permute.xlu0 %1766
        %1770 = vset.pattern.permute.xlu0 0
        %1771 = vperm.xlu0 %1770, %v1716
        %v1772 = vpop.permute.xlu0 %1771
        %1775 = vset.pattern.permute.xlu0 0
        %1776 = vperm.xlu0 %1775, %v1717
        %v1777 = vpop.permute.xlu0 %1776
        %1780 = vset.pattern.permute.xlu0 0
        %1781 = vperm.xlu0 %1780, %v1718
        %v1782 = vpop.permute.xlu0 %1781
        %1785 = vset.pattern.permute.xlu0 0
        %1786 = vperm.xlu0 %1785, %v1719
        %v1787 = vpop.permute.xlu0 %1786
        %1790 = vset.pattern.permute.xlu0 0
        %1791 = vperm.xlu0 %1790, %v1720
        %v1792 = vpop.permute.xlu0 %1791
        %1795 = vset.pattern.permute.xlu0 0
        %1796 = vperm.xlu0 %1795, %v1721
        %v1797 = vpop.permute.xlu0 %1796
        %1800 = vset.pattern.permute.xlu0 0
        %1801 = vperm.xlu0 %1800, %v1722
        %v1802 = vpop.permute.xlu0 %1801
        %1805 = vset.pattern.permute.xlu0 0
        %1806 = vperm.xlu0 %1805, %v1723
        %v1807 = vpop.permute.xlu0 %1806
        %1810 = vset.pattern.permute.xlu0 0
        %1811 = vperm.xlu0 %1810, %v1724
        %v1812 = vpop.permute.xlu0 %1811
        %1815 = vset.pattern.permute.xlu0 0
        %1816 = vperm.xlu0 %1815, %v1725
        %v1817 = vpop.permute.xlu0 %1816
        %1820 = vset.pattern.permute.xlu0 0
        %1821 = vperm.xlu0 %1820, %v1726
        %v1822 = vpop.permute.xlu0 %1821
        %1825 = vset.pattern.permute.xlu0 0
        %1826 = vperm.xlu0 %1825, %v1727
        %v1827 = vpop.permute.xlu0 %1826
        %1830 = vset.pattern.permute.xlu0 0
        %1831 = vperm.xlu0 %1830, %v1728
        %v1832 = vpop.permute.xlu0 %1831
        %1835 = vset.pattern.permute.xlu0 0
        %1836 = vperm.xlu0 %1835, %v1729
        %v1837 = vpop.permute.xlu0 %1836
        %1840 = vset.pattern.permute.xlu0 0
        %1841 = vperm.xlu0 %1840, %v1730
        %v1842 = vpop.permute.xlu0 %1841
        %1845 = vset.pattern.permute.xlu0 0
        %1846 = vperm.xlu0 %1845, %v1731
        %v1847 = vpop.permute.xlu0 %1846
        %1850 = vset.pattern.permute.xlu0 0
        %1851 = vperm.xlu0 %1850, %v1732
        %v1852 = vpop.permute.xlu0 %1851
        %v1854 = vlaneseq
        %v1855 = vshrl.u32 %v1854, 7
        %v1856 = vsub.s32 0, %v1855
        %v1857 = vrot.slane %v1733, %v1856
        %v1858 = vmul.f32 %v1737, %v1857
        %v1859 = vmul.f32 %v1742, %v1857
        %v1860 = vmul.f32 %v1747, %v1857
        %v1861 = vmul.f32 %v1752, %v1857
        %v1862 = vmul.f32 %v1757, %v1857
        %v1863 = vmul.f32 %v1762, %v1857
        %v1864 = vmul.f32 %v1767, %v1857
        %v1865 = vmul.f32 %v1772, %v1857
        %v1866 = vmul.f32 %v1777, %v1857
        %v1867 = vmul.f32 %v1782, %v1857
        %v1868 = vmul.f32 %v1787, %v1857
        %v1869 = vmul.f32 %v1792, %v1857
        %v1870 = vmul.f32 %v1797, %v1857
        %v1871 = vmul.f32 %v1802, %v1857
        %v1872 = vmul.f32 %v1807, %v1857
        %v1873 = vmul.f32 %v1812, %v1857
        %v1874 = vmul.f32 %v1817, %v1857
        %v1875 = vmul.f32 %v1822, %v1857
        %v1876 = vmul.f32 %v1827, %v1857
        %v1877 = vmul.f32 %v1832, %v1857
        %v1878 = vmul.f32 %v1837, %v1857
        %v1879 = vmul.f32 %v1842, %v1857
        %v1880 = vmul.f32 %v1847, %v1857
        %v1881 = vmul.f32 %v1852, %v1857
        %v1882 = vadd.f32 %v1685, %v1858
        %v1883 = vadd.f32 %v1686, %v1859
        %v1884 = vadd.f32 %v1687, %v1860
        %v1885 = vadd.f32 %v1688, %v1861
        %v1886 = vadd.f32 %v1689, %v1862
        %v1887 = vadd.f32 %v1690, %v1863
        %v1888 = vadd.f32 %v1691, %v1864
        %v1889 = vadd.f32 %v1692, %v1865
        %v1890 = vadd.f32 %v1693, %v1866
        %v1891 = vadd.f32 %v1694, %v1867
        %v1892 = vadd.f32 %v1695, %v1868
        %v1893 = vadd.f32 %v1696, %v1869
        %v1894 = vadd.f32 %v1697, %v1870
        %v1895 = vadd.f32 %v1698, %v1871
        %v1896 = vadd.f32 %v1699, %v1872
        %v1897 = vadd.f32 %v1700, %v1873
        %v1898 = vadd.f32 %v1701, %v1874
        %v1899 = vadd.f32 %v1702, %v1875
        %v1900 = vadd.f32 %v1703, %v1876
        %v1901 = vadd.f32 %v1704, %v1877
        %v1902 = vadd.f32 %v1705, %v1878
        %v1903 = vadd.f32 %v1706, %v1879
        %v1904 = vadd.f32 %v1707, %v1880
        %v1905 = vadd.f32 %v1708, %v1881
        %v1906 = vld [vmem:[%s329 + $0x22] sm:$0xff]
        %v1907 = vld [vmem:[%s329 + $0x2a] sm:$0xff]
        %v1908 = vld [vmem:[%s329 + $0x32] sm:$0xff]
        %v1909 = vld [vmem:[%s329 + $0x3a] sm:$0xff]
        %v1910 = vld [vmem:[%s329 + $0x42] sm:$0xff]
        %v1911 = vld [vmem:[%s329 + $0x4a] sm:$0xff]
        %v1912 = vld [vmem:[%s329 + $0x52] sm:$0xff]
        %v1913 = vld [vmem:[%s329 + $0x5a] sm:$0xff]
        %v1914 = vld [vmem:[%s329 + $0x62] sm:$0xff]
        %v1915 = vld [vmem:[%s329 + $0x6a] sm:$0xff]
        %v1916 = vld [vmem:[%s329 + $0x72] sm:$0xff]
        %v1917 = vld [vmem:[%s329 + $0x7a] sm:$0xff]
        %v1918 = vld [vmem:[%s329 + $0x82] sm:$0xff]
        %v1919 = vld [vmem:[%s329 + $0x8a] sm:$0xff]
        %v1920 = vld [vmem:[%s329 + $0x92] sm:$0xff]
        %v1921 = vld [vmem:[%s329 + $0x9a] sm:$0xff]
        %v1922 = vld [vmem:[%s329 + $0xa2] sm:$0xff]
        %v1923 = vld [vmem:[%s329 + $0xaa] sm:$0xff]
        %v1924 = vld [vmem:[%s329 + $0xb2] sm:$0xff]
        %v1925 = vld [vmem:[%s329 + $0xba] sm:$0xff]
        %v1926 = vld [vmem:[%s329 + $0xc2] sm:$0xff]
        %v1927 = vld [vmem:[%s329 + $0xca] sm:$0xff]
        %v1928 = vld [vmem:[%s329 + $0xd2] sm:$0xff]
        %v1929 = vld [vmem:[%s329 + $0xda] sm:$0xf]
        %v1930 = vld [vmem:[%s1 + $0x8] sm:$0x1]
        %1932 = vset.pattern.permute.xlu0 0
        %1933 = vperm.xlu0 %1932, %v1906
        %v1934 = vpop.permute.xlu0 %1933
        %1937 = vset.pattern.permute.xlu0 0
        %1938 = vperm.xlu0 %1937, %v1907
        %v1939 = vpop.permute.xlu0 %1938
        %1942 = vset.pattern.permute.xlu0 0
        %1943 = vperm.xlu0 %1942, %v1908
        %v1944 = vpop.permute.xlu0 %1943
        %1947 = vset.pattern.permute.xlu0 0
        %1948 = vperm.xlu0 %1947, %v1909
        %v1949 = vpop.permute.xlu0 %1948
        %1952 = vset.pattern.permute.xlu0 0
        %1953 = vperm.xlu0 %1952, %v1910
        %v1954 = vpop.permute.xlu0 %1953
        %1957 = vset.pattern.permute.xlu0 0
        %1958 = vperm.xlu0 %1957, %v1911
        %v1959 = vpop.permute.xlu0 %1958
        %1962 = vset.pattern.permute.xlu0 0
        %1963 = vperm.xlu0 %1962, %v1912
        %v1964 = vpop.permute.xlu0 %1963
        %1967 = vset.pattern.permute.xlu0 0
        %1968 = vperm.xlu0 %1967, %v1913
        %v1969 = vpop.permute.xlu0 %1968
        %1972 = vset.pattern.permute.xlu0 0
        %1973 = vperm.xlu0 %1972, %v1914
        %v1974 = vpop.permute.xlu0 %1973
        %1977 = vset.pattern.permute.xlu0 0
        %1978 = vperm.xlu0 %1977, %v1915
        %v1979 = vpop.permute.xlu0 %1978
        %1982 = vset.pattern.permute.xlu0 0
        %1983 = vperm.xlu0 %1982, %v1916
        %v1984 = vpop.permute.xlu0 %1983
        %1987 = vset.pattern.permute.xlu0 0
        %1988 = vperm.xlu0 %1987, %v1917
        %v1989 = vpop.permute.xlu0 %1988
        %1992 = vset.pattern.permute.xlu0 0
        %1993 = vperm.xlu0 %1992, %v1918
        %v1994 = vpop.permute.xlu0 %1993
        %1997 = vset.pattern.permute.xlu0 0
        %1998 = vperm.xlu0 %1997, %v1919
        %v1999 = vpop.permute.xlu0 %1998
        %2002 = vset.pattern.permute.xlu0 0
        %2003 = vperm.xlu0 %2002, %v1920
        %v2004 = vpop.permute.xlu0 %2003
        %2007 = vset.pattern.permute.xlu0 0
        %2008 = vperm.xlu0 %2007, %v1921
        %v2009 = vpop.permute.xlu0 %2008
        %2012 = vset.pattern.permute.xlu0 0
        %2013 = vperm.xlu0 %2012, %v1922
        %v2014 = vpop.permute.xlu0 %2013
        %2017 = vset.pattern.permute.xlu0 0
        %2018 = vperm.xlu0 %2017, %v1923
        %v2019 = vpop.permute.xlu0 %2018
        %2022 = vset.pattern.permute.xlu0 0
        %2023 = vperm.xlu0 %2022, %v1924
        %v2024 = vpop.permute.xlu0 %2023
        %2027 = vset.pattern.permute.xlu0 0
        %2028 = vperm.xlu0 %2027, %v1925
        %v2029 = vpop.permute.xlu0 %2028
        %2032 = vset.pattern.permute.xlu0 0
        %2033 = vperm.xlu0 %2032, %v1926
        %v2034 = vpop.permute.xlu0 %2033
        %2037 = vset.pattern.permute.xlu0 0
        %2038 = vperm.xlu0 %2037, %v1927
        %v2039 = vpop.permute.xlu0 %2038
        %2042 = vset.pattern.permute.xlu0 0
        %2043 = vperm.xlu0 %2042, %v1928
        %v2044 = vpop.permute.xlu0 %2043
        %2047 = vset.pattern.permute.xlu0 0
        %2048 = vperm.xlu0 %2047, %v1929
        %v2049 = vpop.permute.xlu0 %2048
        %v2051 = vlaneseq
        %v2052 = vshrl.u32 %v2051, 7
        %v2053 = vsub.s32 0, %v2052
        %v2054 = vrot.slane %v1930, %v2053
        %v2055 = vmul.f32 %v1934, %v2054
        %v2056 = vmul.f32 %v1939, %v2054
        %v2057 = vmul.f32 %v1944, %v2054
        %v2058 = vmul.f32 %v1949, %v2054
        %v2059 = vmul.f32 %v1954, %v2054
        %v2060 = vmul.f32 %v1959, %v2054
        %v2061 = vmul.f32 %v1964, %v2054
        %v2062 = vmul.f32 %v1969, %v2054
        %v2063 = vmul.f32 %v1974, %v2054
        %v2064 = vmul.f32 %v1979, %v2054
        %v2065 = vmul.f32 %v1984, %v2054
        %v2066 = vmul.f32 %v1989, %v2054
        %v2067 = vmul.f32 %v1994, %v2054
        %v2068 = vmul.f32 %v1999, %v2054
        %v2069 = vmul.f32 %v2004, %v2054
        %v2070 = vmul.f32 %v2009, %v2054
        %v2071 = vmul.f32 %v2014, %v2054
        %v2072 = vmul.f32 %v2019, %v2054
        %v2073 = vmul.f32 %v2024, %v2054
        %v2074 = vmul.f32 %v2029, %v2054
        %v2075 = vmul.f32 %v2034, %v2054
        %v2076 = vmul.f32 %v2039, %v2054
        %v2077 = vmul.f32 %v2044, %v2054
        %v2078 = vmul.f32 %v2049, %v2054
        %v2079 = vadd.f32 %v1882, %v2055
        %v2080 = vadd.f32 %v1883, %v2056
        %v2081 = vadd.f32 %v1884, %v2057
        %v2082 = vadd.f32 %v1885, %v2058
        %v2083 = vadd.f32 %v1886, %v2059
        %v2084 = vadd.f32 %v1887, %v2060
        %v2085 = vadd.f32 %v1888, %v2061
        %v2086 = vadd.f32 %v1889, %v2062
        %v2087 = vadd.f32 %v1890, %v2063
        %v2088 = vadd.f32 %v1891, %v2064
        %v2089 = vadd.f32 %v1892, %v2065
        %v2090 = vadd.f32 %v1893, %v2066
        %v2091 = vadd.f32 %v1894, %v2067
        %v2092 = vadd.f32 %v1895, %v2068
        %v2093 = vadd.f32 %v1896, %v2069
        %v2094 = vadd.f32 %v1897, %v2070
        %v2095 = vadd.f32 %v1898, %v2071
        %v2096 = vadd.f32 %v1899, %v2072
        %v2097 = vadd.f32 %v1900, %v2073
        %v2098 = vadd.f32 %v1901, %v2074
        %v2099 = vadd.f32 %v1902, %v2075
        %v2100 = vadd.f32 %v1903, %v2076
        %v2101 = vadd.f32 %v1904, %v2077
        %v2102 = vadd.f32 %v1905, %v2078
        %v2103 = vld [vmem:[%s2] sm:$0x1]
        %v2105 = vlaneseq
        %v2106 = vshrl.u32 %v2105, 7
        %v2107 = vsub.s32 0, %v2106
        %v2108 = vrot.slane %v2103, %v2107
        %v2110 = vadd.f32 %v2079, %v2108
        %v2111 = vadd.f32 %v2080, %v2108
        %v2112 = vadd.f32 %v2081, %v2108
        %v2113 = vadd.f32 %v2082, %v2108
        %v2114 = vadd.f32 %v2083, %v2108
        %v2115 = vadd.f32 %v2084, %v2108
        %v2116 = vadd.f32 %v2085, %v2108
        %v2117 = vadd.f32 %v2086, %v2108
        %v2118 = vadd.f32 %v2087, %v2108
        %v2119 = vadd.f32 %v2088, %v2108
        %v2120 = vadd.f32 %v2089, %v2108
        %v2121 = vadd.f32 %v2090, %v2108
        %v2122 = vadd.f32 %v2091, %v2108
        %v2123 = vadd.f32 %v2092, %v2108
        %v2124 = vadd.f32 %v2093, %v2108
        %v2125 = vadd.f32 %v2094, %v2108
        %v2126 = vadd.f32 %v2095, %v2108
        %v2127 = vadd.f32 %v2096, %v2108
        %v2128 = vadd.f32 %v2097, %v2108
        %v2129 = vadd.f32 %v2098, %v2108
        %v2130 = vadd.f32 %v2099, %v2108
        %v2131 = vadd.f32 %v2100, %v2108
        %v2132 = vadd.f32 %v2101, %v2108
        %v2133 = vadd.f32 %v2102, %v2108
        %v2134 = vmax.f32 %v2110, 0.0
        %v2135 = vmax.f32 %v2111, 0.0
        %v2136 = vmax.f32 %v2112, 0.0
        %v2137 = vmax.f32 %v2113, 0.0
        %v2138 = vmax.f32 %v2114, 0.0
        %v2139 = vmax.f32 %v2115, 0.0
        %v2140 = vmax.f32 %v2116, 0.0
        %v2141 = vmax.f32 %v2117, 0.0
        %v2142 = vmax.f32 %v2118, 0.0
        %v2143 = vmax.f32 %v2119, 0.0
        %v2144 = vmax.f32 %v2120, 0.0
        %v2145 = vmax.f32 %v2121, 0.0
        %v2146 = vmax.f32 %v2122, 0.0
        %v2147 = vmax.f32 %v2123, 0.0
        %v2148 = vmax.f32 %v2124, 0.0
        %v2149 = vmax.f32 %v2125, 0.0
        %v2150 = vmax.f32 %v2126, 0.0
        %v2151 = vmax.f32 %v2127, 0.0
        %v2152 = vmax.f32 %v2128, 0.0
        %v2153 = vmax.f32 %v2129, 0.0
        %v2154 = vmax.f32 %v2130, 0.0
        %v2155 = vmax.f32 %v2131, 0.0
        %v2156 = vmax.f32 %v2132, 0.0
        %v2157 = vmax.f32 %v2133, 0.0
        %vm2158 = vcmask 130048
        %2159 = vst.msk [vmem:[#allocation2] sm:$0xff] %vm2158, %v2134
        %2160 = vst.msk [vmem:[#allocation2 + $0x8] sm:$0xff] %vm2158, %v2135
        %2161 = vst.msk [vmem:[#allocation2 + $0x10] sm:$0xff] %vm2158, %v2136
        %2162 = vst.msk [vmem:[#allocation2 + $0x18] sm:$0xff] %vm2158, %v2137
        %2163 = vst.msk [vmem:[#allocation2 + $0x20] sm:$0xff] %vm2158, %v2138
        %2164 = vst.msk [vmem:[#allocation2 + $0x28] sm:$0xff] %vm2158, %v2139
        %2165 = vst.msk [vmem:[#allocation2 + $0x30] sm:$0xff] %vm2158, %v2140
        %2166 = vst.msk [vmem:[#allocation2 + $0x38] sm:$0xff] %vm2158, %v2141
        %2167 = vst.msk [vmem:[#allocation2 + $0x40] sm:$0xff] %vm2158, %v2142
        %2168 = vst.msk [vmem:[#allocation2 + $0x48] sm:$0xff] %vm2158, %v2143
        %2169 = vst.msk [vmem:[#allocation2 + $0x50] sm:$0xff] %vm2158, %v2144
        %2170 = vst.msk [vmem:[#allocation2 + $0x58] sm:$0xff] %vm2158, %v2145
        %2171 = vst.msk [vmem:[#allocation2 + $0x60] sm:$0xff] %vm2158, %v2146
        %2172 = vst.msk [vmem:[#allocation2 + $0x68] sm:$0xff] %vm2158, %v2147
        %2173 = vst.msk [vmem:[#allocation2 + $0x70] sm:$0xff] %vm2158, %v2148
        %2174 = vst.msk [vmem:[#allocation2 + $0x78] sm:$0xff] %vm2158, %v2149
        %2175 = vst.msk [vmem:[#allocation2 + $0x80] sm:$0xff] %vm2158, %v2150
        %2176 = vst.msk [vmem:[#allocation2 + $0x88] sm:$0xff] %vm2158, %v2151
        %2177 = vst.msk [vmem:[#allocation2 + $0x90] sm:$0xff] %vm2158, %v2152
        %2178 = vst.msk [vmem:[#allocation2 + $0x98] sm:$0xff] %vm2158, %v2153
        %2179 = vst.msk [vmem:[#allocation2 + $0xa0] sm:$0xff] %vm2158, %v2154
        %2180 = vst.msk [vmem:[#allocation2 + $0xa8] sm:$0xff] %vm2158, %v2155
        %2181 = vst.msk [vmem:[#allocation2 + $0xb0] sm:$0xff] %vm2158, %v2156
        %vm2182 = vcmask 125952
        %2183 = vst.msk [vmem:[#allocation2 + $0xb8] sm:$0xf] %vm2182, %v2157
        %v2184 = vld [vmem:[#allocation2] sm:$0xff]
        %v2185 = vld [vmem:[#allocation2 + $0x8] sm:$0xff]
        %v2186 = vld [vmem:[#allocation2 + $0x10] sm:$0xff]
        %v2187 = vld [vmem:[#allocation2 + $0x18] sm:$0xff]
        %v2188 = vld [vmem:[#allocation2 + $0x20] sm:$0xff]
        %v2189 = vld [vmem:[#allocation2 + $0x28] sm:$0xff]
        %v2190 = vld [vmem:[#allocation2 + $0x30] sm:$0xff]
        %v2191 = vld [vmem:[#allocation2 + $0x38] sm:$0xff]
        %v2192 = vld [vmem:[#allocation2 + $0x40] sm:$0xff]
        %v2193 = vld [vmem:[#allocation2 + $0x48] sm:$0xff]
        %v2194 = vld [vmem:[#allocation2 + $0x50] sm:$0xff]
        %v2195 = vld [vmem:[#allocation2 + $0x58] sm:$0xff]
        %v2196 = vld [vmem:[#allocation2 + $0x60] sm:$0xff]
        %v2197 = vld [vmem:[#allocation2 + $0x68] sm:$0xff]
        %v2198 = vld [vmem:[#allocation2 + $0x70] sm:$0xff]
        %v2199 = vld [vmem:[#allocation2 + $0x78] sm:$0xff]
        %v2200 = vld [vmem:[#allocation2 + $0x80] sm:$0xff]
        %v2201 = vld [vmem:[#allocation2 + $0x88] sm:$0xff]
        %v2202 = vld [vmem:[#allocation2 + $0x90] sm:$0xff]
        %v2203 = vld [vmem:[#allocation2 + $0x98] sm:$0xff]
        %v2204 = vld [vmem:[#allocation2 + $0xa0] sm:$0xff]
        %v2205 = vld [vmem:[#allocation2 + $0xa8] sm:$0xff]
        %v2206 = vld [vmem:[#allocation2 + $0xb0] sm:$0xff]
        %v2207 = vld [vmem:[#allocation2 + $0xb8] sm:$0x3]
        %v2208 = vld [vmem:[#allocation2 + $0x1] sm:$0xff]
        %v2209 = vld [vmem:[#allocation2 + $0x9] sm:$0xff]
        %v2210 = vld [vmem:[#allocation2 + $0x11] sm:$0xff]
        %v2211 = vld [vmem:[#allocation2 + $0x19] sm:$0xff]
        %v2212 = vld [vmem:[#allocation2 + $0x21] sm:$0xff]
        %v2213 = vld [vmem:[#allocation2 + $0x29] sm:$0xff]
        %v2214 = vld [vmem:[#allocation2 + $0x31] sm:$0xff]
        %v2215 = vld [vmem:[#allocation2 + $0x39] sm:$0xff]
        %v2216 = vld [vmem:[#allocation2 + $0x41] sm:$0xff]
        %v2217 = vld [vmem:[#allocation2 + $0x49] sm:$0xff]
        %v2218 = vld [vmem:[#allocation2 + $0x51] sm:$0xff]
        %v2219 = vld [vmem:[#allocation2 + $0x59] sm:$0xff]
        %v2220 = vld [vmem:[#allocation2 + $0x61] sm:$0xff]
        %v2221 = vld [vmem:[#allocation2 + $0x69] sm:$0xff]
        %v2222 = vld [vmem:[#allocation2 + $0x71] sm:$0xff]
        %v2223 = vld [vmem:[#allocation2 + $0x79] sm:$0xff]
        %v2224 = vld [vmem:[#allocation2 + $0x81] sm:$0xff]
        %v2225 = vld [vmem:[#allocation2 + $0x89] sm:$0xff]
        %v2226 = vld [vmem:[#allocation2 + $0x91] sm:$0xff]
        %v2227 = vld [vmem:[#allocation2 + $0x99] sm:$0xff]
        %v2228 = vld [vmem:[#allocation2 + $0xa1] sm:$0xff]
        %v2229 = vld [vmem:[#allocation2 + $0xa9] sm:$0xff]
        %v2230 = vld [vmem:[#allocation2 + $0xb1] sm:$0xff]
        %v2231 = vld [vmem:[#allocation2 + $0xb9] sm:$0x3]
        %v2232 = vmax.f32 %v2184, %v2208
        %v2233 = vmax.f32 %v2185, %v2209
        %v2234 = vmax.f32 %v2186, %v2210
        %v2235 = vmax.f32 %v2187, %v2211
        %v2236 = vmax.f32 %v2188, %v2212
        %v2237 = vmax.f32 %v2189, %v2213
        %v2238 = vmax.f32 %v2190, %v2214
        %v2239 = vmax.f32 %v2191, %v2215
        %v2240 = vmax.f32 %v2192, %v2216
        %v2241 = vmax.f32 %v2193, %v2217
        %v2242 = vmax.f32 %v2194, %v2218
        %v2243 = vmax.f32 %v2195, %v2219
        %v2244 = vmax.f32 %v2196, %v2220
        %v2245 = vmax.f32 %v2197, %v2221
        %v2246 = vmax.f32 %v2198, %v2222
        %v2247 = vmax.f32 %v2199, %v2223
        %v2248 = vmax.f32 %v2200, %v2224
        %v2249 = vmax.f32 %v2201, %v2225
        %v2250 = vmax.f32 %v2202, %v2226
        %v2251 = vmax.f32 %v2203, %v2227
        %v2252 = vmax.f32 %v2204, %v2228
        %v2253 = vmax.f32 %v2205, %v2229
        %v2254 = vmax.f32 %v2206, %v2230
        %v2255 = vmax.f32 %v2207, %v2231
        %v2256 = vld [vmem:[#allocation2 + $0x2] sm:$0xff]
        %v2257 = vld [vmem:[#allocation2 + $0xa] sm:$0xff]
        %v2258 = vld [vmem:[#allocation2 + $0x12] sm:$0xff]
        %v2259 = vld [vmem:[#allocation2 + $0x1a] sm:$0xff]
        %v2260 = vld [vmem:[#allocation2 + $0x22] sm:$0xff]
        %v2261 = vld [vmem:[#allocation2 + $0x2a] sm:$0xff]
        %v2262 = vld [vmem:[#allocation2 + $0x32] sm:$0xff]
        %v2263 = vld [vmem:[#allocation2 + $0x3a] sm:$0xff]
        %v2264 = vld [vmem:[#allocation2 + $0x42] sm:$0xff]
        %v2265 = vld [vmem:[#allocation2 + $0x4a] sm:$0xff]
        %v2266 = vld [vmem:[#allocation2 + $0x52] sm:$0xff]
        %v2267 = vld [vmem:[#allocation2 + $0x5a] sm:$0xff]
        %v2268 = vld [vmem:[#allocation2 + $0x62] sm:$0xff]
        %v2269 = vld [vmem:[#allocation2 + $0x6a] sm:$0xff]
        %v2270 = vld [vmem:[#allocation2 + $0x72] sm:$0xff]
        %v2271 = vld [vmem:[#allocation2 + $0x7a] sm:$0xff]
        %v2272 = vld [vmem:[#allocation2 + $0x82] sm:$0xff]
        %v2273 = vld [vmem:[#allocation2 + $0x8a] sm:$0xff]
        %v2274 = vld [vmem:[#allocation2 + $0x92] sm:$0xff]
        %v2275 = vld [vmem:[#allocation2 + $0x9a] sm:$0xff]
        %v2276 = vld [vmem:[#allocation2 + $0xa2] sm:$0xff]
        %v2277 = vld [vmem:[#allocation2 + $0xaa] sm:$0xff]
        %v2278 = vld [vmem:[#allocation2 + $0xb2] sm:$0xff]
        %v2279 = vld [vmem:[#allocation2 + $0xba] sm:$0x3]
        %v2280 = vmax.f32 %v2232, %v2256
        %v2281 = vmax.f32 %v2233, %v2257
        %v2282 = vmax.f32 %v2234, %v2258
        %v2283 = vmax.f32 %v2235, %v2259
        %v2284 = vmax.f32 %v2236, %v2260
        %v2285 = vmax.f32 %v2237, %v2261
        %v2286 = vmax.f32 %v2238, %v2262
        %v2287 = vmax.f32 %v2239, %v2263
        %v2288 = vmax.f32 %v2240, %v2264
        %v2289 = vmax.f32 %v2241, %v2265
        %v2290 = vmax.f32 %v2242, %v2266
        %v2291 = vmax.f32 %v2243, %v2267
        %v2292 = vmax.f32 %v2244, %v2268
        %v2293 = vmax.f32 %v2245, %v2269
        %v2294 = vmax.f32 %v2246, %v2270
        %v2295 = vmax.f32 %v2247, %v2271
        %v2296 = vmax.f32 %v2248, %v2272
        %v2297 = vmax.f32 %v2249, %v2273
        %v2298 = vmax.f32 %v2250, %v2274
        %v2299 = vmax.f32 %v2251, %v2275
        %v2300 = vmax.f32 %v2252, %v2276
        %v2301 = vmax.f32 %v2253, %v2277
        %v2302 = vmax.f32 %v2254, %v2278
        %v2303 = vmax.f32 %v2255, %v2279
        %2304 = vst.msk [vmem:[#allocation3] sm:$0xff] %vm2158, %v2280
        %2305 = vst.msk [vmem:[#allocation3 + $0x8] sm:$0xff] %vm2158, %v2281
        %2306 = vst.msk [vmem:[#allocation3 + $0x10] sm:$0xff] %vm2158, %v2282
        %2307 = vst.msk [vmem:[#allocation3 + $0x18] sm:$0xff] %vm2158, %v2283
        %2308 = vst.msk [vmem:[#allocation3 + $0x20] sm:$0xff] %vm2158, %v2284
        %2309 = vst.msk [vmem:[#allocation3 + $0x28] sm:$0xff] %vm2158, %v2285
        %2310 = vst.msk [vmem:[#allocation3 + $0x30] sm:$0xff] %vm2158, %v2286
        %2311 = vst.msk [vmem:[#allocation3 + $0x38] sm:$0xff] %vm2158, %v2287
        %2312 = vst.msk [vmem:[#allocation3 + $0x40] sm:$0xff] %vm2158, %v2288
        %2313 = vst.msk [vmem:[#allocation3 + $0x48] sm:$0xff] %vm2158, %v2289
        %2314 = vst.msk [vmem:[#allocation3 + $0x50] sm:$0xff] %vm2158, %v2290
        %2315 = vst.msk [vmem:[#allocation3 + $0x58] sm:$0xff] %vm2158, %v2291
        %2316 = vst.msk [vmem:[#allocation3 + $0x60] sm:$0xff] %vm2158, %v2292
        %2317 = vst.msk [vmem:[#allocation3 + $0x68] sm:$0xff] %vm2158, %v2293
        %2318 = vst.msk [vmem:[#allocation3 + $0x70] sm:$0xff] %vm2158, %v2294
        %2319 = vst.msk [vmem:[#allocation3 + $0x78] sm:$0xff] %vm2158, %v2295
        %2320 = vst.msk [vmem:[#allocation3 + $0x80] sm:$0xff] %vm2158, %v2296
        %2321 = vst.msk [vmem:[#allocation3 + $0x88] sm:$0xff] %vm2158, %v2297
        %2322 = vst.msk [vmem:[#allocation3 + $0x90] sm:$0xff] %vm2158, %v2298
        %2323 = vst.msk [vmem:[#allocation3 + $0x98] sm:$0xff] %vm2158, %v2299
        %2324 = vst.msk [vmem:[#allocation3 + $0xa0] sm:$0xff] %vm2158, %v2300
        %2325 = vst.msk [vmem:[#allocation3 + $0xa8] sm:$0xff] %vm2158, %v2301
        %2326 = vst.msk [vmem:[#allocation3 + $0xb0] sm:$0xff] %vm2158, %v2302
        %vm2327 = vcmask 123904
        %2328 = vst.msk [vmem:[#allocation3 + $0xb8] sm:$0x3] %vm2327, %v2303
        %v2329 = vld [vmem:[#allocation3] sm:$0xff]
        %v2330 = vld [vmem:[#allocation3 + $0x8] sm:$0xff]
        %v2331 = vld [vmem:[#allocation3 + $0x10] sm:$0xff]
        %v2332 = vld [vmem:[#allocation3 + $0x18] sm:$0xff]
        %v2333 = vld [vmem:[#allocation3 + $0x20] sm:$0xff]
        %v2334 = vld [vmem:[#allocation3 + $0x28] sm:$0xff]
        %v2335 = vld [vmem:[#allocation3 + $0x30] sm:$0xff]
        %v2336 = vld [vmem:[#allocation3 + $0x38] sm:$0xff]
        %v2337 = vld [vmem:[#allocation3 + $0x40] sm:$0xff]
        %v2338 = vld [vmem:[#allocation3 + $0x48] sm:$0xff]
        %v2339 = vld [vmem:[#allocation3 + $0x50] sm:$0xff]
        %v2340 = vld [vmem:[#allocation3 + $0x58] sm:$0xff]
        %v2341 = vld [vmem:[#allocation3 + $0x60] sm:$0xff]
        %v2342 = vld [vmem:[#allocation3 + $0x68] sm:$0xff]
        %v2343 = vld [vmem:[#allocation3 + $0x70] sm:$0xff]
        %v2344 = vld [vmem:[#allocation3 + $0x78] sm:$0xff]
        %v2345 = vld [vmem:[#allocation3 + $0x80] sm:$0xff]
        %v2346 = vld [vmem:[#allocation3 + $0x88] sm:$0xff]
        %v2347 = vld [vmem:[#allocation3 + $0x90] sm:$0xff]
        %v2348 = vld [vmem:[#allocation3 + $0x98] sm:$0x3]
        %v2349 = vld [vmem:[#allocation3 + $0x98] sm:$0xff]
        %v2350 = vld [vmem:[#allocation3 + $0xa0] sm:$0xff]
        %v2351 = vld [vmem:[#allocation3 + $0xa8] sm:$0x3]
        %v2352 = vmax.f32 %v2329, %v2331
        %v2353 = vmax.f32 %v2330, %v2332
        %v2354 = vmax.f32 %v2331, %v2333
        %v2355 = vmax.f32 %v2332, %v2334
        %v2356 = vmax.f32 %v2333, %v2335
        %v2357 = vmax.f32 %v2334, %v2336
        %v2358 = vmax.f32 %v2335, %v2337
        %v2359 = vmax.f32 %v2336, %v2338
        %v2360 = vmax.f32 %v2337, %v2339
        %v2361 = vmax.f32 %v2338, %v2340
        %v2362 = vmax.f32 %v2339, %v2341
        %v2363 = vmax.f32 %v2340, %v2342
        %v2364 = vmax.f32 %v2341, %v2343
        %v2365 = vmax.f32 %v2342, %v2344
        %v2366 = vmax.f32 %v2343, %v2345
        %v2367 = vmax.f32 %v2344, %v2346
        %v2368 = vmax.f32 %v2345, %v2347
        %v2369 = vmax.f32 %v2346, %v2349
        %v2370 = vmax.f32 %v2347, %v2350
        %v2371 = vmax.f32 %v2348, %v2351
        %v2372 = vld [vmem:[#allocation3 + $0xa8] sm:$0xff]
        %v2373 = vld [vmem:[#allocation3 + $0xb0] sm:$0xff]
        %v2374 = vld [vmem:[#allocation3 + $0xb8] sm:$0x3]
        %v2375 = vmax.f32 %v2352, %v2333
        %v2376 = vmax.f32 %v2353, %v2334
        %v2377 = vmax.f32 %v2354, %v2335
        %v2378 = vmax.f32 %v2355, %v2336
        %v2379 = vmax.f32 %v2356, %v2337
        %v2380 = vmax.f32 %v2357, %v2338
        %v2381 = vmax.f32 %v2358, %v2339
        %v2382 = vmax.f32 %v2359, %v2340
        %v2383 = vmax.f32 %v2360, %v2341
        %v2384 = vmax.f32 %v2361, %v2342
        %v2385 = vmax.f32 %v2362, %v2343
        %v2386 = vmax.f32 %v2363, %v2344
        %v2387 = vmax.f32 %v2364, %v2345
        %v2388 = vmax.f32 %v2365, %v2346
        %v2389 = vmax.f32 %v2366, %v2347
        %v2390 = vmax.f32 %v2367, %v2349
        %v2391 = vmax.f32 %v2368, %v2350
        %v2392 = vmax.f32 %v2369, %v2372
        %v2393 = vmax.f32 %v2370, %v2373
        %v2394 = vmax.f32 %v2371, %v2374
        %2395 = vst.msk [vmem:[#allocation4] sm:$0xff] %vm2158, %v2375
        %2396 = vst.msk [vmem:[#allocation4 + $0x8] sm:$0xff] %vm2158, %v2376
        %2397 = vst.msk [vmem:[#allocation4 + $0x10] sm:$0xff] %vm2158, %v2377
        %2398 = vst.msk [vmem:[#allocation4 + $0x18] sm:$0xff] %vm2158, %v2378
        %2399 = vst.msk [vmem:[#allocation4 + $0x20] sm:$0xff] %vm2158, %v2379
        %2400 = vst.msk [vmem:[#allocation4 + $0x28] sm:$0xff] %vm2158, %v2380
        %2401 = vst.msk [vmem:[#allocation4 + $0x30] sm:$0xff] %vm2158, %v2381
        %2402 = vst.msk [vmem:[#allocation4 + $0x38] sm:$0xff] %vm2158, %v2382
        %2403 = vst.msk [vmem:[#allocation4 + $0x40] sm:$0xff] %vm2158, %v2383
        %2404 = vst.msk [vmem:[#allocation4 + $0x48] sm:$0xff] %vm2158, %v2384
        %2405 = vst.msk [vmem:[#allocation4 + $0x50] sm:$0xff] %vm2158, %v2385
        %2406 = vst.msk [vmem:[#allocation4 + $0x58] sm:$0xff] %vm2158, %v2386
        %2407 = vst.msk [vmem:[#allocation4 + $0x60] sm:$0xff] %vm2158, %v2387
        %2408 = vst.msk [vmem:[#allocation4 + $0x68] sm:$0xff] %vm2158, %v2388
        %2409 = vst.msk [vmem:[#allocation4 + $0x70] sm:$0xff] %vm2158, %v2389
        %2410 = vst.msk [vmem:[#allocation4 + $0x78] sm:$0xff] %vm2158, %v2390
        %2411 = vst.msk [vmem:[#allocation4 + $0x80] sm:$0xff] %vm2158, %v2391
        %2412 = vst.msk [vmem:[#allocation4 + $0x88] sm:$0xff] %vm2158, %v2392
        %2413 = vst.msk [vmem:[#allocation4 + $0x90] sm:$0xff] %vm2158, %v2393
        %2414 = vst.msk [vmem:[#allocation4 + $0x98] sm:$0x3] %vm2327, %v2394
        %2415 = vst.msk [vmem:[#allocation5] sm:$0xff] %vm2158, 0.0
        %2416 = vst.msk [vmem:[#allocation5 + $0x8] sm:$0xff] %vm2158, 0.0
        %2417 = vst.msk [vmem:[#allocation5 + $0x10] sm:$0xff] %vm2158, 0.0
        %2418 = vst.msk [vmem:[#allocation5 + $0x18] sm:$0xff] %vm2158, 0.0
        %2419 = vst.msk [vmem:[#allocation5 + $0x20] sm:$0xf] %vm2182, 0.0
        %v2420 = vld [vmem:[#allocation4] sm:$0x1]
        %vm2421 = vcmask 122880
        %2422 = vst.msk [vmem:[#allocation5 + $0x7] sm:$0x1] %vm2421, %v2420
        %v2423 = vld [vmem:[#allocation4 + $0x3] sm:$0x1]
        %2424 = vst.msk [vmem:[#allocation5 + $0x8] sm:$0x1] %vm2421, %v2423
        %v2425 = vld [vmem:[#allocation4 + $0x6] sm:$0x1]
        %2426 = vst.msk [vmem:[#allocation5 + $0x9] sm:$0x1] %vm2421, %v2425
        %v2427 = vld [vmem:[#allocation4 + $0x9] sm:$0x1]
        %2428 = vst.msk [vmem:[#allocation5 + $0xa] sm:$0x1] %vm2421, %v2427
        %v2429 = vld [vmem:[#allocation4 + $0x30] sm:$0x1]
        %2430 = vst.msk [vmem:[#allocation5 + $0xd] sm:$0x1] %vm2421, %v2429
        %v2431 = vld [vmem:[#allocation4 + $0x33] sm:$0x1]
        %2432 = vst.msk [vmem:[#allocation5 + $0xe] sm:$0x1] %vm2421, %v2431
        %v2433 = vld [vmem:[#allocation4 + $0x36] sm:$0x1]
        %2434 = vst.msk [vmem:[#allocation5 + $0xf] sm:$0x1] %vm2421, %v2433
        %v2435 = vld [vmem:[#allocation4 + $0x39] sm:$0x1]
        %2436 = vst.msk [vmem:[#allocation5 + $0x10] sm:$0x1] %vm2421, %v2435
        %v2437 = vld [vmem:[#allocation4 + $0x60] sm:$0x1]
        %2438 = vst.msk [vmem:[#allocation5 + $0x13] sm:$0x1] %vm2421, %v2437
        %v2439 = vld [vmem:[#allocation4 + $0x63] sm:$0x1]
        %2440 = vst.msk [vmem:[#allocation5 + $0x14] sm:$0x1] %vm2421, %v2439
        %v2441 = vld [vmem:[#allocation4 + $0x66] sm:$0x1]
        %2442 = vst.msk [vmem:[#allocation5 + $0x15] sm:$0x1] %vm2421, %v2441
        %v2443 = vld [vmem:[#allocation4 + $0x69] sm:$0x1]
        %2444 = vst.msk [vmem:[#allocation5 + $0x16] sm:$0x1] %vm2421, %v2443
        %v2445 = vld [vmem:[#allocation4 + $0x90] sm:$0x1]
        %2446 = vst.msk [vmem:[#allocation5 + $0x19] sm:$0x1] %vm2421, %v2445
        %v2447 = vld [vmem:[#allocation4 + $0x93] sm:$0x1]
        %2448 = vst.msk [vmem:[#allocation5 + $0x1a] sm:$0x1] %vm2421, %v2447
        %v2449 = vld [vmem:[#allocation4 + $0x96] sm:$0x1]
        %2450 = vst.msk [vmem:[#allocation5 + $0x1b] sm:$0x1] %vm2421, %v2449
        %v2451 = vld [vmem:[#allocation4 + $0x99] sm:$0x1]
        %2452 = vst.msk [vmem:[#allocation5 + $0x1c] sm:$0x1] %vm2421, %v2451
        %v2453 = vld [vmem:[#allocation5] sm:$0xff]
        %v2454 = vld [vmem:[#allocation5 + $0x8] sm:$0xff]
        %v2455 = vld [vmem:[#allocation5 + $0x10] sm:$0x3f]
        %v2456 = vld [vmem:[%s3] sm:$0xff]
        %v2457 = vld [vmem:[%s3 + $0x8] sm:$0xff]
        %v2458 = vld [vmem:[#allocation5 + $0x1] sm:$0xff]
        %v2459 = vld [vmem:[#allocation5 + $0x9] sm:$0xff]
        %v2460 = vld [vmem:[#allocation5 + $0x11] sm:$0x3f]
        %s2461 = scalar_lea.vmem %s3, 16
        %v2462 = vld [vmem:[%s2461] sm:$0xff]
        %v2463 = vld [vmem:[%s2461 + $0x8] sm:$0xff]
        %v2465 = vsel %vm2158, %v2458, 0
        %v2468 = vsel %vm2158, %v2459, 0
        %v2471 = vsel %vm2158, %v2460, 0
        %2473 = vmatprep.subr.mxu0 0.0
        %2474 = vmatpush1.msra.mxu0 %v2462
        %2475 = vmatprep.subr.mxu0 0.0
        %2476 = vmatpush1.msra.mxu0 %v2463
        %2477 = vmatprep.subr.mxu0 0.0
        %2478 = vmatpush1.msra.mxu0 0.0
        %2479 = vmatprep.subr.mxu0 0.0
        %2480 = vmatpush1.msra.mxu0 0.0
        %2481 = vmatprep.subr.mxu0 0.0
        %2482 = vmatpush1.msra.mxu0 0.0
        %2483 = vmatprep.subr.mxu0 0.0
        %2484 = vmatpush1.msra.mxu0 0.0
        %2485 = vmatprep.subr.mxu0 0.0
        %2486 = vmatpush1.msra.mxu0 0.0
        %2487 = vmatprep.subr.mxu0 0.0
        %2488 = vmatpush1.msra.mxu0 0.0
        %2489 = vmatprep.subr.mxu0 0.0
        %2490 = vmatpush1.msra.mxu0 0.0
        %2491 = vmatprep.subr.mxu0 0.0
        %2492 = vmatpush1.msra.mxu0 0.0
        %2493 = vmatprep.subr.mxu0 0.0
        %2494 = vmatpush1.msra.mxu0 0.0
        %2495 = vmatprep.subr.mxu0 0.0
        %2496 = vmatpush1.msra.mxu0 0.0
        %2497 = vmatprep.subr.mxu0 0.0
        %2498 = vmatpush1.msra.mxu0 0.0
        %2499 = vmatprep.subr.mxu0 0.0
        %2500 = vmatpush1.msra.mxu0 0.0
        %2501 = vmatprep.subr.mxu0 0.0
        %2502 = vmatpush1.msra.mxu0 0.0
        %2503 = vmatprep.subr.mxu0 0.0
        %2504 = vmatpush1.msra.mxu0 0.0
        %2505 = vmatprep.subr.mxu0 0.0
        %2506 = vmatpush1.msra.mxu0 0.0
        %2507 = vmatprep.subr.mxu0 0.0
        %2508 = vmatpush1.msra.mxu0 0.0
        %2509 = vmatprep.subr.mxu0 0.0
        %2510 = vmatpush1.msra.mxu0 0.0
        %2511 = vmatprep.subr.mxu0 0.0
        %2512 = vmatpush1.msra.mxu0 0.0
        %2513 = vmatprep.subr.mxu0 0.0
        %2514 = vmatpush1.msra.mxu0 0.0
        %2515 = vmatprep.subr.mxu0 0.0
        %2516 = vmatpush1.msra.mxu0 0.0
        %2517 = vmatprep.subr.mxu0 0.0
        %2518 = vmatpush1.msra.mxu0 0.0
        %2519 = vmatprep.subr.mxu0 0.0
        %2520 = vmatpush1.msra.mxu0 0.0
        %2521 = vmatprep.subr.mxu0 0.0
        %2522 = vmatpush1.msra.mxu0 0.0
        %2523 = vmatprep.subr.mxu0 0.0
        %2524 = vmatpush1.msra.mxu0 0.0
        %2525 = vmatprep.subr.mxu0 0.0
        %2526 = vmatpush1.msra.mxu0 0.0
        %2527 = vmatprep.subr.mxu0 0.0
        %2528 = vmatpush1.msra.mxu0 0.0
        %2529 = vmatprep.subr.mxu0 0.0
        %2530 = vmatpush1.msra.mxu0 0.0
        %2531 = vmatprep.subr.mxu0 0.0
        %2532 = vmatpush1.msra.mxu0 0.0
        %2533 = vmatprep.subr.mxu0 0.0
        %2534 = vmatpush1.msra.mxu0 0.0
        %2535 = vmatprep.subr.mxu0 0.0
        %2536 = vmatpush1.msra.mxu0 0.0
        %2537 = vmatprep.mubr.f32.mxu0 0.0
        %2538 = vmatmul.mubr.f32.gmra.mrb[0].mxu0 %v2465
        %v2539 = vpop.f32.mrb[0].mxu0
        %v2540 = vadd.f32 0.0, %v2539
        %v2541 = vpop.f32.mrb[0].mxu0
        %2542 = vmatprep.mubr.f32.mxu0 0.0
        %2543 = vmatmul.mubr.f32.gmra.mrb[0].mxu0 %v2468
        %v2544 = vpop.f32.mrb[0].mxu0
        %v2545 = vadd.f32 0.0, %v2544
        %v2546 = vpop.f32.mrb[0].mxu0
        %2547 = vmatprep.mubr.f32.mxu0 0.0
        %2548 = vmatmul.mubr.f32.gmra.mrb[0].mxu0 %v2471
        %v2549 = vpop.f32.mrb[0].mxu0
        %v2550 = vadd.f32 0.0, %v2549
        %v2551 = vpop.f32.mrb[0].mxu0
        %2552 = vdwg.mxu0
        %v2554 = vsel %vm2158, %v2453, 0
        %v2557 = vsel %vm2158, %v2454, 0
        %v2560 = vsel %vm2158, %v2455, 0
        %2562 = vmatprep.subr.mxu0 0.0
        %2563 = vmatpush1.msra.mxu0 %v2456
        %2564 = vmatprep.subr.mxu0 0.0
        %2565 = vmatpush1.msra.mxu0 %v2457
        %2566 = vmatprep.subr.mxu0 0.0
        %2567 = vmatpush1.msra.mxu0 0.0
        %2568 = vmatprep.subr.mxu0 0.0
        %2569 = vmatpush1.msra.mxu0 0.0
        %2570 = vmatprep.subr.mxu0 0.0
        %2571 = vmatpush1.msra.mxu0 0.0
        %2572 = vmatprep.subr.mxu0 0.0
        %2573 = vmatpush1.msra.mxu0 0.0
        %2574 = vmatprep.subr.mxu0 0.0
        %2575 = vmatpush1.msra.mxu0 0.0
        %2576 = vmatprep.subr.mxu0 0.0
        %2577 = vmatpush1.msra.mxu0 0.0
        %2578 = vmatprep.subr.mxu0 0.0
        %2579 = vmatpush1.msra.mxu0 0.0
        %2580 = vmatprep.subr.mxu0 0.0
        %2581 = vmatpush1.msra.mxu0 0.0
        %2582 = vmatprep.subr.mxu0 0.0
        %2583 = vmatpush1.msra.mxu0 0.0
        %2584 = vmatprep.subr.mxu0 0.0
        %2585 = vmatpush1.msra.mxu0 0.0
        %2586 = vmatprep.subr.mxu0 0.0
        %2587 = vmatpush1.msra.mxu0 0.0
        %2588 = vmatprep.subr.mxu0 0.0
        %2589 = vmatpush1.msra.mxu0 0.0
        %2590 = vmatprep.subr.mxu0 0.0
        %2591 = vmatpush1.msra.mxu0 0.0
        %2592 = vmatprep.subr.mxu0 0.0
        %2593 = vmatpush1.msra.mxu0 0.0
        %2594 = vmatprep.subr.mxu0 0.0
        %2595 = vmatpush1.msra.mxu0 0.0
        %2596 = vmatprep.subr.mxu0 0.0
        %2597 = vmatpush1.msra.mxu0 0.0
        %2598 = vmatprep.subr.mxu0 0.0
        %2599 = vmatpush1.msra.mxu0 0.0
        %2600 = vmatprep.subr.mxu0 0.0
        %2601 = vmatpush1.msra.mxu0 0.0
        %2602 = vmatprep.subr.mxu0 0.0
        %2603 = vmatpush1.msra.mxu0 0.0
        %2604 = vmatprep.subr.mxu0 0.0
        %2605 = vmatpush1.msra.mxu0 0.0
        %2606 = vmatprep.subr.mxu0 0.0
        %2607 = vmatpush1.msra.mxu0 0.0
        %2608 = vmatprep.subr.mxu0 0.0
        %2609 = vmatpush1.msra.mxu0 0.0
        %2610 = vmatprep.subr.mxu0 0.0
        %2611 = vmatpush1.msra.mxu0 0.0
        %2612 = vmatprep.subr.mxu0 0.0
        %2613 = vmatpush1.msra.mxu0 0.0
        %2614 = vmatprep.subr.mxu0 0.0
        %2615 = vmatpush1.msra.mxu0 0.0
        %2616 = vmatprep.subr.mxu0 0.0
        %2617 = vmatpush1.msra.mxu0 0.0
        %2618 = vmatprep.subr.mxu0 0.0
        %2619 = vmatpush1.msra.mxu0 0.0
        %2620 = vmatprep.subr.mxu0 0.0
        %2621 = vmatpush1.msra.mxu0 0.0
        %2622 = vmatprep.subr.mxu0 0.0
        %2623 = vmatpush1.msra.mxu0 0.0
        %2624 = vmatprep.subr.mxu0 0.0
        %2625 = vmatpush1.msra.mxu0 0.0
        %2626 = vmatprep.mubr.f32.mxu0 0.0
        %2627 = vmatmul.mubr.f32.gmra.mrb[0].mxu0 %v2554
        %v2628 = vpop.f32.mrb[0].mxu0
        %v2629 = vadd.f32 %v2540, %v2628
        %v2630 = vpop.f32.mrb[0].mxu0
        %2631 = vmatprep.mubr.f32.mxu0 0.0
        %2632 = vmatmul.mubr.f32.gmra.mrb[0].mxu0 %v2557
        %v2633 = vpop.f32.mrb[0].mxu0
        %v2634 = vadd.f32 %v2545, %v2633
        %v2635 = vpop.f32.mrb[0].mxu0
        %2636 = vmatprep.mubr.f32.mxu0 0.0
        %2637 = vmatmul.mubr.f32.gmra.mrb[0].mxu0 %v2560
        %v2638 = vpop.f32.mrb[0].mxu0
        %v2639 = vadd.f32 %v2550, %v2638
        %v2640 = vpop.f32.mrb[0].mxu0
        %2641 = vdwg.mxu0
        %v2642 = vld [vmem:[#allocation5 + $0x2] sm:$0xff]
        %v2643 = vld [vmem:[#allocation5 + $0xa] sm:$0xff]
        %v2644 = vld [vmem:[#allocation5 + $0x12] sm:$0x3f]
        %s2645 = scalar_lea.vmem %s3, 32
        %v2646 = vld [vmem:[%s2645] sm:$0xff]
        %v2647 = vld [vmem:[%s2645 + $0x8] sm:$0xff]
        %v2649 = vsel %vm2158, %v2642, 0
        %v2652 = vsel %vm2158, %v2643, 0
        %v2655 = vsel %vm2158, %v2644, 0
        %2657 = vmatprep.subr.mxu0 0.0
        %2658 = vmatpush1.msra.mxu0 %v2646
        %2659 = vmatprep.subr.mxu0 0.0
        %2660 = vmatpush1.msra.mxu0 %v2647
        %2661 = vmatprep.subr.mxu0 0.0
        %2662 = vmatpush1.msra.mxu0 0.0
        %2663 = vmatprep.subr.mxu0 0.0
        %2664 = vmatpush1.msra.mxu0 0.0
        %2665 = vmatprep.subr.mxu0 0.0
        %2666 = vmatpush1.msra.mxu0 0.0
        %2667 = vmatprep.subr.mxu0 0.0
        %2668 = vmatpush1.msra.mxu0 0.0
        %2669 = vmatprep.subr.mxu0 0.0
        %2670 = vmatpush1.msra.mxu0 0.0
        %2671 = vmatprep.subr.mxu0 0.0
        %2672 = vmatpush1.msra.mxu0 0.0
        %2673 = vmatprep.subr.mxu0 0.0
        %2674 = vmatpush1.msra.mxu0 0.0
        %2675 = vmatprep.subr.mxu0 0.0
        %2676 = vmatpush1.msra.mxu0 0.0
        %2677 = vmatprep.subr.mxu0 0.0
        %2678 = vmatpush1.msra.mxu0 0.0
        %2679 = vmatprep.subr.mxu0 0.0
        %2680 = vmatpush1.msra.mxu0 0.0
        %2681 = vmatprep.subr.mxu0 0.0
        %2682 = vmatpush1.msra.mxu0 0.0
        %2683 = vmatprep.subr.mxu0 0.0
        %2684 = vmatpush1.msra.mxu0 0.0
        %2685 = vmatprep.subr.mxu0 0.0
        %2686 = vmatpush1.msra.mxu0 0.0
        %2687 = vmatprep.subr.mxu0 0.0
        %2688 = vmatpush1.msra.mxu0 0.0
        %2689 = vmatprep.subr.mxu0 0.0
        %2690 = vmatpush1.msra.mxu0 0.0
        %2691 = vmatprep.subr.mxu0 0.0
        %2692 = vmatpush1.msra.mxu0 0.0
        %2693 = vmatprep.subr.mxu0 0.0
        %2694 = vmatpush1.msra.mxu0 0.0
        %2695 = vmatprep.subr.mxu0 0.0
        %2696 = vmatpush1.msra.mxu0 0.0
        %2697 = vmatprep.subr.mxu0 0.0
        %2698 = vmatpush1.msra.mxu0 0.0
        %2699 = vmatprep.subr.mxu0 0.0
        %2700 = vmatpush1.msra.mxu0 0.0
        %2701 = vmatprep.subr.mxu0 0.0
        %2702 = vmatpush1.msra.mxu0 0.0
        %2703 = vmatprep.subr.mxu0 0.0
        %2704 = vmatpush1.msra.mxu0 0.0
        %2705 = vmatprep.subr.mxu0 0.0
        %2706 = vmatpush1.msra.mxu0 0.0
        %2707 = vmatprep.subr.mxu0 0.0
        %2708 = vmatpush1.msra.mxu0 0.0
        %2709 = vmatprep.subr.mxu0 0.0
        %2710 = vmatpush1.msra.mxu0 0.0
        %2711 = vmatprep.subr.mxu0 0.0
        %2712 = vmatpush1.msra.mxu0 0.0
        %2713 = vmatprep.subr.mxu0 0.0
        %2714 = vmatpush1.msra.mxu0 0.0
        %2715 = vmatprep.subr.mxu0 0.0
        %2716 = vmatpush1.msra.mxu0 0.0
        %2717 = vmatprep.subr.mxu0 0.0
        %2718 = vmatpush1.msra.mxu0 0.0
        %2719 = vmatprep.subr.mxu0 0.0
        %2720 = vmatpush1.msra.mxu0 0.0
        %2721 = vmatprep.mubr.f32.mxu0 0.0
        %2722 = vmatmul.mubr.f32.gmra.mrb[0].mxu0 %v2649
        %v2723 = vpop.f32.mrb[0].mxu0
        %v2724 = vadd.f32 0.0, %v2723
        %v2725 = vpop.f32.mrb[0].mxu0
        %2726 = vmatprep.mubr.f32.mxu0 0.0
        %2727 = vmatmul.mubr.f32.gmra.mrb[0].mxu0 %v2652
        %v2728 = vpop.f32.mrb[0].mxu0
        %v2729 = vadd.f32 0.0, %v2728
        %v2730 = vpop.f32.mrb[0].mxu0
        %2731 = vmatprep.mubr.f32.mxu0 0.0
        %2732 = vmatmul.mubr.f32.gmra.mrb[0].mxu0 %v2655
        %v2733 = vpop.f32.mrb[0].mxu0
        %v2734 = vadd.f32 0.0, %v2733
        %v2735 = vpop.f32.mrb[0].mxu0
        %2736 = vdwg.mxu0
        %v2737 = vadd.f32 %v2629, %v2724
        %v2738 = vadd.f32 %v2634, %v2729
        %v2739 = vadd.f32 %v2639, %v2734
        %v2740 = vld [vmem:[#allocation5 + $0x6] sm:$0xff]
        %v2741 = vld [vmem:[#allocation5 + $0xe] sm:$0xff]
        %v2742 = vld [vmem:[#allocation5 + $0x16] sm:$0x3f]
        %s2743 = scalar_lea.vmem %s3, 48
        %v2744 = vld [vmem:[%s2743] sm:$0xff]
        %v2745 = vld [vmem:[%s2743 + $0x8] sm:$0xff]
        %v2747 = vsel %vm2158, %v2740, 0
        %v2750 = vsel %vm2158, %v2741, 0
        %v2753 = vsel %vm2158, %v2742, 0
        %2755 = vmatprep.subr.mxu0 0.0
        %2756 = vmatpush1.msra.mxu0 %v2744
        %2757 = vmatprep.subr.mxu0 0.0
        %2758 = vmatpush1.msra.mxu0 %v2745
        %2759 = vmatprep.subr.mxu0 0.0
        %2760 = vmatpush1.msra.mxu0 0.0
        %2761 = vmatprep.subr.mxu0 0.0
        %2762 = vmatpush1.msra.mxu0 0.0
        %2763 = vmatprep.subr.mxu0 0.0
        %2764 = vmatpush1.msra.mxu0 0.0
        %2765 = vmatprep.subr.mxu0 0.0
        %2766 = vmatpush1.msra.mxu0 0.0
        %2767 = vmatprep.subr.mxu0 0.0
        %2768 = vmatpush1.msra.mxu0 0.0
        %2769 = vmatprep.subr.mxu0 0.0
        %2770 = vmatpush1.msra.mxu0 0.0
        %2771 = vmatprep.subr.mxu0 0.0
        %2772 = vmatpush1.msra.mxu0 0.0
        %2773 = vmatprep.subr.mxu0 0.0
        %2774 = vmatpush1.msra.mxu0 0.0
        %2775 = vmatprep.subr.mxu0 0.0
        %2776 = vmatpush1.msra.mxu0 0.0
        %2777 = vmatprep.subr.mxu0 0.0
        %2778 = vmatpush1.msra.mxu0 0.0
        %2779 = vmatprep.subr.mxu0 0.0
        %2780 = vmatpush1.msra.mxu0 0.0
        %2781 = vmatprep.subr.mxu0 0.0
        %2782 = vmatpush1.msra.mxu0 0.0
        %2783 = vmatprep.subr.mxu0 0.0
        %2784 = vmatpush1.msra.mxu0 0.0
        %2785 = vmatprep.subr.mxu0 0.0
        %2786 = vmatpush1.msra.mxu0 0.0
        %2787 = vmatprep.subr.mxu0 0.0
        %2788 = vmatpush1.msra.mxu0 0.0
        %2789 = vmatprep.subr.mxu0 0.0
        %2790 = vmatpush1.msra.mxu0 0.0
        %2791 = vmatprep.subr.mxu0 0.0
        %2792 = vmatpush1.msra.mxu0 0.0
        %2793 = vmatprep.subr.mxu0 0.0
        %2794 = vmatpush1.msra.mxu0 0.0
        %2795 = vmatprep.subr.mxu0 0.0
        %2796 = vmatpush1.msra.mxu0 0.0
        %2797 = vmatprep.subr.mxu0 0.0
        %2798 = vmatpush1.msra.mxu0 0.0
        %2799 = vmatprep.subr.mxu0 0.0
        %2800 = vmatpush1.msra.mxu0 0.0
        %2801 = vmatprep.subr.mxu0 0.0
        %2802 = vmatpush1.msra.mxu0 0.0
        %2803 = vmatprep.subr.mxu0 0.0
        %2804 = vmatpush1.msra.mxu0 0.0
        %2805 = vmatprep.subr.mxu0 0.0
        %2806 = vmatpush1.msra.mxu0 0.0
        %2807 = vmatprep.subr.mxu0 0.0
        %2808 = vmatpush1.msra.mxu0 0.0
        %2809 = vmatprep.subr.mxu0 0.0
        %2810 = vmatpush1.msra.mxu0 0.0
        %2811 = vmatprep.subr.mxu0 0.0
        %2812 = vmatpush1.msra.mxu0 0.0
        %2813 = vmatprep.subr.mxu0 0.0
        %2814 = vmatpush1.msra.mxu0 0.0
        %2815 = vmatprep.subr.mxu0 0.0
        %2816 = vmatpush1.msra.mxu0 0.0
        %2817 = vmatprep.subr.mxu0 0.0
        %2818 = vmatpush1.msra.mxu0 0.0
        %2819 = vmatprep.mubr.f32.mxu0 0.0
        %2820 = vmatmul.mubr.f32.gmra.mrb[0].mxu0 %v2747
        %v2821 = vpop.f32.mrb[0].mxu0
        %v2822 = vadd.f32 0.0, %v2821
        %v2823 = vpop.f32.mrb[0].mxu0
        %2824 = vmatprep.mubr.f32.mxu0 0.0
        %2825 = vmatmul.mubr.f32.gmra.mrb[0].mxu0 %v2750
        %v2826 = vpop.f32.mrb[0].mxu0
        %v2827 = vadd.f32 0.0, %v2826
        %v2828 = vpop.f32.mrb[0].mxu0
        %2829 = vmatprep.mubr.f32.mxu0 0.0
        %2830 = vmatmul.mubr.f32.gmra.mrb[0].mxu0 %v2753
        %v2831 = vpop.f32.mrb[0].mxu0
        %v2832 = vadd.f32 0.0, %v2831
        %v2833 = vpop.f32.mrb[0].mxu0
        %2834 = vdwg.mxu0
        %v2835 = vadd.f32 %v2737, %v2822
        %v2836 = vadd.f32 %v2738, %v2827
        %v2837 = vadd.f32 %v2739, %v2832
        %v2838 = vld [vmem:[#allocation5 + $0x7] sm:$0xff]
        %v2839 = vld [vmem:[#allocation5 + $0xf] sm:$0xff]
        %v2840 = vld [vmem:[#allocation5 + $0x17] sm:$0x3f]
        %s2841 = scalar_lea.vmem %s3, 64
        %v2842 = vld [vmem:[%s2841] sm:$0xff]
        %v2843 = vld [vmem:[%s2841 + $0x8] sm:$0xff]
        %v2845 = vsel %vm2158, %v2838, 0
        %v2848 = vsel %vm2158, %v2839, 0
        %v2851 = vsel %vm2158, %v2840, 0
        %2853 = vmatprep.subr.mxu0 0.0
        %2854 = vmatpush1.msra.mxu0 %v2842
        %2855 = vmatprep.subr.mxu0 0.0
        %2856 = vmatpush1.msra.mxu0 %v2843
        %2857 = vmatprep.subr.mxu0 0.0
        %2858 = vmatpush1.msra.mxu0 0.0
        %2859 = vmatprep.subr.mxu0 0.0
        %2860 = vmatpush1.msra.mxu0 0.0
        %2861 = vmatprep.subr.mxu0 0.0
        %2862 = vmatpush1.msra.mxu0 0.0
        %2863 = vmatprep.subr.mxu0 0.0
        %2864 = vmatpush1.msra.mxu0 0.0
        %2865 = vmatprep.subr.mxu0 0.0
        %2866 = vmatpush1.msra.mxu0 0.0
        %2867 = vmatprep.subr.mxu0 0.0
        %2868 = vmatpush1.msra.mxu0 0.0
        %2869 = vmatprep.subr.mxu0 0.0
        %2870 = vmatpush1.msra.mxu0 0.0
        %2871 = vmatprep.subr.mxu0 0.0
        %2872 = vmatpush1.msra.mxu0 0.0
        %2873 = vmatprep.subr.mxu0 0.0
        %2874 = vmatpush1.msra.mxu0 0.0
        %2875 = vmatprep.subr.mxu0 0.0
        %2876 = vmatpush1.msra.mxu0 0.0
        %2877 = vmatprep.subr.mxu0 0.0
        %2878 = vmatpush1.msra.mxu0 0.0
        %2879 = vmatprep.subr.mxu0 0.0
        %2880 = vmatpush1.msra.mxu0 0.0
        %2881 = vmatprep.subr.mxu0 0.0
        %2882 = vmatpush1.msra.mxu0 0.0
        %2883 = vmatprep.subr.mxu0 0.0
        %2884 = vmatpush1.msra.mxu0 0.0
        %2885 = vmatprep.subr.mxu0 0.0
        %2886 = vmatpush1.msra.mxu0 0.0
        %2887 = vmatprep.subr.mxu0 0.0
        %2888 = vmatpush1.msra.mxu0 0.0
        %2889 = vmatprep.subr.mxu0 0.0
        %2890 = vmatpush1.msra.mxu0 0.0
        %2891 = vmatprep.subr.mxu0 0.0
        %2892 = vmatpush1.msra.mxu0 0.0
        %2893 = vmatprep.subr.mxu0 0.0
        %2894 = vmatpush1.msra.mxu0 0.0
        %2895 = vmatprep.subr.mxu0 0.0
        %2896 = vmatpush1.msra.mxu0 0.0
        %2897 = vmatprep.subr.mxu0 0.0
        %2898 = vmatpush1.msra.mxu0 0.0
        %2899 = vmatprep.subr.mxu0 0.0
        %2900 = vmatpush1.msra.mxu0 0.0
        %2901 = vmatprep.subr.mxu0 0.0
        %2902 = vmatpush1.msra.mxu0 0.0
        %2903 = vmatprep.subr.mxu0 0.0
        %2904 = vmatpush1.msra.mxu0 0.0
        %2905 = vmatprep.subr.mxu0 0.0
        %2906 = vmatpush1.msra.mxu0 0.0
        %2907 = vmatprep.subr.mxu0 0.0
        %2908 = vmatpush1.msra.mxu0 0.0
        %2909 = vmatprep.subr.mxu0 0.0
        %2910 = vmatpush1.msra.mxu0 0.0
        %2911 = vmatprep.subr.mxu0 0.0
        %2912 = vmatpush1.msra.mxu0 0.0
        %2913 = vmatprep.subr.mxu0 0.0
        %2914 = vmatpush1.msra.mxu0 0.0
        %2915 = vmatprep.subr.mxu0 0.0
        %2916 = vmatpush1.msra.mxu0 0.0
        %2917 = vmatprep.mubr.f32.mxu0 0.0
        %2918 = vmatmul.mubr.f32.gmra.mrb[0].mxu0 %v2845
        %v2919 = vpop.f32.mrb[0].mxu0
        %v2920 = vadd.f32 0.0, %v2919
        %v2921 = vpop.f32.mrb[0].mxu0
        %2922 = vmatprep.mubr.f32.mxu0 0.0
        %2923 = vmatmul.mubr.f32.gmra.mrb[0].mxu0 %v2848
        %v2924 = vpop.f32.mrb[0].mxu0
        %v2925 = vadd.f32 0.0, %v2924
        %v2926 = vpop.f32.mrb[0].mxu0
        %2927 = vmatprep.mubr.f32.mxu0 0.0
        %2928 = vmatmul.mubr.f32.gmra.mrb[0].mxu0 %v2851
        %v2929 = vpop.f32.mrb[0].mxu0
        %v2930 = vadd.f32 0.0, %v2929
        %v2931 = vpop.f32.mrb[0].mxu0
        %2932 = vdwg.mxu0
        %v2933 = vadd.f32 %v2835, %v2920
        %v2934 = vadd.f32 %v2836, %v2925
        %v2935 = vadd.f32 %v2837, %v2930
        %v2936 = vld [vmem:[#allocation5 + $0x8] sm:$0xff]
        %v2937 = vld [vmem:[#allocation5 + $0x10] sm:$0xff]
        %v2938 = vld [vmem:[#allocation5 + $0x18] sm:$0x3f]
        %s2939 = scalar_lea.vmem %s3, 80
        %v2940 = vld [vmem:[%s2939] sm:$0xff]
        %v2941 = vld [vmem:[%s2939 + $0x8] sm:$0xff]
        %v2943 = vsel %vm2158, %v2936, 0
        %v2946 = vsel %vm2158, %v2937, 0
        %v2949 = vsel %vm2158, %v2938, 0
        %2951 = vmatprep.subr.mxu0 0.0
        %2952 = vmatpush1.msra.mxu0 %v2940
        %2953 = vmatprep.subr.mxu0 0.0
        %2954 = vmatpush1.msra.mxu0 %v2941
        %2955 = vmatprep.subr.mxu0 0.0
        %2956 = vmatpush1.msra.mxu0 0.0
        %2957 = vmatprep.subr.mxu0 0.0
        %2958 = vmatpush1.msra.mxu0 0.0
        %2959 = vmatprep.subr.mxu0 0.0
        %2960 = vmatpush1.msra.mxu0 0.0
        %2961 = vmatprep.subr.mxu0 0.0
        %2962 = vmatpush1.msra.mxu0 0.0
        %2963 = vmatprep.subr.mxu0 0.0
        %2964 = vmatpush1.msra.mxu0 0.0
        %2965 = vmatprep.subr.mxu0 0.0
        %2966 = vmatpush1.msra.mxu0 0.0
        %2967 = vmatprep.subr.mxu0 0.0
        %2968 = vmatpush1.msra.mxu0 0.0
        %2969 = vmatprep.subr.mxu0 0.0
        %2970 = vmatpush1.msra.mxu0 0.0
        %2971 = vmatprep.subr.mxu0 0.0
        %2972 = vmatpush1.msra.mxu0 0.0
        %2973 = vmatprep.subr.mxu0 0.0
        %2974 = vmatpush1.msra.mxu0 0.0
        %2975 = vmatprep.subr.mxu0 0.0
        %2976 = vmatpush1.msra.mxu0 0.0
        %2977 = vmatprep.subr.mxu0 0.0
        %2978 = vmatpush1.msra.mxu0 0.0
        %2979 = vmatprep.subr.mxu0 0.0
        %2980 = vmatpush1.msra.mxu0 0.0
        %2981 = vmatprep.subr.mxu0 0.0
        %2982 = vmatpush1.msra.mxu0 0.0
        %2983 = vmatprep.subr.mxu0 0.0
        %2984 = vmatpush1.msra.mxu0 0.0
        %2985 = vmatprep.subr.mxu0 0.0
        %2986 = vmatpush1.msra.mxu0 0.0
        %2987 = vmatprep.subr.mxu0 0.0
        %2988 = vmatpush1.msra.mxu0 0.0
        %2989 = vmatprep.subr.mxu0 0.0
        %2990 = vmatpush1.msra.mxu0 0.0
        %2991 = vmatprep.subr.mxu0 0.0
        %2992 = vmatpush1.msra.mxu0 0.0
        %2993 = vmatprep.subr.mxu0 0.0
        %2994 = vmatpush1.msra.mxu0 0.0
        %2995 = vmatprep.subr.mxu0 0.0
        %2996 = vmatpush1.msra.mxu0 0.0
        %2997 = vmatprep.subr.mxu0 0.0
        %2998 = vmatpush1.msra.mxu0 0.0
        %2999 = vmatprep.subr.mxu0 0.0
        %3000 = vmatpush1.msra.mxu0 0.0
        %3001 = vmatprep.subr.mxu0 0.0
        %3002 = vmatpush1.msra.mxu0 0.0
        %3003 = vmatprep.subr.mxu0 0.0
        %3004 = vmatpush1.msra.mxu0 0.0
        %3005 = vmatprep.subr.mxu0 0.0
        %3006 = vmatpush1.msra.mxu0 0.0
        %3007 = vmatprep.subr.mxu0 0.0
        %3008 = vmatpush1.msra.mxu0 0.0
        %3009 = vmatprep.subr.mxu0 0.0
        %3010 = vmatpush1.msra.mxu0 0.0
        %3011 = vmatprep.subr.mxu0 0.0
        %3012 = vmatpush1.msra.mxu0 0.0
        %3013 = vmatprep.subr.mxu0 0.0
        %3014 = vmatpush1.msra.mxu0 0.0
        %3015 = vmatprep.mubr.f32.mxu0 0.0
        %3016 = vmatmul.mubr.f32.gmra.mrb[0].mxu0 %v2943
        %v3017 = vpop.f32.mrb[0].mxu0
        %v3018 = vadd.f32 0.0, %v3017
        %v3019 = vpop.f32.mrb[0].mxu0
        %3020 = vmatprep.mubr.f32.mxu0 0.0
        %3021 = vmatmul.mubr.f32.gmra.mrb[0].mxu0 %v2946
        %v3022 = vpop.f32.mrb[0].mxu0
        %v3023 = vadd.f32 0.0, %v3022
        %v3024 = vpop.f32.mrb[0].mxu0
        %3025 = vmatprep.mubr.f32.mxu0 0.0
        %3026 = vmatmul.mubr.f32.gmra.mrb[0].mxu0 %v2949
        %v3027 = vpop.f32.mrb[0].mxu0
        %v3028 = vadd.f32 0.0, %v3027
        %v3029 = vpop.f32.mrb[0].mxu0
        %3030 = vdwg.mxu0
        %v3031 = vadd.f32 %v2933, %v3018
        %v3032 = vadd.f32 %v2934, %v3023
        %v3033 = vadd.f32 %v2935, %v3028
        %v3034 = vld [vmem:[#allocation5 + $0xc] sm:$0xff]
        %v3035 = vld [vmem:[#allocation5 + $0x14] sm:$0xff]
        %v3036 = vld [vmem:[#allocation5 + $0x1c] sm:$0x3f]
        %s3037 = scalar_lea.vmem %s3, 96
        %v3038 = vld [vmem:[%s3037] sm:$0xff]
        %v3039 = vld [vmem:[%s3037 + $0x8] sm:$0xff]
        %v3041 = vsel %vm2158, %v3034, 0
        %v3044 = vsel %vm2158, %v3035, 0
        %v3047 = vsel %vm2158, %v3036, 0
        %3049 = vmatprep.subr.mxu0 0.0
        %3050 = vmatpush1.msra.mxu0 %v3038
        %3051 = vmatprep.subr.mxu0 0.0
        %3052 = vmatpush1.msra.mxu0 %v3039
        %3053 = vmatprep.subr.mxu0 0.0
        %3054 = vmatpush1.msra.mxu0 0.0
        %3055 = vmatprep.subr.mxu0 0.0
        %3056 = vmatpush1.msra.mxu0 0.0
        %3057 = vmatprep.subr.mxu0 0.0
        %3058 = vmatpush1.msra.mxu0 0.0
        %3059 = vmatprep.subr.mxu0 0.0
        %3060 = vmatpush1.msra.mxu0 0.0
        %3061 = vmatprep.subr.mxu0 0.0
        %3062 = vmatpush1.msra.mxu0 0.0
        %3063 = vmatprep.subr.mxu0 0.0
        %3064 = vmatpush1.msra.mxu0 0.0
        %3065 = vmatprep.subr.mxu0 0.0
        %3066 = vmatpush1.msra.mxu0 0.0
        %3067 = vmatprep.subr.mxu0 0.0
        %3068 = vmatpush1.msra.mxu0 0.0
        %3069 = vmatprep.subr.mxu0 0.0
        %3070 = vmatpush1.msra.mxu0 0.0
        %3071 = vmatprep.subr.mxu0 0.0
        %3072 = vmatpush1.msra.mxu0 0.0
        %3073 = vmatprep.subr.mxu0 0.0
        %3074 = vmatpush1.msra.mxu0 0.0
        %3075 = vmatprep.subr.mxu0 0.0
        %3076 = vmatpush1.msra.mxu0 0.0
        %3077 = vmatprep.subr.mxu0 0.0
        %3078 = vmatpush1.msra.mxu0 0.0
        %3079 = vmatprep.subr.mxu0 0.0
        %3080 = vmatpush1.msra.mxu0 0.0
        %3081 = vmatprep.subr.mxu0 0.0
        %3082 = vmatpush1.msra.mxu0 0.0
        %3083 = vmatprep.subr.mxu0 0.0
        %3084 = vmatpush1.msra.mxu0 0.0
        %3085 = vmatprep.subr.mxu0 0.0
        %3086 = vmatpush1.msra.mxu0 0.0
        %3087 = vmatprep.subr.mxu0 0.0
        %3088 = vmatpush1.msra.mxu0 0.0
        %3089 = vmatprep.subr.mxu0 0.0
        %3090 = vmatpush1.msra.mxu0 0.0
        %3091 = vmatprep.subr.mxu0 0.0
        %3092 = vmatpush1.msra.mxu0 0.0
        %3093 = vmatprep.subr.mxu0 0.0
        %3094 = vmatpush1.msra.mxu0 0.0
        %3095 = vmatprep.subr.mxu0 0.0
        %3096 = vmatpush1.msra.mxu0 0.0
        %3097 = vmatprep.subr.mxu0 0.0
        %3098 = vmatpush1.msra.mxu0 0.0
        %3099 = vmatprep.subr.mxu0 0.0
        %3100 = vmatpush1.msra.mxu0 0.0
        %3101 = vmatprep.subr.mxu0 0.0
        %3102 = vmatpush1.msra.mxu0 0.0
        %3103 = vmatprep.subr.mxu0 0.0
        %3104 = vmatpush1.msra.mxu0 0.0
        %3105 = vmatprep.subr.mxu0 0.0
        %3106 = vmatpush1.msra.mxu0 0.0
        %3107 = vmatprep.subr.mxu0 0.0
        %3108 = vmatpush1.msra.mxu0 0.0
        %3109 = vmatprep.subr.mxu0 0.0
        %3110 = vmatpush1.msra.mxu0 0.0
        %3111 = vmatprep.subr.mxu0 0.0
        %3112 = vmatpush1.msra.mxu0 0.0
        %3113 = vmatprep.mubr.f32.mxu0 0.0
        %3114 = vmatmul.mubr.f32.gmra.mrb[0].mxu0 %v3041
        %v3115 = vpop.f32.mrb[0].mxu0
        %v3116 = vadd.f32 0.0, %v3115
        %v3117 = vpop.f32.mrb[0].mxu0
        %3118 = vmatprep.mubr.f32.mxu0 0.0
        %3119 = vmatmul.mubr.f32.gmra.mrb[0].mxu0 %v3044
        %v3120 = vpop.f32.mrb[0].mxu0
        %v3121 = vadd.f32 0.0, %v3120
        %v3122 = vpop.f32.mrb[0].mxu0
        %3123 = vmatprep.mubr.f32.mxu0 0.0
        %3124 = vmatmul.mubr.f32.gmra.mrb[0].mxu0 %v3047
        %v3125 = vpop.f32.mrb[0].mxu0
        %v3126 = vadd.f32 0.0, %v3125
        %v3127 = vpop.f32.mrb[0].mxu0
        %3128 = vdwg.mxu0
        %v3129 = vadd.f32 %v3031, %v3116
        %v3130 = vadd.f32 %v3032, %v3121
        %v3131 = vadd.f32 %v3033, %v3126
        %v3132 = vld [vmem:[#allocation5 + $0xd] sm:$0xff]
        %v3133 = vld [vmem:[#allocation5 + $0x15] sm:$0xff]
        %v3134 = vld [vmem:[#allocation5 + $0x1d] sm:$0x3f]
        %s3135 = scalar_lea.vmem %s3, 112
        %v3136 = vld [vmem:[%s3135] sm:$0xff]
        %v3137 = vld [vmem:[%s3135 + $0x8] sm:$0xff]
        %v3139 = vsel %vm2158, %v3132, 0
        %v3142 = vsel %vm2158, %v3133, 0
        %v3145 = vsel %vm2158, %v3134, 0
        %3147 = vmatprep.subr.mxu0 0.0
        %3148 = vmatpush1.msra.mxu0 %v3136
        %3149 = vmatprep.subr.mxu0 0.0
        %3150 = vmatpush1.msra.mxu0 %v3137
        %3151 = vmatprep.subr.mxu0 0.0
        %3152 = vmatpush1.msra.mxu0 0.0
        %3153 = vmatprep.subr.mxu0 0.0
        %3154 = vmatpush1.msra.mxu0 0.0
        %3155 = vmatprep.subr.mxu0 0.0
        %3156 = vmatpush1.msra.mxu0 0.0
        %3157 = vmatprep.subr.mxu0 0.0
        %3158 = vmatpush1.msra.mxu0 0.0
        %3159 = vmatprep.subr.mxu0 0.0
        %3160 = vmatpush1.msra.mxu0 0.0
        %3161 = vmatprep.subr.mxu0 0.0
        %3162 = vmatpush1.msra.mxu0 0.0
        %3163 = vmatprep.subr.mxu0 0.0
        %3164 = vmatpush1.msra.mxu0 0.0
        %3165 = vmatprep.subr.mxu0 0.0
        %3166 = vmatpush1.msra.mxu0 0.0
        %3167 = vmatprep.subr.mxu0 0.0
        %3168 = vmatpush1.msra.mxu0 0.0
        %3169 = vmatprep.subr.mxu0 0.0
        %3170 = vmatpush1.msra.mxu0 0.0
        %3171 = vmatprep.subr.mxu0 0.0
        %3172 = vmatpush1.msra.mxu0 0.0
        %3173 = vmatprep.subr.mxu0 0.0
        %3174 = vmatpush1.msra.mxu0 0.0
        %3175 = vmatprep.subr.mxu0 0.0
        %3176 = vmatpush1.msra.mxu0 0.0
        %3177 = vmatprep.subr.mxu0 0.0
        %3178 = vmatpush1.msra.mxu0 0.0
        %3179 = vmatprep.subr.mxu0 0.0
        %3180 = vmatpush1.msra.mxu0 0.0
        %3181 = vmatprep.subr.mxu0 0.0
        %3182 = vmatpush1.msra.mxu0 0.0
        %3183 = vmatprep.subr.mxu0 0.0
        %3184 = vmatpush1.msra.mxu0 0.0
        %3185 = vmatprep.subr.mxu0 0.0
        %3186 = vmatpush1.msra.mxu0 0.0
        %3187 = vmatprep.subr.mxu0 0.0
        %3188 = vmatpush1.msra.mxu0 0.0
        %3189 = vmatprep.subr.mxu0 0.0
        %3190 = vmatpush1.msra.mxu0 0.0
        %3191 = vmatprep.subr.mxu0 0.0
        %3192 = vmatpush1.msra.mxu0 0.0
        %3193 = vmatprep.subr.mxu0 0.0
        %3194 = vmatpush1.msra.mxu0 0.0
        %3195 = vmatprep.subr.mxu0 0.0
        %3196 = vmatpush1.msra.mxu0 0.0
        %3197 = vmatprep.subr.mxu0 0.0
        %3198 = vmatpush1.msra.mxu0 0.0
        %3199 = vmatprep.subr.mxu0 0.0
        %3200 = vmatpush1.msra.mxu0 0.0
        %3201 = vmatprep.subr.mxu0 0.0
        %3202 = vmatpush1.msra.mxu0 0.0
        %3203 = vmatprep.subr.mxu0 0.0
        %3204 = vmatpush1.msra.mxu0 0.0
        %3205 = vmatprep.subr.mxu0 0.0
        %3206 = vmatpush1.msra.mxu0 0.0
        %3207 = vmatprep.subr.mxu0 0.0
        %3208 = vmatpush1.msra.mxu0 0.0
        %3209 = vmatprep.subr.mxu0 0.0
        %3210 = vmatpush1.msra.mxu0 0.0
        %3211 = vmatprep.mubr.f32.mxu0 0.0
        %3212 = vmatmul.mubr.f32.gmra.mrb[0].mxu0 %v3139
        %v3213 = vpop.f32.mrb[0].mxu0
        %v3214 = vadd.f32 0.0, %v3213
        %v3215 = vpop.f32.mrb[0].mxu0
        %3216 = vmatprep.mubr.f32.mxu0 0.0
        %3217 = vmatmul.mubr.f32.gmra.mrb[0].mxu0 %v3142
        %v3218 = vpop.f32.mrb[0].mxu0
        %v3219 = vadd.f32 0.0, %v3218
        %v3220 = vpop.f32.mrb[0].mxu0
        %3221 = vmatprep.mubr.f32.mxu0 0.0
        %3222 = vmatmul.mubr.f32.gmra.mrb[0].mxu0 %v3145
        %v3223 = vpop.f32.mrb[0].mxu0
        %v3224 = vadd.f32 0.0, %v3223
        %v3225 = vpop.f32.mrb[0].mxu0
        %3226 = vdwg.mxu0
        %v3227 = vadd.f32 %v3129, %v3214
        %v3228 = vadd.f32 %v3130, %v3219
        %v3229 = vadd.f32 %v3131, %v3224
        %v3230 = vld [vmem:[#allocation5 + $0xe] sm:$0xff]
        %v3231 = vld [vmem:[#allocation5 + $0x16] sm:$0xff]
        %v3232 = vld [vmem:[#allocation5 + $0x1e] sm:$0x3f]
        %s3233 = scalar_lea.vmem %s3, 128
        %v3234 = vld [vmem:[%s3233] sm:$0xff]
        %v3235 = vld [vmem:[%s3233 + $0x8] sm:$0xff]
        %v3237 = vsel %vm2158, %v3230, 0
        %v3240 = vsel %vm2158, %v3231, 0
        %v3243 = vsel %vm2158, %v3232, 0
        %3245 = vmatprep.subr.mxu0 0.0
        %3246 = vmatpush1.msra.mxu0 %v3234
        %3247 = vmatprep.subr.mxu0 0.0
        %3248 = vmatpush1.msra.mxu0 %v3235
        %3249 = vmatprep.subr.mxu0 0.0
        %3250 = vmatpush1.msra.mxu0 0.0
        %3251 = vmatprep.subr.mxu0 0.0
        %3252 = vmatpush1.msra.mxu0 0.0
        %3253 = vmatprep.subr.mxu0 0.0
        %3254 = vmatpush1.msra.mxu0 0.0
        %3255 = vmatprep.subr.mxu0 0.0
        %3256 = vmatpush1.msra.mxu0 0.0
        %3257 = vmatprep.subr.mxu0 0.0
        %3258 = vmatpush1.msra.mxu0 0.0
        %3259 = vmatprep.subr.mxu0 0.0
        %3260 = vmatpush1.msra.mxu0 0.0
        %3261 = vmatprep.subr.mxu0 0.0
        %3262 = vmatpush1.msra.mxu0 0.0
        %3263 = vmatprep.subr.mxu0 0.0
        %3264 = vmatpush1.msra.mxu0 0.0
        %3265 = vmatprep.subr.mxu0 0.0
        %3266 = vmatpush1.msra.mxu0 0.0
        %3267 = vmatprep.subr.mxu0 0.0
        %3268 = vmatpush1.msra.mxu0 0.0
        %3269 = vmatprep.subr.mxu0 0.0
        %3270 = vmatpush1.msra.mxu0 0.0
        %3271 = vmatprep.subr.mxu0 0.0
        %3272 = vmatpush1.msra.mxu0 0.0
        %3273 = vmatprep.subr.mxu0 0.0
        %3274 = vmatpush1.msra.mxu0 0.0
        %3275 = vmatprep.subr.mxu0 0.0
        %3276 = vmatpush1.msra.mxu0 0.0
        %3277 = vmatprep.subr.mxu0 0.0
        %3278 = vmatpush1.msra.mxu0 0.0
        %3279 = vmatprep.subr.mxu0 0.0
        %3280 = vmatpush1.msra.mxu0 0.0
        %3281 = vmatprep.subr.mxu0 0.0
        %3282 = vmatpush1.msra.mxu0 0.0
        %3283 = vmatprep.subr.mxu0 0.0
        %3284 = vmatpush1.msra.mxu0 0.0
        %3285 = vmatprep.subr.mxu0 0.0
        %3286 = vmatpush1.msra.mxu0 0.0
        %3287 = vmatprep.subr.mxu0 0.0
        %3288 = vmatpush1.msra.mxu0 0.0
        %3289 = vmatprep.subr.mxu0 0.0
        %3290 = vmatpush1.msra.mxu0 0.0
        %3291 = vmatprep.subr.mxu0 0.0
        %3292 = vmatpush1.msra.mxu0 0.0
        %3293 = vmatprep.subr.mxu0 0.0
        %3294 = vmatpush1.msra.mxu0 0.0
        %3295 = vmatprep.subr.mxu0 0.0
        %3296 = vmatpush1.msra.mxu0 0.0
        %3297 = vmatprep.subr.mxu0 0.0
        %3298 = vmatpush1.msra.mxu0 0.0
        %3299 = vmatprep.subr.mxu0 0.0
        %3300 = vmatpush1.msra.mxu0 0.0
        %3301 = vmatprep.subr.mxu0 0.0
        %3302 = vmatpush1.msra.mxu0 0.0
        %3303 = vmatprep.subr.mxu0 0.0
        %3304 = vmatpush1.msra.mxu0 0.0
        %3305 = vmatprep.subr.mxu0 0.0
        %3306 = vmatpush1.msra.mxu0 0.0
        %3307 = vmatprep.subr.mxu0 0.0
        %3308 = vmatpush1.msra.mxu0 0.0
        %3309 = vmatprep.mubr.f32.mxu0 0.0
        %3310 = vmatmul.mubr.f32.gmra.mrb[0].mxu0 %v3237
        %v3311 = vpop.f32.mrb[0].mxu0
        %v3312 = vadd.f32 0.0, %v3311
        %v3313 = vpop.f32.mrb[0].mxu0
        %3314 = vmatprep.mubr.f32.mxu0 0.0
        %3315 = vmatmul.mubr.f32.gmra.mrb[0].mxu0 %v3240
        %v3316 = vpop.f32.mrb[0].mxu0
        %v3317 = vadd.f32 0.0, %v3316
        %v3318 = vpop.f32.mrb[0].mxu0
        %3319 = vmatprep.mubr.f32.mxu0 0.0
        %3320 = vmatmul.mubr.f32.gmra.mrb[0].mxu0 %v3243
        %v3321 = vpop.f32.mrb[0].mxu0
        %v3322 = vadd.f32 0.0, %v3321
        %v3323 = vpop.f32.mrb[0].mxu0
        %3324 = vdwg.mxu0
        %v3325 = vadd.f32 %v3227, %v3312
        %v3326 = vadd.f32 %v3228, %v3317
        %v3327 = vadd.f32 %v3229, %v3322
        %v3328 = vld [vmem:[%s4] sm:$0x1]
        %v3330 = vlaneseq
        %v3331 = vshrl.u32 %v3330, 7
        %v3332 = vsub.s32 0, %v3331
        %v3333 = vrot.slane %v3328, %v3332
        %v3335 = vadd.f32 %v3325, %v3333
        %v3336 = vadd.f32 %v3326, %v3333
        %v3337 = vadd.f32 %v3327, %v3333
        %v3338 = vmax.f32 %v3335, 0.0
        %v3339 = vmax.f32 %v3336, 0.0
        %v3340 = vmax.f32 %v3337, 0.0
        %v3341 = vld [vmem:[%s5] sm:$0x1]
        %v3343 = vlaneseq
        %v3344 = vshrl.u32 %v3343, 7
        %v3345 = vsub.s32 0, %v3344
        %v3346 = vrot.slane %v3341, %v3345
        %v3348 = vmul.f32 %v3338, %v3346
        %v3349 = vmul.f32 %v3339, %v3346
        %v3350 = vmul.f32 %v3340, %v3346
        %v3351 = vld [vmem:[%s6] sm:$0x1]
        %v3353 = vlaneseq
        %v3354 = vshrl.u32 %v3353, 7
        %v3355 = vsub.s32 0, %v3354
        %v3356 = vrot.slane %v3351, %v3355
        %v3358 = vadd.f32 %v3348, %v3356
        %v3359 = vadd.f32 %v3349, %v3356
        %v3360 = vadd.f32 %v3350, %v3356
        %vm3361 = vcmask 261120
        %3362 = vst.msk [vmem:[#allocation6] sm:$0xff] %vm3361, 0.0
        %3363 = vst.msk [vmem:[#allocation6 + $0x8] sm:$0xff] %vm3361, 0.0
        %3364 = vst.msk [vmem:[#allocation6 + $0x10] sm:$0xff] %vm3361, 0.0
        %3365 = vst.msk [vmem:[#allocation6 + $0x18] sm:$0xff] %vm3361, 0.0
        %vm3366 = vcmask 257024
        %3367 = vst.msk [vmem:[#allocation6 + $0x20] sm:$0xf] %vm3366, 0.0
        %3368 = vst.msk [vmem:[#allocation6 + $0x7] sm:$0xf] %vm3366, %v3358
        %vm3369 = vcmask 261126
        %3370 = vst.msk [vmem:[#allocation6 + $0x7] sm:$0xc0] %vm3369, %v3358
        %vm3371 = vcmask 254976
        %3372 = vst.msk [vmem:[#allocation6 + $0xf] sm:$0x3] %vm3371, %v3359
        %vm3373 = vcmask 261124
        %3374 = vst.msk [vmem:[#allocation6 + $0xf] sm:$0xf0] %vm3373, %v3359
        %vm3375 = vcmask 259074
        %3376 = vst.msk [vmem:[#allocation6 + $0x17] sm:$0x3c] %vm3375, %v3360
        %v3377 = vld [vmem:[#allocation6] sm:$0xff]
        %v3378 = vld [vmem:[#allocation6 + $0x8] sm:$0xff]
        %v3379 = vld [vmem:[#allocation6 + $0x10] sm:$0x3f]
        %v3380 = vld [vmem:[%s7] sm:$0xff]
        %v3381 = vld [vmem:[%s7 + $0x8] sm:$0xff]
        %v3382 = vld [vmem:[%s7 + $0x10] sm:$0xff]
        %v3383 = vld [vmem:[%s7 + $0x18] sm:$0xff]
        %v3384 = vld [vmem:[#allocation6 + $0x1] sm:$0xff]
        %v3385 = vld [vmem:[#allocation6 + $0x9] sm:$0xff]
        %v3386 = vld [vmem:[#allocation6 + $0x11] sm:$0x3f]
        %s3387 = scalar_lea.vmem %s7, 32
        %v3388 = vld [vmem:[%s3387] sm:$0xff]
        %v3389 = vld [vmem:[%s3387 + $0x8] sm:$0xff]
        %v3390 = vld [vmem:[%s3387 + $0x10] sm:$0xff]
        %v3391 = vld [vmem:[%s3387 + $0x18] sm:$0xff]
        %v3393 = vsel %vm3361, %v3384, 0
        %v3396 = vsel %vm3361, %v3385, 0
        %v3399 = vsel %vm3361, %v3386, 0
        %3401 = vmatprep.subr.mxu0 0.0
        %3402 = vmatpush1.msra.mxu0 %v3388
        %3403 = vmatprep.subr.mxu0 0.0
        %3404 = vmatpush1.msra.mxu0 %v3389
        %3405 = vmatprep.subr.mxu0 0.0
        %3406 = vmatpush1.msra.mxu0 %v3390
        %3407 = vmatprep.subr.mxu0 0.0
        %3408 = vmatpush1.msra.mxu0 %v3391
        %3409 = vmatprep.subr.mxu0 0.0
        %3410 = vmatpush1.msra.mxu0 0.0
        %3411 = vmatprep.subr.mxu0 0.0
        %3412 = vmatpush1.msra.mxu0 0.0
        %3413 = vmatprep.subr.mxu0 0.0
        %3414 = vmatpush1.msra.mxu0 0.0
        %3415 = vmatprep.subr.mxu0 0.0
        %3416 = vmatpush1.msra.mxu0 0.0
        %3417 = vmatprep.subr.mxu0 0.0
        %3418 = vmatpush1.msra.mxu0 0.0
        %3419 = vmatprep.subr.mxu0 0.0
        %3420 = vmatpush1.msra.mxu0 0.0
        %3421 = vmatprep.subr.mxu0 0.0
        %3422 = vmatpush1.msra.mxu0 0.0
        %3423 = vmatprep.subr.mxu0 0.0
        %3424 = vmatpush1.msra.mxu0 0.0
        %3425 = vmatprep.subr.mxu0 0.0
        %3426 = vmatpush1.msra.mxu0 0.0
        %3427 = vmatprep.subr.mxu0 0.0
        %3428 = vmatpush1.msra.mxu0 0.0
        %3429 = vmatprep.subr.mxu0 0.0
        %3430 = vmatpush1.msra.mxu0 0.0
        %3431 = vmatprep.subr.mxu0 0.0
        %3432 = vmatpush1.msra.mxu0 0.0
        %3433 = vmatprep.subr.mxu0 0.0
        %3434 = vmatpush1.msra.mxu0 0.0
        %3435 = vmatprep.subr.mxu0 0.0
        %3436 = vmatpush1.msra.mxu0 0.0
        %3437 = vmatprep.subr.mxu0 0.0
        %3438 = vmatpush1.msra.mxu0 0.0
        %3439 = vmatprep.subr.mxu0 0.0
        %3440 = vmatpush1.msra.mxu0 0.0
        %3441 = vmatprep.subr.mxu0 0.0
        %3442 = vmatpush1.msra.mxu0 0.0
        %3443 = vmatprep.subr.mxu0 0.0
        %3444 = vmatpush1.msra.mxu0 0.0
        %3445 = vmatprep.subr.mxu0 0.0
        %3446 = vmatpush1.msra.mxu0 0.0
        %3447 = vmatprep.subr.mxu0 0.0
        %3448 = vmatpush1.msra.mxu0 0.0
        %3449 = vmatprep.subr.mxu0 0.0
        %3450 = vmatpush1.msra.mxu0 0.0
        %3451 = vmatprep.subr.mxu0 0.0
        %3452 = vmatpush1.msra.mxu0 0.0
        %3453 = vmatprep.subr.mxu0 0.0
        %3454 = vmatpush1.msra.mxu0 0.0
        %3455 = vmatprep.subr.mxu0 0.0
        %3456 = vmatpush1.msra.mxu0 0.0
        %3457 = vmatprep.subr.mxu0 0.0
        %3458 = vmatpush1.msra.mxu0 0.0
        %3459 = vmatprep.subr.mxu0 0.0
        %3460 = vmatpush1.msra.mxu0 0.0
        %3461 = vmatprep.subr.mxu0 0.0
        %3462 = vmatpush1.msra.mxu0 0.0
        %3463 = vmatprep.subr.mxu0 0.0
        %3464 = vmatpush1.msra.mxu0 0.0
        %3465 = vmatprep.mubr.f32.mxu0 0.0
        %3466 = vmatmul.mubr.f32.gmra.mrb[0].mxu0 %v3393
        %v3467 = vpop.f32.mrb[0].mxu0
        %v3468 = vadd.f32 0.0, %v3467
        %v3469 = vpop.f32.mrb[0].mxu0
        %3470 = vmatprep.mubr.f32.mxu0 0.0
        %3471 = vmatmul.mubr.f32.gmra.mrb[0].mxu0 %v3396
        %v3472 = vpop.f32.mrb[0].mxu0
        %v3473 = vadd.f32 0.0, %v3472
        %v3474 = vpop.f32.mrb[0].mxu0
        %3475 = vmatprep.mubr.f32.mxu0 0.0
        %3476 = vmatmul.mubr.f32.gmra.mrb[0].mxu0 %v3399
        %v3477 = vpop.f32.mrb[0].mxu0
        %v3478 = vadd.f32 0.0, %v3477
        %v3479 = vpop.f32.mrb[0].mxu0
        %3480 = vdwg.mxu0
        %v3482 = vsel %vm3361, %v3377, 0
        %v3485 = vsel %vm3361, %v3378, 0
        %v3488 = vsel %vm3361, %v3379, 0
        %3490 = vmatprep.subr.mxu0 0.0
        %3491 = vmatpush1.msra.mxu0 %v3380
        %3492 = vmatprep.subr.mxu0 0.0
        %3493 = vmatpush1.msra.mxu0 %v3381
        %3494 = vmatprep.subr.mxu0 0.0
        %3495 = vmatpush1.msra.mxu0 %v3382
        %3496 = vmatprep.subr.mxu0 0.0
        %3497 = vmatpush1.msra.mxu0 %v3383
        %3498 = vmatprep.subr.mxu0 0.0
        %3499 = vmatpush1.msra.mxu0 0.0
        %3500 = vmatprep.subr.mxu0 0.0
        %3501 = vmatpush1.msra.mxu0 0.0
        %3502 = vmatprep.subr.mxu0 0.0
        %3503 = vmatpush1.msra.mxu0 0.0
        %3504 = vmatprep.subr.mxu0 0.0
        %3505 = vmatpush1.msra.mxu0 0.0
        %3506 = vmatprep.subr.mxu0 0.0
        %3507 = vmatpush1.msra.mxu0 0.0
        %3508 = vmatprep.subr.mxu0 0.0
        %3509 = vmatpush1.msra.mxu0 0.0
        %3510 = vmatprep.subr.mxu0 0.0
        %3511 = vmatpush1.msra.mxu0 0.0
        %3512 = vmatprep.subr.mxu0 0.0
        %3513 = vmatpush1.msra.mxu0 0.0
        %3514 = vmatprep.subr.mxu0 0.0
        %3515 = vmatpush1.msra.mxu0 0.0
        %3516 = vmatprep.subr.mxu0 0.0
        %3517 = vmatpush1.msra.mxu0 0.0
        %3518 = vmatprep.subr.mxu0 0.0
        %3519 = vmatpush1.msra.mxu0 0.0
        %3520 = vmatprep.subr.mxu0 0.0
        %3521 = vmatpush1.msra.mxu0 0.0
        %3522 = vmatprep.subr.mxu0 0.0
        %3523 = vmatpush1.msra.mxu0 0.0
        %3524 = vmatprep.subr.mxu0 0.0
        %3525 = vmatpush1.msra.mxu0 0.0
        %3526 = vmatprep.subr.mxu0 0.0
        %3527 = vmatpush1.msra.mxu0 0.0
        %3528 = vmatprep.subr.mxu0 0.0
        %3529 = vmatpush1.msra.mxu0 0.0
        %3530 = vmatprep.subr.mxu0 0.0
        %3531 = vmatpush1.msra.mxu0 0.0
        %3532 = vmatprep.subr.mxu0 0.0
        %3533 = vmatpush1.msra.mxu0 0.0
        %3534 = vmatprep.subr.mxu0 0.0
        %3535 = vmatpush1.msra.mxu0 0.0
        %3536 = vmatprep.subr.mxu0 0.0
        %3537 = vmatpush1.msra.mxu0 0.0
        %3538 = vmatprep.subr.mxu0 0.0
        %3539 = vmatpush1.msra.mxu0 0.0
        %3540 = vmatprep.subr.mxu0 0.0
        %3541 = vmatpush1.msra.mxu0 0.0
        %3542 = vmatprep.subr.mxu0 0.0
        %3543 = vmatpush1.msra.mxu0 0.0
        %3544 = vmatprep.subr.mxu0 0.0
        %3545 = vmatpush1.msra.mxu0 0.0
        %3546 = vmatprep.subr.mxu0 0.0
        %3547 = vmatpush1.msra.mxu0 0.0
        %3548 = vmatprep.subr.mxu0 0.0
        %3549 = vmatpush1.msra.mxu0 0.0
        %3550 = vmatprep.subr.mxu0 0.0
        %3551 = vmatpush1.msra.mxu0 0.0
        %3552 = vmatprep.subr.mxu0 0.0
        %3553 = vmatpush1.msra.mxu0 0.0
        %3554 = vmatprep.mubr.f32.mxu0 0.0
        %3555 = vmatmul.mubr.f32.gmra.mrb[0].mxu0 %v3482
        %v3556 = vpop.f32.mrb[0].mxu0
        %v3557 = vadd.f32 %v3468, %v3556
        %v3558 = vpop.f32.mrb[0].mxu0
        %3559 = vmatprep.mubr.f32.mxu0 0.0
        %3560 = vmatmul.mubr.f32.gmra.mrb[0].mxu0 %v3485
        %v3561 = vpop.f32.mrb[0].mxu0
        %v3562 = vadd.f32 %v3473, %v3561
        %v3563 = vpop.f32.mrb[0].mxu0
        %3564 = vmatprep.mubr.f32.mxu0 0.0
        %3565 = vmatmul.mubr.f32.gmra.mrb[0].mxu0 %v3488
        %v3566 = vpop.f32.mrb[0].mxu0
        %v3567 = vadd.f32 %v3478, %v3566
        %v3568 = vpop.f32.mrb[0].mxu0
        %3569 = vdwg.mxu0
        %v3570 = vld [vmem:[#allocation6 + $0x2] sm:$0xff]
        %v3571 = vld [vmem:[#allocation6 + $0xa] sm:$0xff]
        %v3572 = vld [vmem:[#allocation6 + $0x12] sm:$0x3f]
        %s3573 = scalar_lea.vmem %s7, 64
        %v3574 = vld [vmem:[%s3573] sm:$0xff]
        %v3575 = vld [vmem:[%s3573 + $0x8] sm:$0xff]
        %v3576 = vld [vmem:[%s3573 + $0x10] sm:$0xff]
        %v3577 = vld [vmem:[%s3573 + $0x18] sm:$0xff]
        %v3579 = vsel %vm3361, %v3570, 0
        %v3582 = vsel %vm3361, %v3571, 0
        %v3585 = vsel %vm3361, %v3572, 0
        %3587 = vmatprep.subr.mxu0 0.0
        %3588 = vmatpush1.msra.mxu0 %v3574
        %3589 = vmatprep.subr.mxu0 0.0
        %3590 = vmatpush1.msra.mxu0 %v3575
        %3591 = vmatprep.subr.mxu0 0.0
        %3592 = vmatpush1.msra.mxu0 %v3576
        %3593 = vmatprep.subr.mxu0 0.0
        %3594 = vmatpush1.msra.mxu0 %v3577
        %3595 = vmatprep.subr.mxu0 0.0
        %3596 = vmatpush1.msra.mxu0 0.0
        %3597 = vmatprep.subr.mxu0 0.0
        %3598 = vmatpush1.msra.mxu0 0.0
        %3599 = vmatprep.subr.mxu0 0.0
        %3600 = vmatpush1.msra.mxu0 0.0
        %3601 = vmatprep.subr.mxu0 0.0
        %3602 = vmatpush1.msra.mxu0 0.0
        %3603 = vmatprep.subr.mxu0 0.0
        %3604 = vmatpush1.msra.mxu0 0.0
        %3605 = vmatprep.subr.mxu0 0.0
        %3606 = vmatpush1.msra.mxu0 0.0
        %3607 = vmatprep.subr.mxu0 0.0
        %3608 = vmatpush1.msra.mxu0 0.0
        %3609 = vmatprep.subr.mxu0 0.0
        %3610 = vmatpush1.msra.mxu0 0.0
        %3611 = vmatprep.subr.mxu0 0.0
        %3612 = vmatpush1.msra.mxu0 0.0
        %3613 = vmatprep.subr.mxu0 0.0
        %3614 = vmatpush1.msra.mxu0 0.0
        %3615 = vmatprep.subr.mxu0 0.0
        %3616 = vmatpush1.msra.mxu0 0.0
        %3617 = vmatprep.subr.mxu0 0.0
        %3618 = vmatpush1.msra.mxu0 0.0
        %3619 = vmatprep.subr.mxu0 0.0
        %3620 = vmatpush1.msra.mxu0 0.0
        %3621 = vmatprep.subr.mxu0 0.0
        %3622 = vmatpush1.msra.mxu0 0.0
        %3623 = vmatprep.subr.mxu0 0.0
        %3624 = vmatpush1.msra.mxu0 0.0
        %3625 = vmatprep.subr.mxu0 0.0
        %3626 = vmatpush1.msra.mxu0 0.0
        %3627 = vmatprep.subr.mxu0 0.0
        %3628 = vmatpush1.msra.mxu0 0.0
        %3629 = vmatprep.subr.mxu0 0.0
        %3630 = vmatpush1.msra.mxu0 0.0
        %3631 = vmatprep.subr.mxu0 0.0
        %3632 = vmatpush1.msra.mxu0 0.0
        %3633 = vmatprep.subr.mxu0 0.0
        %3634 = vmatpush1.msra.mxu0 0.0
        %3635 = vmatprep.subr.mxu0 0.0
        %3636 = vmatpush1.msra.mxu0 0.0
        %3637 = vmatprep.subr.mxu0 0.0
        %3638 = vmatpush1.msra.mxu0 0.0
        %3639 = vmatprep.subr.mxu0 0.0
        %3640 = vmatpush1.msra.mxu0 0.0
        %3641 = vmatprep.subr.mxu0 0.0
        %3642 = vmatpush1.msra.mxu0 0.0
        %3643 = vmatprep.subr.mxu0 0.0
        %3644 = vmatpush1.msra.mxu0 0.0
        %3645 = vmatprep.subr.mxu0 0.0
        %3646 = vmatpush1.msra.mxu0 0.0
        %3647 = vmatprep.subr.mxu0 0.0
        %3648 = vmatpush1.msra.mxu0 0.0
        %3649 = vmatprep.subr.mxu0 0.0
        %3650 = vmatpush1.msra.mxu0 0.0
        %3651 = vmatprep.mubr.f32.mxu0 0.0
        %3652 = vmatmul.mubr.f32.gmra.mrb[0].mxu0 %v3579
        %v3653 = vpop.f32.mrb[0].mxu0
        %v3654 = vadd.f32 0.0, %v3653
        %v3655 = vpop.f32.mrb[0].mxu0
        %3656 = vmatprep.mubr.f32.mxu0 0.0
        %3657 = vmatmul.mubr.f32.gmra.mrb[0].mxu0 %v3582
        %v3658 = vpop.f32.mrb[0].mxu0
        %v3659 = vadd.f32 0.0, %v3658
        %v3660 = vpop.f32.mrb[0].mxu0
        %3661 = vmatprep.mubr.f32.mxu0 0.0
        %3662 = vmatmul.mubr.f32.gmra.mrb[0].mxu0 %v3585
        %v3663 = vpop.f32.mrb[0].mxu0
        %v3664 = vadd.f32 0.0, %v3663
        %v3665 = vpop.f32.mrb[0].mxu0
        %3666 = vdwg.mxu0
        %v3667 = vadd.f32 %v3557, %v3654
        %v3668 = vadd.f32 %v3562, %v3659
        %v3669 = vadd.f32 %v3567, %v3664
        %v3670 = vld [vmem:[#allocation6 + $0x6] sm:$0xff]
        %v3671 = vld [vmem:[#allocation6 + $0xe] sm:$0xff]
        %v3672 = vld [vmem:[#allocation6 + $0x16] sm:$0x3f]
        %s3673 = scalar_lea.vmem %s7, 96
        %v3674 = vld [vmem:[%s3673] sm:$0xff]
        %v3675 = vld [vmem:[%s3673 + $0x8] sm:$0xff]
        %v3676 = vld [vmem:[%s3673 + $0x10] sm:$0xff]
        %v3677 = vld [vmem:[%s3673 + $0x18] sm:$0xff]
        %v3679 = vsel %vm3361, %v3670, 0
        %v3682 = vsel %vm3361, %v3671, 0
        %v3685 = vsel %vm3361, %v3672, 0
        %3687 = vmatprep.subr.mxu0 0.0
        %3688 = vmatpush1.msra.mxu0 %v3674
        %3689 = vmatprep.subr.mxu0 0.0
        %3690 = vmatpush1.msra.mxu0 %v3675
        %3691 = vmatprep.subr.mxu0 0.0
        %3692 = vmatpush1.msra.mxu0 %v3676
        %3693 = vmatprep.subr.mxu0 0.0
        %3694 = vmatpush1.msra.mxu0 %v3677
        %3695 = vmatprep.subr.mxu0 0.0
        %3696 = vmatpush1.msra.mxu0 0.0
        %3697 = vmatprep.subr.mxu0 0.0
        %3698 = vmatpush1.msra.mxu0 0.0
        %3699 = vmatprep.subr.mxu0 0.0
        %3700 = vmatpush1.msra.mxu0 0.0
        %3701 = vmatprep.subr.mxu0 0.0
        %3702 = vmatpush1.msra.mxu0 0.0
        %3703 = vmatprep.subr.mxu0 0.0
        %3704 = vmatpush1.msra.mxu0 0.0
        %3705 = vmatprep.subr.mxu0 0.0
        %3706 = vmatpush1.msra.mxu0 0.0
        %3707 = vmatprep.subr.mxu0 0.0
        %3708 = vmatpush1.msra.mxu0 0.0
        %3709 = vmatprep.subr.mxu0 0.0
        %3710 = vmatpush1.msra.mxu0 0.0
        %3711 = vmatprep.subr.mxu0 0.0
        %3712 = vmatpush1.msra.mxu0 0.0
        %3713 = vmatprep.subr.mxu0 0.0
        %3714 = vmatpush1.msra.mxu0 0.0
        %3715 = vmatprep.subr.mxu0 0.0
        %3716 = vmatpush1.msra.mxu0 0.0
        %3717 = vmatprep.subr.mxu0 0.0
        %3718 = vmatpush1.msra.mxu0 0.0
        %3719 = vmatprep.subr.mxu0 0.0
        %3720 = vmatpush1.msra.mxu0 0.0
        %3721 = vmatprep.subr.mxu0 0.0
        %3722 = vmatpush1.msra.mxu0 0.0
        %3723 = vmatprep.subr.mxu0 0.0
        %3724 = vmatpush1.msra.mxu0 0.0
        %3725 = vmatprep.subr.mxu0 0.0
        %3726 = vmatpush1.msra.mxu0 0.0
        %3727 = vmatprep.subr.mxu0 0.0
        %3728 = vmatpush1.msra.mxu0 0.0
        %3729 = vmatprep.subr.mxu0 0.0
        %3730 = vmatpush1.msra.mxu0 0.0
        %3731 = vmatprep.subr.mxu0 0.0
        %3732 = vmatpush1.msra.mxu0 0.0
        %3733 = vmatprep.subr.mxu0 0.0
        %3734 = vmatpush1.msra.mxu0 0.0
        %3735 = vmatprep.subr.mxu0 0.0
        %3736 = vmatpush1.msra.mxu0 0.0
        %3737 = vmatprep.subr.mxu0 0.0
        %3738 = vmatpush1.msra.mxu0 0.0
        %3739 = vmatprep.subr.mxu0 0.0
        %3740 = vmatpush1.msra.mxu0 0.0
        %3741 = vmatprep.subr.mxu0 0.0
        %3742 = vmatpush1.msra.mxu0 0.0
        %3743 = vmatprep.subr.mxu0 0.0
        %3744 = vmatpush1.msra.mxu0 0.0
        %3745 = vmatprep.subr.mxu0 0.0
        %3746 = vmatpush1.msra.mxu0 0.0
        %3747 = vmatprep.subr.mxu0 0.0
        %3748 = vmatpush1.msra.mxu0 0.0
        %3749 = vmatprep.subr.mxu0 0.0
        %3750 = vmatpush1.msra.mxu0 0.0
        %3751 = vmatprep.mubr.f32.mxu0 0.0
        %3752 = vmatmul.mubr.f32.gmra.mrb[0].mxu0 %v3679
        %v3753 = vpop.f32.mrb[0].mxu0
        %v3754 = vadd.f32 0.0, %v3753
        %v3755 = vpop.f32.mrb[0].mxu0
        %3756 = vmatprep.mubr.f32.mxu0 0.0
        %3757 = vmatmul.mubr.f32.gmra.mrb[0].mxu0 %v3682
        %v3758 = vpop.f32.mrb[0].mxu0
        %v3759 = vadd.f32 0.0, %v3758
        %v3760 = vpop.f32.mrb[0].mxu0
        %3761 = vmatprep.mubr.f32.mxu0 0.0
        %3762 = vmatmul.mubr.f32.gmra.mrb[0].mxu0 %v3685
        %v3763 = vpop.f32.mrb[0].mxu0
        %v3764 = vadd.f32 0.0, %v3763
        %v3765 = vpop.f32.mrb[0].mxu0
        %3766 = vdwg.mxu0
        %v3767 = vadd.f32 %v3667, %v3754
        %v3768 = vadd.f32 %v3668, %v3759
        %v3769 = vadd.f32 %v3669, %v3764
        %v3770 = vld [vmem:[#allocation6 + $0x7] sm:$0xff]
        %v3771 = vld [vmem:[#allocation6 + $0xf] sm:$0xff]
        %v3772 = vld [vmem:[#allocation6 + $0x17] sm:$0x3f]
        %s3773 = scalar_lea.vmem %s7, 128
        %v3774 = vld [vmem:[%s3773] sm:$0xff]
        %v3775 = vld [vmem:[%s3773 + $0x8] sm:$0xff]
        %v3776 = vld [vmem:[%s3773 + $0x10] sm:$0xff]
        %v3777 = vld [vmem:[%s3773 + $0x18] sm:$0xff]
        %v3779 = vsel %vm3361, %v3770, 0
        %v3782 = vsel %vm3361, %v3771, 0
        %v3785 = vsel %vm3361, %v3772, 0
        %3787 = vmatprep.subr.mxu0 0.0
        %3788 = vmatpush1.msra.mxu0 %v3774
        %3789 = vmatprep.subr.mxu0 0.0
        %3790 = vmatpush1.msra.mxu0 %v3775
        %3791 = vmatprep.subr.mxu0 0.0
        %3792 = vmatpush1.msra.mxu0 %v3776
        %3793 = vmatprep.subr.mxu0 0.0
        %3794 = vmatpush1.msra.mxu0 %v3777
        %3795 = vmatprep.subr.mxu0 0.0
        %3796 = vmatpush1.msra.mxu0 0.0
        %3797 = vmatprep.subr.mxu0 0.0
        %3798 = vmatpush1.msra.mxu0 0.0
        %3799 = vmatprep.subr.mxu0 0.0
        %3800 = vmatpush1.msra.mxu0 0.0
        %3801 = vmatprep.subr.mxu0 0.0
        %3802 = vmatpush1.msra.mxu0 0.0
        %3803 = vmatprep.subr.mxu0 0.0
        %3804 = vmatpush1.msra.mxu0 0.0
        %3805 = vmatprep.subr.mxu0 0.0
        %3806 = vmatpush1.msra.mxu0 0.0
        %3807 = vmatprep.subr.mxu0 0.0
        %3808 = vmatpush1.msra.mxu0 0.0
        %3809 = vmatprep.subr.mxu0 0.0
        %3810 = vmatpush1.msra.mxu0 0.0
        %3811 = vmatprep.subr.mxu0 0.0
        %3812 = vmatpush1.msra.mxu0 0.0
        %3813 = vmatprep.subr.mxu0 0.0
        %3814 = vmatpush1.msra.mxu0 0.0
        %3815 = vmatprep.subr.mxu0 0.0
        %3816 = vmatpush1.msra.mxu0 0.0
        %3817 = vmatprep.subr.mxu0 0.0
        %3818 = vmatpush1.msra.mxu0 0.0
        %3819 = vmatprep.subr.mxu0 0.0
        %3820 = vmatpush1.msra.mxu0 0.0
        %3821 = vmatprep.subr.mxu0 0.0
        %3822 = vmatpush1.msra.mxu0 0.0
        %3823 = vmatprep.subr.mxu0 0.0
        %3824 = vmatpush1.msra.mxu0 0.0
        %3825 = vmatprep.subr.mxu0 0.0
        %3826 = vmatpush1.msra.mxu0 0.0
        %3827 = vmatprep.subr.mxu0 0.0
        %3828 = vmatpush1.msra.mxu0 0.0
        %3829 = vmatprep.subr.mxu0 0.0
        %3830 = vmatpush1.msra.mxu0 0.0
        %3831 = vmatprep.subr.mxu0 0.0
        %3832 = vmatpush1.msra.mxu0 0.0
        %3833 = vmatprep.subr.mxu0 0.0
        %3834 = vmatpush1.msra.mxu0 0.0
        %3835 = vmatprep.subr.mxu0 0.0
        %3836 = vmatpush1.msra.mxu0 0.0
        %3837 = vmatprep.subr.mxu0 0.0
        %3838 = vmatpush1.msra.mxu0 0.0
        %3839 = vmatprep.subr.mxu0 0.0
        %3840 = vmatpush1.msra.mxu0 0.0
        %3841 = vmatprep.subr.mxu0 0.0
        %3842 = vmatpush1.msra.mxu0 0.0
        %3843 = vmatprep.subr.mxu0 0.0
        %3844 = vmatpush1.msra.mxu0 0.0
        %3845 = vmatprep.subr.mxu0 0.0
        %3846 = vmatpush1.msra.mxu0 0.0
        %3847 = vmatprep.subr.mxu0 0.0
        %3848 = vmatpush1.msra.mxu0 0.0
        %3849 = vmatprep.subr.mxu0 0.0
        %3850 = vmatpush1.msra.mxu0 0.0
        %3851 = vmatprep.mubr.f32.mxu0 0.0
        %3852 = vmatmul.mubr.f32.gmra.mrb[0].mxu0 %v3779
        %v3853 = vpop.f32.mrb[0].mxu0
        %v3854 = vadd.f32 0.0, %v3853
        %v3855 = vpop.f32.mrb[0].mxu0
        %3856 = vmatprep.mubr.f32.mxu0 0.0
        %3857 = vmatmul.mubr.f32.gmra.mrb[0].mxu0 %v3782
        %v3858 = vpop.f32.mrb[0].mxu0
        %v3859 = vadd.f32 0.0, %v3858
        %v3860 = vpop.f32.mrb[0].mxu0
        %3861 = vmatprep.mubr.f32.mxu0 0.0
        %3862 = vmatmul.mubr.f32.gmra.mrb[0].mxu0 %v3785
        %v3863 = vpop.f32.mrb[0].mxu0
        %v3864 = vadd.f32 0.0, %v3863
        %v3865 = vpop.f32.mrb[0].mxu0
        %3866 = vdwg.mxu0
        %v3867 = vadd.f32 %v3767, %v3854
        %v3868 = vadd.f32 %v3768, %v3859
        %v3869 = vadd.f32 %v3769, %v3864
        %v3870 = vld [vmem:[#allocation6 + $0x8] sm:$0xff]
        %v3871 = vld [vmem:[#allocation6 + $0x10] sm:$0xff]
        %v3872 = vld [vmem:[#allocation6 + $0x18] sm:$0x3f]
        %s3873 = scalar_lea.vmem %s7, 160
        %v3874 = vld [vmem:[%s3873] sm:$0xff]
        %v3875 = vld [vmem:[%s3873 + $0x8] sm:$0xff]
        %v3876 = vld [vmem:[%s3873 + $0x10] sm:$0xff]
        %v3877 = vld [vmem:[%s3873 + $0x18] sm:$0xff]
        %v3879 = vsel %vm3361, %v3870, 0
        %v3882 = vsel %vm3361, %v3871, 0
        %v3885 = vsel %vm3361, %v3872, 0
        %3887 = vmatprep.subr.mxu0 0.0
        %3888 = vmatpush1.msra.mxu0 %v3874
        %3889 = vmatprep.subr.mxu0 0.0
        %3890 = vmatpush1.msra.mxu0 %v3875
        %3891 = vmatprep.subr.mxu0 0.0
        %3892 = vmatpush1.msra.mxu0 %v3876
        %3893 = vmatprep.subr.mxu0 0.0
        %3894 = vmatpush1.msra.mxu0 %v3877
        %3895 = vmatprep.subr.mxu0 0.0
        %3896 = vmatpush1.msra.mxu0 0.0
        %3897 = vmatprep.subr.mxu0 0.0
        %3898 = vmatpush1.msra.mxu0 0.0
        %3899 = vmatprep.subr.mxu0 0.0
        %3900 = vmatpush1.msra.mxu0 0.0
        %3901 = vmatprep.subr.mxu0 0.0
        %3902 = vmatpush1.msra.mxu0 0.0
        %3903 = vmatprep.subr.mxu0 0.0
        %3904 = vmatpush1.msra.mxu0 0.0
        %3905 = vmatprep.subr.mxu0 0.0
        %3906 = vmatpush1.msra.mxu0 0.0
        %3907 = vmatprep.subr.mxu0 0.0
        %3908 = vmatpush1.msra.mxu0 0.0
        %3909 = vmatprep.subr.mxu0 0.0
        %3910 = vmatpush1.msra.mxu0 0.0
        %3911 = vmatprep.subr.mxu0 0.0
        %3912 = vmatpush1.msra.mxu0 0.0
        %3913 = vmatprep.subr.mxu0 0.0
        %3914 = vmatpush1.msra.mxu0 0.0
        %3915 = vmatprep.subr.mxu0 0.0
        %3916 = vmatpush1.msra.mxu0 0.0
        %3917 = vmatprep.subr.mxu0 0.0
        %3918 = vmatpush1.msra.mxu0 0.0
        %3919 = vmatprep.subr.mxu0 0.0
        %3920 = vmatpush1.msra.mxu0 0.0
        %3921 = vmatprep.subr.mxu0 0.0
        %3922 = vmatpush1.msra.mxu0 0.0
        %3923 = vmatprep.subr.mxu0 0.0
        %3924 = vmatpush1.msra.mxu0 0.0
        %3925 = vmatprep.subr.mxu0 0.0
        %3926 = vmatpush1.msra.mxu0 0.0
        %3927 = vmatprep.subr.mxu0 0.0
        %3928 = vmatpush1.msra.mxu0 0.0
        %3929 = vmatprep.subr.mxu0 0.0
        %3930 = vmatpush1.msra.mxu0 0.0
        %3931 = vmatprep.subr.mxu0 0.0
        %3932 = vmatpush1.msra.mxu0 0.0
        %3933 = vmatprep.subr.mxu0 0.0
        %3934 = vmatpush1.msra.mxu0 0.0
        %3935 = vmatprep.subr.mxu0 0.0
        %3936 = vmatpush1.msra.mxu0 0.0
        %3937 = vmatprep.subr.mxu0 0.0
        %3938 = vmatpush1.msra.mxu0 0.0
        %3939 = vmatprep.subr.mxu0 0.0
        %3940 = vmatpush1.msra.mxu0 0.0
        %3941 = vmatprep.subr.mxu0 0.0
        %3942 = vmatpush1.msra.mxu0 0.0
        %3943 = vmatprep.subr.mxu0 0.0
        %3944 = vmatpush1.msra.mxu0 0.0
        %3945 = vmatprep.subr.mxu0 0.0
        %3946 = vmatpush1.msra.mxu0 0.0
        %3947 = vmatprep.subr.mxu0 0.0
        %3948 = vmatpush1.msra.mxu0 0.0
        %3949 = vmatprep.subr.mxu0 0.0
        %3950 = vmatpush1.msra.mxu0 0.0
        %3951 = vmatprep.mubr.f32.mxu0 0.0
        %3952 = vmatmul.mubr.f32.gmra.mrb[0].mxu0 %v3879
        %v3953 = vpop.f32.mrb[0].mxu0
        %v3954 = vadd.f32 0.0, %v3953
        %v3955 = vpop.f32.mrb[0].mxu0
        %3956 = vmatprep.mubr.f32.mxu0 0.0
        %3957 = vmatmul.mubr.f32.gmra.mrb[0].mxu0 %v3882
        %v3958 = vpop.f32.mrb[0].mxu0
        %v3959 = vadd.f32 0.0, %v3958
        %v3960 = vpop.f32.mrb[0].mxu0
        %3961 = vmatprep.mubr.f32.mxu0 0.0
        %3962 = vmatmul.mubr.f32.gmra.mrb[0].mxu0 %v3885
        %v3963 = vpop.f32.mrb[0].mxu0
        %v3964 = vadd.f32 0.0, %v3963
        %v3965 = vpop.f32.mrb[0].mxu0
        %3966 = vdwg.mxu0
        %v3967 = vadd.f32 %v3867, %v3954
        %v3968 = vadd.f32 %v3868, %v3959
        %v3969 = vadd.f32 %v3869, %v3964
        %v3970 = vld [vmem:[#allocation6 + $0xc] sm:$0xff]
        %v3971 = vld [vmem:[#allocation6 + $0x14] sm:$0xff]
        %v3972 = vld [vmem:[#allocation6 + $0x1c] sm:$0x3f]
        %s3973 = scalar_lea.vmem %s7, 192
        %v3974 = vld [vmem:[%s3973] sm:$0xff]
        %v3975 = vld [vmem:[%s3973 + $0x8] sm:$0xff]
        %v3976 = vld [vmem:[%s3973 + $0x10] sm:$0xff]
        %v3977 = vld [vmem:[%s3973 + $0x18] sm:$0xff]
        %v3979 = vsel %vm3361, %v3970, 0
        %v3982 = vsel %vm3361, %v3971, 0
        %v3985 = vsel %vm3361, %v3972, 0
        %3987 = vmatprep.subr.mxu0 0.0
        %3988 = vmatpush1.msra.mxu0 %v3974
        %3989 = vmatprep.subr.mxu0 0.0
        %3990 = vmatpush1.msra.mxu0 %v3975
        %3991 = vmatprep.subr.mxu0 0.0
        %3992 = vmatpush1.msra.mxu0 %v3976
        %3993 = vmatprep.subr.mxu0 0.0
        %3994 = vmatpush1.msra.mxu0 %v3977
        %3995 = vmatprep.subr.mxu0 0.0
        %3996 = vmatpush1.msra.mxu0 0.0
        %3997 = vmatprep.subr.mxu0 0.0
        %3998 = vmatpush1.msra.mxu0 0.0
        %3999 = vmatprep.subr.mxu0 0.0
        %4000 = vmatpush1.msra.mxu0 0.0
        %4001 = vmatprep.subr.mxu0 0.0
        %4002 = vmatpush1.msra.mxu0 0.0
        %4003 = vmatprep.subr.mxu0 0.0
        %4004 = vmatpush1.msra.mxu0 0.0
        %4005 = vmatprep.subr.mxu0 0.0
        %4006 = vmatpush1.msra.mxu0 0.0
        %4007 = vmatprep.subr.mxu0 0.0
        %4008 = vmatpush1.msra.mxu0 0.0
        %4009 = vmatprep.subr.mxu0 0.0
        %4010 = vmatpush1.msra.mxu0 0.0
        %4011 = vmatprep.subr.mxu0 0.0
        %4012 = vmatpush1.msra.mxu0 0.0
        %4013 = vmatprep.subr.mxu0 0.0
        %4014 = vmatpush1.msra.mxu0 0.0
        %4015 = vmatprep.subr.mxu0 0.0
        %4016 = vmatpush1.msra.mxu0 0.0
        %4017 = vmatprep.subr.mxu0 0.0
        %4018 = vmatpush1.msra.mxu0 0.0
        %4019 = vmatprep.subr.mxu0 0.0
        %4020 = vmatpush1.msra.mxu0 0.0
        %4021 = vmatprep.subr.mxu0 0.0
        %4022 = vmatpush1.msra.mxu0 0.0
        %4023 = vmatprep.subr.mxu0 0.0
        %4024 = vmatpush1.msra.mxu0 0.0
        %4025 = vmatprep.subr.mxu0 0.0
        %4026 = vmatpush1.msra.mxu0 0.0
        %4027 = vmatprep.subr.mxu0 0.0
        %4028 = vmatpush1.msra.mxu0 0.0
        %4029 = vmatprep.subr.mxu0 0.0
        %4030 = vmatpush1.msra.mxu0 0.0
        %4031 = vmatprep.subr.mxu0 0.0
        %4032 = vmatpush1.msra.mxu0 0.0
        %4033 = vmatprep.subr.mxu0 0.0
        %4034 = vmatpush1.msra.mxu0 0.0
        %4035 = vmatprep.subr.mxu0 0.0
        %4036 = vmatpush1.msra.mxu0 0.0
        %4037 = vmatprep.subr.mxu0 0.0
        %4038 = vmatpush1.msra.mxu0 0.0
        %4039 = vmatprep.subr.mxu0 0.0
        %4040 = vmatpush1.msra.mxu0 0.0
        %4041 = vmatprep.subr.mxu0 0.0
        %4042 = vmatpush1.msra.mxu0 0.0
        %4043 = vmatprep.subr.mxu0 0.0
        %4044 = vmatpush1.msra.mxu0 0.0
        %4045 = vmatprep.subr.mxu0 0.0
        %4046 = vmatpush1.msra.mxu0 0.0
        %4047 = vmatprep.subr.mxu0 0.0
        %4048 = vmatpush1.msra.mxu0 0.0
        %4049 = vmatprep.subr.mxu0 0.0
        %4050 = vmatpush1.msra.mxu0 0.0
        %4051 = vmatprep.mubr.f32.mxu0 0.0
        %4052 = vmatmul.mubr.f32.gmra.mrb[0].mxu0 %v3979
        %v4053 = vpop.f32.mrb[0].mxu0
        %v4054 = vadd.f32 0.0, %v4053
        %v4055 = vpop.f32.mrb[0].mxu0
        %4056 = vmatprep.mubr.f32.mxu0 0.0
        %4057 = vmatmul.mubr.f32.gmra.mrb[0].mxu0 %v3982
        %v4058 = vpop.f32.mrb[0].mxu0
        %v4059 = vadd.f32 0.0, %v4058
        %v4060 = vpop.f32.mrb[0].mxu0
        %4061 = vmatprep.mubr.f32.mxu0 0.0
        %4062 = vmatmul.mubr.f32.gmra.mrb[0].mxu0 %v3985
        %v4063 = vpop.f32.mrb[0].mxu0
        %v4064 = vadd.f32 0.0, %v4063
        %v4065 = vpop.f32.mrb[0].mxu0
        %4066 = vdwg.mxu0
        %v4067 = vadd.f32 %v3967, %v4054
        %v4068 = vadd.f32 %v3968, %v4059
        %v4069 = vadd.f32 %v3969, %v4064
        %v4070 = vld [vmem:[#allocation6 + $0xd] sm:$0xff]
        %v4071 = vld [vmem:[#allocation6 + $0x15] sm:$0xff]
        %v4072 = vld [vmem:[#allocation6 + $0x1d] sm:$0x3f]
        %s4073 = scalar_lea.vmem %s7, 224
        %v4074 = vld [vmem:[%s4073] sm:$0xff]
        %v4075 = vld [vmem:[%s4073 + $0x8] sm:$0xff]
        %v4076 = vld [vmem:[%s4073 + $0x10] sm:$0xff]
        %v4077 = vld [vmem:[%s4073 + $0x18] sm:$0xff]
        %v4079 = vsel %vm3361, %v4070, 0
        %v4082 = vsel %vm3361, %v4071, 0
        %v4085 = vsel %vm3361, %v4072, 0
        %4087 = vmatprep.subr.mxu0 0.0
        %4088 = vmatpush1.msra.mxu0 %v4074
        %4089 = vmatprep.subr.mxu0 0.0
        %4090 = vmatpush1.msra.mxu0 %v4075
        %4091 = vmatprep.subr.mxu0 0.0
        %4092 = vmatpush1.msra.mxu0 %v4076
        %4093 = vmatprep.subr.mxu0 0.0
        %4094 = vmatpush1.msra.mxu0 %v4077
        %4095 = vmatprep.subr.mxu0 0.0
        %4096 = vmatpush1.msra.mxu0 0.0
        %4097 = vmatprep.subr.mxu0 0.0
        %4098 = vmatpush1.msra.mxu0 0.0
        %4099 = vmatprep.subr.mxu0 0.0
        %4100 = vmatpush1.msra.mxu0 0.0
        %4101 = vmatprep.subr.mxu0 0.0
        %4102 = vmatpush1.msra.mxu0 0.0
        %4103 = vmatprep.subr.mxu0 0.0
        %4104 = vmatpush1.msra.mxu0 0.0
        %4105 = vmatprep.subr.mxu0 0.0
        %4106 = vmatpush1.msra.mxu0 0.0
        %4107 = vmatprep.subr.mxu0 0.0
        %4108 = vmatpush1.msra.mxu0 0.0
        %4109 = vmatprep.subr.mxu0 0.0
        %4110 = vmatpush1.msra.mxu0 0.0
        %4111 = vmatprep.subr.mxu0 0.0
        %4112 = vmatpush1.msra.mxu0 0.0
        %4113 = vmatprep.subr.mxu0 0.0
        %4114 = vmatpush1.msra.mxu0 0.0
        %4115 = vmatprep.subr.mxu0 0.0
        %4116 = vmatpush1.msra.mxu0 0.0
        %4117 = vmatprep.subr.mxu0 0.0
        %4118 = vmatpush1.msra.mxu0 0.0
        %4119 = vmatprep.subr.mxu0 0.0
        %4120 = vmatpush1.msra.mxu0 0.0
        %4121 = vmatprep.subr.mxu0 0.0
        %4122 = vmatpush1.msra.mxu0 0.0
        %4123 = vmatprep.subr.mxu0 0.0
        %4124 = vmatpush1.msra.mxu0 0.0
        %4125 = vmatprep.subr.mxu0 0.0
        %4126 = vmatpush1.msra.mxu0 0.0
        %4127 = vmatprep.subr.mxu0 0.0
        %4128 = vmatpush1.msra.mxu0 0.0
        %4129 = vmatprep.subr.mxu0 0.0
        %4130 = vmatpush1.msra.mxu0 0.0
        %4131 = vmatprep.subr.mxu0 0.0
        %4132 = vmatpush1.msra.mxu0 0.0
        %4133 = vmatprep.subr.mxu0 0.0
        %4134 = vmatpush1.msra.mxu0 0.0
        %4135 = vmatprep.subr.mxu0 0.0
        %4136 = vmatpush1.msra.mxu0 0.0
        %4137 = vmatprep.subr.mxu0 0.0
        %4138 = vmatpush1.msra.mxu0 0.0
        %4139 = vmatprep.subr.mxu0 0.0
        %4140 = vmatpush1.msra.mxu0 0.0
        %4141 = vmatprep.subr.mxu0 0.0
        %4142 = vmatpush1.msra.mxu0 0.0
        %4143 = vmatprep.subr.mxu0 0.0
        %4144 = vmatpush1.msra.mxu0 0.0
        %4145 = vmatprep.subr.mxu0 0.0
        %4146 = vmatpush1.msra.mxu0 0.0
        %4147 = vmatprep.subr.mxu0 0.0
        %4148 = vmatpush1.msra.mxu0 0.0
        %4149 = vmatprep.subr.mxu0 0.0
        %4150 = vmatpush1.msra.mxu0 0.0
        %4151 = vmatprep.mubr.f32.mxu0 0.0
        %4152 = vmatmul.mubr.f32.gmra.mrb[0].mxu0 %v4079
        %v4153 = vpop.f32.mrb[0].mxu0
        %v4154 = vadd.f32 0.0, %v4153
        %v4155 = vpop.f32.mrb[0].mxu0
        %4156 = vmatprep.mubr.f32.mxu0 0.0
        %4157 = vmatmul.mubr.f32.gmra.mrb[0].mxu0 %v4082
        %v4158 = vpop.f32.mrb[0].mxu0
        %v4159 = vadd.f32 0.0, %v4158
        %v4160 = vpop.f32.mrb[0].mxu0
        %4161 = vmatprep.mubr.f32.mxu0 0.0
        %4162 = vmatmul.mubr.f32.gmra.mrb[0].mxu0 %v4085
        %v4163 = vpop.f32.mrb[0].mxu0
        %v4164 = vadd.f32 0.0, %v4163
        %v4165 = vpop.f32.mrb[0].mxu0
        %4166 = vdwg.mxu0
        %v4167 = vadd.f32 %v4067, %v4154
        %v4168 = vadd.f32 %v4068, %v4159
        %v4169 = vadd.f32 %v4069, %v4164
        %v4170 = vld [vmem:[#allocation6 + $0xe] sm:$0xff]
        %v4171 = vld [vmem:[#allocation6 + $0x16] sm:$0xff]
        %v4172 = vld [vmem:[#allocation6 + $0x1e] sm:$0x3f]
        %s4173 = scalar_lea.vmem %s7, 256
        %v4174 = vld [vmem:[%s4173] sm:$0xff]
        %v4175 = vld [vmem:[%s4173 + $0x8] sm:$0xff]
        %v4176 = vld [vmem:[%s4173 + $0x10] sm:$0xff]
        %v4177 = vld [vmem:[%s4173 + $0x18] sm:$0xff]
        %v4179 = vsel %vm3361, %v4170, 0
        %v4182 = vsel %vm3361, %v4171, 0
        %v4185 = vsel %vm3361, %v4172, 0
        %4187 = vmatprep.subr.mxu0 0.0
        %4188 = vmatpush1.msra.mxu0 %v4174
        %4189 = vmatprep.subr.mxu0 0.0
        %4190 = vmatpush1.msra.mxu0 %v4175
        %4191 = vmatprep.subr.mxu0 0.0
        %4192 = vmatpush1.msra.mxu0 %v4176
        %4193 = vmatprep.subr.mxu0 0.0
        %4194 = vmatpush1.msra.mxu0 %v4177
        %4195 = vmatprep.subr.mxu0 0.0
        %4196 = vmatpush1.msra.mxu0 0.0
        %4197 = vmatprep.subr.mxu0 0.0
        %4198 = vmatpush1.msra.mxu0 0.0
        %4199 = vmatprep.subr.mxu0 0.0
        %4200 = vmatpush1.msra.mxu0 0.0
        %4201 = vmatprep.subr.mxu0 0.0
        %4202 = vmatpush1.msra.mxu0 0.0
        %4203 = vmatprep.subr.mxu0 0.0
        %4204 = vmatpush1.msra.mxu0 0.0
        %4205 = vmatprep.subr.mxu0 0.0
        %4206 = vmatpush1.msra.mxu0 0.0
        %4207 = vmatprep.subr.mxu0 0.0
        %4208 = vmatpush1.msra.mxu0 0.0
        %4209 = vmatprep.subr.mxu0 0.0
        %4210 = vmatpush1.msra.mxu0 0.0
        %4211 = vmatprep.subr.mxu0 0.0
        %4212 = vmatpush1.msra.mxu0 0.0
        %4213 = vmatprep.subr.mxu0 0.0
        %4214 = vmatpush1.msra.mxu0 0.0
        %4215 = vmatprep.subr.mxu0 0.0
        %4216 = vmatpush1.msra.mxu0 0.0
        %4217 = vmatprep.subr.mxu0 0.0
        %4218 = vmatpush1.msra.mxu0 0.0
        %4219 = vmatprep.subr.mxu0 0.0
        %4220 = vmatpush1.msra.mxu0 0.0
        %4221 = vmatprep.subr.mxu0 0.0
        %4222 = vmatpush1.msra.mxu0 0.0
        %4223 = vmatprep.subr.mxu0 0.0
        %4224 = vmatpush1.msra.mxu0 0.0
        %4225 = vmatprep.subr.mxu0 0.0
        %4226 = vmatpush1.msra.mxu0 0.0
        %4227 = vmatprep.subr.mxu0 0.0
        %4228 = vmatpush1.msra.mxu0 0.0
        %4229 = vmatprep.subr.mxu0 0.0
        %4230 = vmatpush1.msra.mxu0 0.0
        %4231 = vmatprep.subr.mxu0 0.0
        %4232 = vmatpush1.msra.mxu0 0.0
        %4233 = vmatprep.subr.mxu0 0.0
        %4234 = vmatpush1.msra.mxu0 0.0
        %4235 = vmatprep.subr.mxu0 0.0
        %4236 = vmatpush1.msra.mxu0 0.0
        %4237 = vmatprep.subr.mxu0 0.0
        %4238 = vmatpush1.msra.mxu0 0.0
        %4239 = vmatprep.subr.mxu0 0.0
        %4240 = vmatpush1.msra.mxu0 0.0
        %4241 = vmatprep.subr.mxu0 0.0
        %4242 = vmatpush1.msra.mxu0 0.0
        %4243 = vmatprep.subr.mxu0 0.0
        %4244 = vmatpush1.msra.mxu0 0.0
        %4245 = vmatprep.subr.mxu0 0.0
        %4246 = vmatpush1.msra.mxu0 0.0
        %4247 = vmatprep.subr.mxu0 0.0
        %4248 = vmatpush1.msra.mxu0 0.0
        %4249 = vmatprep.subr.mxu0 0.0
        %4250 = vmatpush1.msra.mxu0 0.0
        %4251 = vmatprep.mubr.f32.mxu0 0.0
        %4252 = vmatmul.mubr.f32.gmra.mrb[0].mxu0 %v4179
        %v4253 = vpop.f32.mrb[0].mxu0
        %v4254 = vadd.f32 0.0, %v4253
        %v4255 = vpop.f32.mrb[0].mxu0
        %4256 = vmatprep.mubr.f32.mxu0 0.0
        %4257 = vmatmul.mubr.f32.gmra.mrb[0].mxu0 %v4182
        %v4258 = vpop.f32.mrb[0].mxu0
        %v4259 = vadd.f32 0.0, %v4258
        %v4260 = vpop.f32.mrb[0].mxu0
        %4261 = vmatprep.mubr.f32.mxu0 0.0
        %4262 = vmatmul.mubr.f32.gmra.mrb[0].mxu0 %v4185
        %v4263 = vpop.f32.mrb[0].mxu0
        %v4264 = vadd.f32 0.0, %v4263
        %v4265 = vpop.f32.mrb[0].mxu0
        %4266 = vdwg.mxu0
        %v4267 = vadd.f32 %v4167, %v4254
        %v4268 = vadd.f32 %v4168, %v4259
        %v4269 = vadd.f32 %v4169, %v4264
        %v4270 = vld [vmem:[%s8] sm:$0x1]
        %v4272 = vlaneseq
        %v4273 = vshrl.u32 %v4272, 7
        %v4274 = vsub.s32 0, %v4273
        %v4275 = vrot.slane %v4270, %v4274
        %v4277 = vadd.f32 %v4267, %v4275
        %v4278 = vadd.f32 %v4268, %v4275
        %v4279 = vadd.f32 %v4269, %v4275
        %vm4280 = vcmask 191488
        %v4281 = vsel %vm4280, %v4277, 0.0
        %v4282 = vrot.slane %v4281, 4
        %v4283 = vadd.f32 %v4281, %v4282
        %v4284 = vrot.slane %v4283, 2
        %v4285 = vadd.f32 %v4283, %v4284
        %v4286 = vrot.slane %v4285, 1
        %v4287 = vadd.f32 %v4285, %v4286
        %v4288 = vadd.f32 %v4287, 0.0
        %vm4291 = vcmask 1041408
        %v4292 = vrot.slane %v4277, 6
        %v4293 = vrot.slane %v4278, 6
        %v4294 = vsel %vm4291, %v4292, %v4293
        %v4296 = vsel %vm4280, %v4294, 0.0
        %v4297 = vrot.slane %v4296, 4
        %v4298 = vadd.f32 %v4296, %v4297
        %v4299 = vrot.slane %v4298, 2
        %v4300 = vadd.f32 %v4298, %v4299
        %v4301 = vrot.slane %v4300, 1
        %v4302 = vadd.f32 %v4300, %v4301
        %v4303 = vadd.f32 %v4288, %v4302
        %v4304 = vrot.slane %v4278, 4
        %v4306 = vsel %vm4280, %v4304, 0.0
        %v4307 = vrot.slane %v4306, 4
        %v4308 = vadd.f32 %v4306, %v4307
        %v4309 = vrot.slane %v4308, 2
        %v4310 = vadd.f32 %v4308, %v4309
        %v4311 = vrot.slane %v4310, 1
        %v4312 = vadd.f32 %v4310, %v4311
        %v4313 = vadd.f32 %v4303, %v4312
        %v4315 = vrot.slane %v4279, 2
        %v4317 = vsel %vm4280, %v4315, 0.0
        %v4318 = vrot.slane %v4317, 4
        %v4319 = vadd.f32 %v4317, %v4318
        %v4320 = vrot.slane %v4319, 2
        %v4321 = vadd.f32 %v4319, %v4320
        %v4322 = vrot.slane %v4321, 1
        %v4323 = vadd.f32 %v4321, %v4322
        %v4324 = vadd.f32 %v4313, %v4323
        %v4325 = vmul.f32 %v4324, 0.0625
        %vm4326 = vcmask 195584
        %v4327 = vsel %vm4326, %v4325, -inf
        %4328 = vmax.xlane.f32.xlu0 %v4327
        %v4329 = vpop.xlane.xlu0 %4328
        %v4330 = vsub.f32 %v4325, %v4329
        %v4331 = vmul.f32 %v4330, 1.442695
        %v4332 = vpow.pop %v4331
        %v4333 = vsel %vm4326, %v4332, 0.0
        %4334 = vadd.xlane.f32.xlu0 %v4333
        %v4335 = vpop.xlane.xlu0 %4334
        %v4336 = vrcp.pop %v4335
        %v4337 = vmul.f32 %v4332, %v4336
        %vm4338 = vcmask 188416
        %4339 = vst.msk [vmem:[%s324] sm:$0x1] %vm4338, %v4337
        %s4340 = sand.u32 %s225, 1
        %s4341 = scalar_lea.sflag [#allocation8], %s4340
        %s4342 = sand.u32 %s225, 1
        %s4343 = scalar_lea.vmem [#allocation7], %s4342
        // Predicated region
        $region57: #{_lambda_.1} parent=55 // pred_check
          %p4344 = pneg %p235
        $region58: #{_lambda_.1} parent=55 // pred_check_branch
          %4346 = sbr.rel (%p4344) target = $region60
        $region59: #{_lambda_.1} parent=55 // pred_region
          %s4348 = ssub.s32 16, 16
          %4349 = vsyncadd %s4341, %s4348
          %s4350 = smul.addr %s23, 16
          %s4351 = scalar_lea.hbm %s9, %s4350
          %s4353 = sshll.u32 %s4343, 4
          %s4354 = int_to_ptr.vmem [resolvable:$true] %s4353
          %4356 = dma.vmem_to_hbm [thread:$0]  %s4354, 16, %s4351, %s4341
        $region60: #{_lambda_.1} parent=55 // pred_fallthru
          _
      $region56: #{_lambda_.1} parent=5 // pred_fallthru
        _
      %p4357 = scmp.le.s32.totalorder 2, %s18
      // Predicated region
      $region61: #{_lambda_.1} parent=5 // pred_check
        %p4358 = pneg %p4357
      $region62: #{_lambda_.1} parent=5 // pred_check_branch
        %4360 = sbr.rel (%p4358) target = $region64
      $region63: #{_lambda_.1} parent=5 // pred_region
        %s4361 = ssub.s32 %s18, 2
        // Predicated region
        $region65: #{_lambda_.1} parent=63 // pred_check
          %p4362 = pneg %p241
        $region66: #{_lambda_.1} parent=63 // pred_check_branch
          %4364 = sbr.rel (%p4362) target = $region68
        $region67: #{_lambda_.1} parent=63 // pred_region
          %s4365 = sand.u32 %s226, 1
          %s4366 = scalar_lea.sflag [#allocation8], %s4365
          %s4367 = sand.u32 %s226, 1
          %s4368 = scalar_lea.vmem [#allocation7], %s4367
          %4369 = dma.done %s4366, 16
        $region68: #{_lambda_.1} parent=63 // pred_fallthru
          _
      $region64: #{_lambda_.1} parent=5 // pred_fallthru
        _
    $region6: #{_lambda_.1} parent=1 // loop_footer
      %s22 = sadd.s32 1, %s18
    $region7: #{_lambda_.1} parent=1 // loop_footer_branch
      %17 = sbr.rel target = $region3
    $region8: #{_lambda_.1} parent=1 // loop_exit
      _
    %4370 = vsyncpa [#allocation8], 1
    %s4371 = scalar_lea.sflag [#allocation8], 1
    %4372 = vsyncpa %s4371, 1

</llo_original>
